<compile_context>
chip_gen: v7x
topology: tpu7x:2x2x1
jax: 0.10.0
libtpu: 0.0.40
codegen_flags: <defaults>
</compile_context>

<pallas_src>
import math
import functools

import numpy as np
import jax
import jax.numpy as jnp
from jax.experimental import pallas as pl
from jax.experimental.pallas import tpu as pltpu


# ------------------------------ fused kernel ------------------------------

def _disenface_kernel(*refs, names, S_in, H, F, NH, L, train):
    n_in = len(names)
    r = dict(zip(names, refs[:n_in]))
    mean_ref, logsig_ref, out_ref, xbuf = refs[n_in:]

    f32 = jnp.float32
    eps = 1e-6                       # nn.LayerNorm(..., eps=1e-06)
    S_enc = S_in + 2
    dh = H // NH
    scale = 1.0 / math.sqrt(dh)

    def row(ref2d, l):               # (1, N) slice of a layer-stacked (L, N) ref
        return ref2d[pl.ds(l, 1), :]

    def layer_norm(v, g, b):         # nn.LayerNorm (biased variance)
        m = jnp.mean(v, axis=-1, keepdims=True)
        var = jnp.mean(jnp.square(v - m), axis=-1, keepdims=True)
        return (v - m) * jax.lax.rsqrt(var + eps) * g + b

    pe = r['pe'][...]                            # (S_max, H)
    bvec = r['bvec'][0]                          # (4, H): mu, sigma, actionBias, noise
    mu, sigma, abias, noise = bvec[0:1], bvec[1:2], bvec[2:3], bvec[3:4]

    # ------------------------------ encoder ------------------------------
    emb = jnp.dot(r['x'][0], r['emb_w'][...],
                  preferred_element_type=f32) + r['emb_b'][...]      # (S_in, H)
    # concat([mu, sigma, emb]) via the VMEM scratch (avoids in-kernel concat)
    xbuf[pl.ds(0, 1), :] = mu
    xbuf[pl.ds(1, 1), :] = sigma
    xbuf[pl.ds(2, S_in), :] = emb
    xs = xbuf[...] + pe[:S_enc]                                      # (S_enc, H)

    for l in range(L):
        xn = layer_norm(xs, row(r['enc_ln_g'], l), row(r['enc_ln_b'], l))
        # NOTE: the PyTorch encoder computes self-attention on x_norm but then
        # overwrites x with feed_forward(x_norm); the attention is dead code.
        pn = layer_norm(xn, row(r['enc_pln_g'], l), row(r['enc_pln_b'], l))
        h1 = jnp.maximum(jnp.dot(pn, r['enc_w1'][l], preferred_element_type=f32)
                         + row(r['enc_b1'], l), 0.0)
        ff = jnp.dot(h1, r['enc_w2'][l], preferred_element_type=f32) \
             + row(r['enc_b2'], l)
        y = ff + xn               # PositionwiseFeedForward residual (to x_norm)
        xs = y + y                # x = feed_forward(x_norm); x = x + dropout(x)

    z_mean = xs[0:1]
    log_sig = xs[1:2]
    mean_ref[0] = z_mean
    logsig_ref[0] = log_sig

    if train:
        z = noise * jnp.exp(0.5 * log_sig) + z_mean
    else:
        z = z_mean
    z = z + abias                                                    # (1, H)

    # ------------------------------ decoder ------------------------------
    xd = pe[:F]                                  # timequeries (zeros) + pos enc
    ri = jax.lax.broadcasted_iota(jnp.int32, (F, F), 0)
    ci = jax.lax.broadcasted_iota(jnp.int32, (F, F), 1)
    keep = ci > ri          # autoregressive_mask keeps strictly-upper (j > i)

    for l in range(L):
        inp = layer_norm(xd, row(r['dec_lni_g'], l), row(r['dec_lni_b'], l))
        # fused QKV projection: one lane-dense (H, 3H) matmul
        qkv = jnp.dot(inp, r['dec_t_wqkv'][l], preferred_element_type=f32) \
              + row(r['dec_t_bqkv'], l)                              # (F, 3H)
        wo = r['dec_t_wo'][l]                                        # (H, H)
        acc = jnp.zeros((F, H), f32)
        for h in range(NH):                      # head split done in-kernel
            q = qkv[:, h * dh:(h + 1) * dh]
            k = qkv[:, H + h * dh:H + (h + 1) * dh]
            v = qkv[:, 2 * H + h * dh:2 * H + (h + 1) * dh]
            sc = jax.lax.dot_general(q, k, (((1,), (1,)), ((), ())),
                                     preferred_element_type=f32) * scale
            sc = jnp.where(keep, sc, -1000000000.0)
            m = jnp.max(sc, axis=-1, keepdims=True)
            e = jnp.exp(sc - m)
            p = e * pl.reciprocal(jnp.sum(e, axis=-1, keepdims=True), approx=True)
            ctx = jnp.dot(p, v, preferred_element_type=f32)          # (F, dh)
            # head merge fused into the output projection (partial products)
            acc = acc + jnp.dot(ctx, wo[h * dh:(h + 1) * dh, :],
                                preferred_element_type=f32)
        targ = acc + row(r['dec_t_bo'], l)
        xr = layer_norm(inp + targ, row(r['dec_ln_g'], l), row(r['dec_ln_b'], l))

        # source attention: single key (z) -> softmax == 1 exactly, so
        # source_att(x, z, z) == broadcast(fc(fc_V(z))) over the F queries.
        sv = jnp.dot(z, r['dec_s_wv'][l], preferred_element_type=f32) \
             + row(r['dec_s_bv'], l)
        src = jnp.dot(sv, r['dec_s_wo'][l], preferred_element_type=f32) \
              + row(r['dec_s_bo'], l)
        x2 = src + xr                                                # broadcast

        pn = layer_norm(x2, row(r['dec_pln_g'], l), row(r['dec_pln_b'], l))
        h1 = jnp.maximum(jnp.dot(pn, r['dec_w1'][l], preferred_element_type=f32)
                         + row(r['dec_b1'], l), 0.0)
        ff = jnp.dot(h1, r['dec_w2'][l], preferred_element_type=f32) \
             + row(r['dec_b2'], l)
        xd = ff + x2

    out = jnp.dot(xd, r['fin_w'][...], preferred_element_type=f32) + r['fin_b'][...]
    out_ref[0] = out


# ------------------------------- wrapper ----------------------------------

def disenface_forward(params, cfg, x, one_hot_y, mask, noise, train=True):
    """DisenFace.forward. `mask` is accepted but unused (matches PyTorch)."""
    del mask
    B, S_in, P = x.shape
    H = cfg['hidden_unit']
    F_ = cfg['num_frame']
    L = cfg['num_layers']
    NH = cfg['num_head']
    S_enc = S_in + 2
    S_max = max(S_enc, F_)

    # label-conditioned gathers done in plain JAX (data-dependent, tiny)
    index = jnp.argmax(one_hot_y, axis=1)
    mu_g = jnp.take(params['mu'], index, axis=0)
    sig_g = jnp.take(params['sigma'], index, axis=0)
    ab_g = jnp.take(params['actionBiases'], index, axis=0)
    bvec = jnp.stack([mu_g, sig_g, ab_g, noise.astype(jnp.float32)], axis=1)  # (B,4,H)

    inputs = [
        ('x', x.astype(jnp.float32)),
        ('bvec', bvec),
        ('pe', params['pe'][:S_max]),
        ('emb_w', params['emb_w']), ('emb_b', params['emb_b']),
        ('fin_w', params['fin_w']), ('fin_b', params['fin_b']),
    ]
    for k in ('ln_g', 'ln_b', 'pln_g', 'pln_b', 'w1', 'b1', 'w2', 'b2'):
        inputs.append(('enc_' + k, params['enc'][k]))
    for k in ('lni_g', 'lni_b', 'ln_g', 'ln_b',
              't_wqkv', 't_bqkv', 't_wo', 't_bo',
              's_wv', 's_bv', 's_wo', 's_bo',
              'pln_g', 'pln_b', 'w1', 'b1', 'w2', 'b2'):
        inputs.append(('dec_' + k, params['dec'][k]))

    names = tuple(n for n, _ in inputs)
    arrays = [a for _, a in inputs]
    batch_names = {'x', 'bvec'}     # sliced per grid step; everything else resident

    def make_spec(name, arr):
        if name in batch_names:
            nrest = arr.ndim - 1
            return pl.BlockSpec((1,) + arr.shape[1:],
                                lambda b, _n=nrest: (b,) + (0,) * _n)
        nd = arr.ndim
        return pl.BlockSpec(arr.shape, lambda b, _n=nd: (0,) * _n)

    in_specs = [make_spec(n, a) for n, a in inputs]

    out_shapes = (
        jax.ShapeDtypeStruct((B, 1, H), jnp.float32),   # mean
        jax.ShapeDtypeStruct((B, 1, H), jnp.float32),   # log_sigma
        jax.ShapeDtypeStruct((B, F_, P), jnp.float32),  # x
    )
    out_specs = (
        pl.BlockSpec((1, 1, H), lambda b: (b, 0, 0)),
        pl.BlockSpec((1, 1, H), lambda b: (b, 0, 0)),
        pl.BlockSpec((1, F_, P), lambda b: (b, 0, 0)),
    )

    kernel = functools.partial(_disenface_kernel, names=names, S_in=S_in,
                               H=H, F=F_, NH=NH, L=L, train=bool(train))

    mean3, logsig3, out = pl.pallas_call(
        kernel,
        out_shape=out_shapes,
        grid=(B,),
        in_specs=in_specs,
        out_specs=out_specs,
        scratch_shapes=[pltpu.VMEM((S_enc, H), jnp.float32)],
        compiler_params=pltpu.CompilerParams(
            dimension_semantics=("parallel",)),     # 2-TC sharding on v7x
    )(*arrays)

    return {'mean': mean3[:, 0], 'log_sigma': logsig3[:, 0], 'x': out}


# --------------------------- pure-JAX reference ---------------------------

def disenface_reference(params, cfg, x, one_hot_y, noise, train=True):
    """Literal (non-Pallas) re-implementation of the PyTorch forward."""
    H = cfg['hidden_unit']; NH = cfg['num_head']; L = cfg['num_layers']
    F_ = cfg['num_frame']; dh = H // NH
    hp = jax.lax.Precision.HIGHEST

    def lin(v, w, b):
        return jnp.dot(v, w, precision=hp) + b.reshape(-1)

    def ln(v, g, b):
        m = jnp.mean(v, -1, keepdims=True)
        var = jnp.mean((v - m) ** 2, -1, keepdims=True)
        return (v - m) / jnp.sqrt(var + 1e-6) * g.reshape(-1) + b.reshape(-1)

    def mha(q, k, v, wq, bq, wk, bk, wv, bv, wo, bo, msk=None):
        if k.ndim == 2:
            k = k[:, None, :]; v = v[:, None, :]
        B_, Sq, _ = q.shape; Sk = k.shape[1]
        Q = lin(q, wq, bq).reshape(B_, Sq, NH, dh).transpose(0, 2, 1, 3)
        K = lin(k, wk, bk).reshape(B_, Sk, NH, dh).transpose(0, 2, 1, 3)
        V = lin(v, wv, bv).reshape(B_, Sk, NH, dh).transpose(0, 2, 1, 3)
        sc = jnp.einsum('bhqd,bhkd->bhqk', Q, K, precision=hp) / math.sqrt(dh)
        if msk is not None:
            sc = jnp.where(msk[:, None, :, :], sc, -1e9)
        p = jax.nn.softmax(sc, axis=-1)
        ctx = jnp.einsum('bhqk,bhkd->bhqd', p, V, precision=hp)
        ctx = ctx.transpose(0, 2, 1, 3).reshape(B_, Sq, H)
        return lin(ctx, wo, bo)

    def pwff(v, g, b, w1, b1, w2, b2):
        vn = ln(v, g, b)
        return lin(jnp.maximum(lin(vn, w1, b1), 0.0), w2, b2) + v

    enc, dec = params['enc'], params['dec']
    B = x.shape[0]
    index = jnp.argmax(one_hot_y, axis=1)
    h = lin(x, params['emb_w'], params['emb_b'])
    xs = jnp.concatenate([params['mu'][index][:, None, :],
                          params['sigma'][index][:, None, :], h], axis=1)
    xs = xs + params['pe'][None, :xs.shape[1]]
    for l in range(L):
        xn = ln(xs, enc['ln_g'][l], enc['ln_b'][l])
        y = pwff(xn, enc['pln_g'][l], enc['pln_b'][l],
                 enc['w1'][l], enc['b1'][l], enc['w2'][l], enc['b2'][l])
        xs = y + y
    z_mean = xs[:, 0]; log_sigma = xs[:, 1]
    z = noise * jnp.exp(0.5 * log_sigma) + z_mean if train else z_mean
    z = z + params['actionBiases'][index]

    xd = jnp.zeros((B, F_, H), jnp.float32) + params['pe'][None, :F_]
    row = jnp.arange(F_)[:, None]; col = jnp.arange(F_)[None, :]
    dec_mask = jnp.broadcast_to((col > row)[None, :, :], (B, F_, F_))
    zW = jnp.zeros((H, H), jnp.float32); zb = jnp.zeros((H,), jnp.float32)
    for l in range(L):
        inp = ln(xd, dec['lni_g'][l], dec['lni_b'][l])
        wqkv, bqkv = dec['t_wqkv'][l], dec['t_bqkv'][l]
        targ = mha(inp, inp, inp,
                   wqkv[:, :H], bqkv[:H], wqkv[:, H:2 * H], bqkv[H:2 * H],
                   wqkv[:, 2 * H:], bqkv[2 * H:], dec['t_wo'][l], dec['t_bo'][l],
                   msk=dec_mask)
        xr = ln(inp + targ, dec['ln_g'][l], dec['ln_b'][l])
        src = mha(xr, z, z, zW, zb, zW, zb,
                  dec['s_wv'][l], dec['s_bv'][l], dec['s_wo'][l], dec['s_bo'][l])
        xd = pwff(src + xr, dec['pln_g'][l], dec['pln_b'][l],
                  dec['w1'][l], dec['b1'][l], dec['w2'][l], dec['b2'][l])
    out = lin(xd, params['fin_w'], params['fin_b'])
    return {'mean': z_mean, 'log_sigma': log_sigma, 'x': out}


# --------------------------- parameter creation ---------------------------

def make_positional_encoding(d_model, max_len=512, freq=64.0):
    pe = np.zeros((max_len, d_model), np.float32)
    position = np.arange(max_len, dtype=np.float32)[:, None]
    div_term = np.exp(np.arange(0, d_model, 2, dtype=np.float32)
                      * -(math.log(freq) / d_model))
    div_term2 = div_term[:-1] if d_model % 2 == 1 else div_term
    pe[:, 0::2] = np.sin(position * div_term)
    pe[:, 1::2] = np.cos(position * div_term2)
    return jnp.asarray(pe)                       # (max_len, d_model)


def init_params(key, cfg):
    """Weights stored as (in, out); per-layer weights stacked on a layer axis.
    Dead parameters (encoder self-attention, MHA's unused LayerNormalization,
    source-attention Q/K, self.z_mean / self.log_sigma linears) are never used
    by forward and are not created."""
    P, H, L = cfg['num_pts'], cfg['hidden_unit'], cfg['num_layers']
    label, FF = cfg['label_size'], 4 * cfg['hidden_unit']
    ks = jax.random.split(key, 23)

    def nrm(k, shape, scale=0.05):
        return jax.random.normal(k, shape, jnp.float32) * scale

    ones = lambda *s: jnp.ones(s, jnp.float32)
    zeros = lambda *s: jnp.zeros(s, jnp.float32)

    return dict(
        emb_w=nrm(ks[0], (P, H)), emb_b=nrm(ks[1], (1, H)),
        fin_w=nrm(ks[2], (H, P)), fin_b=nrm(ks[3], (1, P)),
        mu=jax.random.normal(ks[4], (label, H), jnp.float32),
        sigma=jax.random.normal(ks[5], (label, H), jnp.float32),
        actionBiases=jax.random.normal(ks[6], (label, H), jnp.float32),
        pe=make_positional_encoding(H),
        enc=dict(
            ln_g=ones(L, H), ln_b=zeros(L, H),
            pln_g=ones(L, H), pln_b=zeros(L, H),
            w1=nrm(ks[7], (L, H, FF)), b1=nrm(ks[8], (L, FF)),
            w2=nrm(ks[9], (L, FF, H)), b2=nrm(ks[10], (L, H)),
        ),
        dec=dict(
            lni_g=ones(L, H), lni_b=zeros(L, H),
            ln_g=ones(L, H), ln_b=zeros(L, H),
            t_wqkv=nrm(ks[11], (L, H, 3 * H)), t_bqkv=nrm(ks[12], (L, 3 * H)),
            t_wo=nrm(ks[13], (L, H, H)), t_bo=nrm(ks[14], (L, H)),
            s_wv=nrm(ks[15], (L, H, H)), s_bv=nrm(ks[16], (L, H)),
            s_wo=nrm(ks[17], (L, H, H)), s_bo=nrm(ks[18], (L, H)),
            pln_g=ones(L, H), pln_b=zeros(L, H),
            w1=nrm(ks[19], (L, H, FF)), b1=nrm(ks[20], (L, FF)),
            w2=nrm(ks[21], (L, FF, H)), b2=nrm(ks[22], (L, H)),
        ),
    )


# ----------------------------------- main -----------------------------------

if __name__ == "__main__":
    cfg = dict(num_pts=16, num_frame=8, label_size=4,
               hidden_unit=32, latent_size=16, num_head=4, num_layers=2)
    B, S_in = 2, 6

    key = jax.random.PRNGKey(0)
    kp, kx, kn = jax.random.split(key, 3)
    params = init_params(kp, cfg)

    x = jax.random.normal(kx, (B, S_in, cfg['num_pts']), jnp.float32)
    one_hot_y = jax.nn.one_hot(jnp.array([1, 3]), cfg['label_size'],
                               dtype=jnp.float32)
    mask = jnp.ones((B, S_in), jnp.float32)   # unused by forward (as in PyTorch)
    noise = jax.random.normal(kn, (B, cfg['hidden_unit']), jnp.float32)

    @jax.jit
    def run(params, x, one_hot_y, mask, noise):
        return disenface_forward(params, cfg, x, one_hot_y, mask, noise,
                                 train=True)

    results = run(params, x, one_hot_y, mask, noise)
    jax.block_until_ready(results)

    assert results['x'].shape == (B, cfg['num_frame'], cfg['num_pts'])
    assert results['mean'].shape == (B, cfg['hidden_unit'])
    assert results['log_sigma'].shape == (B, cfg['hidden_unit'])

    # correctness check against a literal pure-JAX port of the PyTorch forward
    ref = disenface_reference(params, cfg, x, one_hot_y, noise, train=True)
    for k in ('mean', 'log_sigma', 'x'):
        np.testing.assert_allclose(np.asarray(results[k]), np.asarray(ref[k]),
                                   rtol=2e-2, atol=2e-2)

    print("KERNEL_OK")
</pallas_src>

<mosaic_0001>
module attributes {stable_mosaic.version = 11 : i64} {
  func.func @_disenface_kernel(%arg0: i32, %arg1: memref<1x6x16xf32, #tpu.memory_space<vmem>>, %arg2: memref<1x4x32xf32, #tpu.memory_space<vmem>>, %arg3: memref<8x32xf32, #tpu.memory_space<vmem>>, %arg4: memref<16x32xf32, #tpu.memory_space<vmem>>, %arg5: memref<1x32xf32, #tpu.memory_space<vmem>>, %arg6: memref<32x16xf32, #tpu.memory_space<vmem>>, %arg7: memref<1x16xf32, #tpu.memory_space<vmem>>, %arg8: memref<2x32xf32, #tpu.memory_space<vmem>>, %arg9: memref<2x32xf32, #tpu.memory_space<vmem>>, %arg10: memref<2x32xf32, #tpu.memory_space<vmem>>, %arg11: memref<2x32xf32, #tpu.memory_space<vmem>>, %arg12: memref<2x32x128xf32, #tpu.memory_space<vmem>>, %arg13: memref<2x128xf32, #tpu.memory_space<vmem>>, %arg14: memref<2x128x32xf32, #tpu.memory_space<vmem>>, %arg15: memref<2x32xf32, #tpu.memory_space<vmem>>, %arg16: memref<2x32xf32, #tpu.memory_space<vmem>>, %arg17: memref<2x32xf32, #tpu.memory_space<vmem>>, %arg18: memref<2x32xf32, #tpu.memory_space<vmem>>, %arg19: memref<2x32xf32, #tpu.memory_space<vmem>>, %arg20: memref<2x32x96xf32, #tpu.memory_space<vmem>>, %arg21: memref<2x96xf32, #tpu.memory_space<vmem>>, %arg22: memref<2x32x32xf32, #tpu.memory_space<vmem>>, %arg23: memref<2x32xf32, #tpu.memory_space<vmem>>, %arg24: memref<2x32x32xf32, #tpu.memory_space<vmem>>, %arg25: memref<2x32xf32, #tpu.memory_space<vmem>>, %arg26: memref<2x32x32xf32, #tpu.memory_space<vmem>>, %arg27: memref<2x32xf32, #tpu.memory_space<vmem>>, %arg28: memref<2x32xf32, #tpu.memory_space<vmem>>, %arg29: memref<2x32xf32, #tpu.memory_space<vmem>>, %arg30: memref<2x32x128xf32, #tpu.memory_space<vmem>>, %arg31: memref<2x128xf32, #tpu.memory_space<vmem>>, %arg32: memref<2x128x32xf32, #tpu.memory_space<vmem>>, %arg33: memref<2x32xf32, #tpu.memory_space<vmem>>, %arg34: memref<1x1x32xf32, #tpu.memory_space<vmem>>, %arg35: memref<1x1x32xf32, #tpu.memory_space<vmem>>, %arg36: memref<1x8x16xf32, #tpu.memory_space<vmem>>, %arg37: memref<8x32xf32, #tpu.memory_space<vmem>>) attributes {dimension_semantics = [#tpu.dimension_semantics<parallel>], iteration_bounds = array<i64: 2>, scalar_prefetch = 0 : i64, scratch_operands = 1 : i64, tpu.core_type = #tpu.core_type<tc>, window_params = [{transform_indices = @transform_0, window_bounds = array<i64: 1, 6, 16>}, {transform_indices = @transform_1, window_bounds = array<i64: 1, 4, 32>}, {pipeline_mode = #tpu.pipeline_mode<synchronous>, transform_indices = @transform_2, window_bounds = array<i64: 8, 32>}, {pipeline_mode = #tpu.pipeline_mode<synchronous>, transform_indices = @transform_3, window_bounds = array<i64: 16, 32>}, {pipeline_mode = #tpu.pipeline_mode<synchronous>, transform_indices = @transform_4, window_bounds = array<i64: 1, 32>}, {pipeline_mode = #tpu.pipeline_mode<synchronous>, transform_indices = @transform_5, window_bounds = array<i64: 32, 16>}, {pipeline_mode = #tpu.pipeline_mode<synchronous>, transform_indices = @transform_6, window_bounds = array<i64: 1, 16>}, {pipeline_mode = #tpu.pipeline_mode<synchronous>, transform_indices = @transform_7, window_bounds = array<i64: 2, 32>}, {pipeline_mode = #tpu.pipeline_mode<synchronous>, transform_indices = @transform_8, window_bounds = array<i64: 2, 32>}, {pipeline_mode = #tpu.pipeline_mode<synchronous>, transform_indices = @transform_9, window_bounds = array<i64: 2, 32>}, {pipeline_mode = #tpu.pipeline_mode<synchronous>, transform_indices = @transform_10, window_bounds = array<i64: 2, 32>}, {pipeline_mode = #tpu.pipeline_mode<synchronous>, transform_indices = @transform_11, window_bounds = array<i64: 2, 32, 128>}, {pipeline_mode = #tpu.pipeline_mode<synchronous>, transform_indices = @transform_12, window_bounds = array<i64: 2, 128>}, {pipeline_mode = #tpu.pipeline_mode<synchronous>, transform_indices = @transform_13, window_bounds = array<i64: 2, 128, 32>}, {pipeline_mode = #tpu.pipeline_mode<synchronous>, transform_indices = @transform_14, window_bounds = array<i64: 2, 32>}, {pipeline_mode = #tpu.pipeline_mode<synchronous>, transform_indices = @transform_15, window_bounds = array<i64: 2, 32>}, {pipeline_mode = #tpu.pipeline_mode<synchronous>, transform_indices = @transform_16, window_bounds = array<i64: 2, 32>}, {pipeline_mode = #tpu.pipeline_mode<synchronous>, transform_indices = @transform_17, window_bounds = array<i64: 2, 32>}, {pipeline_mode = #tpu.pipeline_mode<synchronous>, transform_indices = @transform_18, window_bounds = array<i64: 2, 32>}, {pipeline_mode = #tpu.pipeline_mode<synchronous>, transform_indices = @transform_19, window_bounds = array<i64: 2, 32, 96>}, {pipeline_mode = #tpu.pipeline_mode<synchronous>, transform_indices = @transform_20, window_bounds = array<i64: 2, 96>}, {pipeline_mode = #tpu.pipeline_mode<synchronous>, transform_indices = @transform_21, window_bounds = array<i64: 2, 32, 32>}, {pipeline_mode = #tpu.pipeline_mode<synchronous>, transform_indices = @transform_22, window_bounds = array<i64: 2, 32>}, {pipeline_mode = #tpu.pipeline_mode<synchronous>, transform_indices = @transform_23, window_bounds = array<i64: 2, 32, 32>}, {pipeline_mode = #tpu.pipeline_mode<synchronous>, transform_indices = @transform_24, window_bounds = array<i64: 2, 32>}, {pipeline_mode = #tpu.pipeline_mode<synchronous>, transform_indices = @transform_25, window_bounds = array<i64: 2, 32, 32>}, {pipeline_mode = #tpu.pipeline_mode<synchronous>, transform_indices = @transform_26, window_bounds = array<i64: 2, 32>}, {pipeline_mode = #tpu.pipeline_mode<synchronous>, transform_indices = @transform_27, window_bounds = array<i64: 2, 32>}, {pipeline_mode = #tpu.pipeline_mode<synchronous>, transform_indices = @transform_28, window_bounds = array<i64: 2, 32>}, {pipeline_mode = #tpu.pipeline_mode<synchronous>, transform_indices = @transform_29, window_bounds = array<i64: 2, 32, 128>}, {pipeline_mode = #tpu.pipeline_mode<synchronous>, transform_indices = @transform_30, window_bounds = array<i64: 2, 128>}, {pipeline_mode = #tpu.pipeline_mode<synchronous>, transform_indices = @transform_31, window_bounds = array<i64: 2, 128, 32>}, {pipeline_mode = #tpu.pipeline_mode<synchronous>, transform_indices = @transform_32, window_bounds = array<i64: 2, 32>}, {transform_indices = @transform_33, window_bounds = array<i64: 1, 1, 32>}, {transform_indices = @transform_34, window_bounds = array<i64: 1, 1, 32>}, {transform_indices = @transform_35, window_bounds = array<i64: 1, 8, 16>}]} {
    %c0 = arith.constant 0 : index
    %c0_0 = arith.constant 0 : index
    %0 = vector.load %arg3[%c0, %c0_0] : memref<8x32xf32, #tpu.memory_space<vmem>>, vector<8x32xf32>
    %c0_1 = arith.constant 0 : index
    %c0_2 = arith.constant 0 : index
    %c0_3 = arith.constant 0 : index
    %1 = vector.load %arg2[%c0_1, %c0_2, %c0_3] : memref<1x4x32xf32, #tpu.memory_space<vmem>>, vector<1x4x32xf32>
    %2 = vector.shape_cast %1 : vector<1x4x32xf32> to vector<4x32xf32>
    %3 = vector.extract_strided_slice %2 {offsets = [0, 0], sizes = [1, 32], strides = [1, 1]} : vector<4x32xf32> to vector<1x32xf32>
    %4 = vector.extract_strided_slice %2 {offsets = [1, 0], sizes = [1, 32], strides = [1, 1]} : vector<4x32xf32> to vector<1x32xf32>
    %5 = vector.extract_strided_slice %2 {offsets = [2, 0], sizes = [1, 32], strides = [1, 1]} : vector<4x32xf32> to vector<1x32xf32>
    %6 = vector.extract_strided_slice %2 {offsets = [3, 0], sizes = [1, 32], strides = [1, 1]} : vector<4x32xf32> to vector<1x32xf32>
    %c0_4 = arith.constant 0 : index
    %c0_5 = arith.constant 0 : index
    %c0_6 = arith.constant 0 : index
    %7 = vector.load %arg1[%c0_4, %c0_5, %c0_6] : memref<1x6x16xf32, #tpu.memory_space<vmem>>, vector<1x6x16xf32>
    %8 = vector.shape_cast %7 : vector<1x6x16xf32> to vector<6x16xf32>
    %c0_7 = arith.constant 0 : index
    %c0_8 = arith.constant 0 : index
    %9 = vector.load %arg4[%c0_7, %c0_8] : memref<16x32xf32, #tpu.memory_space<vmem>>, vector<16x32xf32>
    %cst = arith.constant dense<0.000000e+00> : vector<6x32xf32>
    %10 = tpu.matmul %8, %9, %cst {dimension_numbers = #tpu.dot_dimension_numbers<[1], [0], [0], [1], [0, 0, 1, 1], [], []>} : vector<6x16xf32>, vector<16x32xf32>, vector<6x32xf32> -> vector<6x32xf32>
    %c0_9 = arith.constant 0 : index
    %c0_10 = arith.constant 0 : index
    %11 = vector.load %arg5[%c0_9, %c0_10] : memref<1x32xf32, #tpu.memory_space<vmem>>, vector<1x32xf32>
    %12 = vector.broadcast %11 : vector<1x32xf32> to vector<6x32xf32>
    %13 = arith.addf %10, %12 : vector<6x32xf32>
    %c0_11 = arith.constant 0 : index
    %c0_12 = arith.constant 0 : index
    %14 = vector.load %arg37[%c0_11, %c0_12] : memref<8x32xf32, #tpu.memory_space<vmem>>, vector<1x32xf32>
    tpu.vector_store %arg37[%c0_11, %c0_12], %3 {strides = array<i32>} : memref<8x32xf32, #tpu.memory_space<vmem>>, vector<1x32xf32>,
    %c1 = arith.constant 1 : index
    %c0_13 = arith.constant 0 : index
    %15 = vector.load %arg37[%c1, %c0_13] : memref<8x32xf32, #tpu.memory_space<vmem>>, vector<1x32xf32>
    tpu.vector_store %arg37[%c1, %c0_13], %4 {strides = array<i32>} : memref<8x32xf32, #tpu.memory_space<vmem>>, vector<1x32xf32>,
    %c2 = arith.constant 2 : index
    %c0_14 = arith.constant 0 : index
    %16 = vector.load %arg37[%c2, %c0_14] : memref<8x32xf32, #tpu.memory_space<vmem>>, vector<6x32xf32>
    tpu.vector_store %arg37[%c2, %c0_14], %13 {strides = array<i32>} : memref<8x32xf32, #tpu.memory_space<vmem>>, vector<6x32xf32>,
    %c0_15 = arith.constant 0 : index
    %c0_16 = arith.constant 0 : index
    %17 = vector.load %arg37[%c0_15, %c0_16] : memref<8x32xf32, #tpu.memory_space<vmem>>, vector<8x32xf32>
    %18 = arith.addf %17, %0 : vector<8x32xf32>
    %c0_17 = arith.constant 0 : index
    %c0_18 = arith.constant 0 : index
    %19 = vector.load %arg8[%c0_17, %c0_18] : memref<2x32xf32, #tpu.memory_space<vmem>>, vector<1x32xf32>
    %c0_19 = arith.constant 0 : index
    %c0_20 = arith.constant 0 : index
    %20 = vector.load %arg9[%c0_19, %c0_20] : memref<2x32xf32, #tpu.memory_space<vmem>>, vector<1x32xf32>
    %cst_21 = arith.constant dense<0.000000e+00> : vector<8xf32>
    %21 = vector.multi_reduction <add>, %18, %cst_21 [1] : vector<8x32xf32> to vector<8xf32>
    %22 = vector.shape_cast %21 : vector<8xf32> to vector<8x1xf32>
    %cst_22 = arith.constant 3.200000e+01 : f32
    %23 = vector.broadcast %cst_22 : f32 to vector<8x1xf32>
    %24 = arith.divf %22, %23 : vector<8x1xf32>
    %25 = vector.broadcast %24 : vector<8x1xf32> to vector<8x32xf32>
    %26 = arith.subf %18, %25 : vector<8x32xf32>
    %27 = arith.mulf %26, %26 : vector<8x32xf32>
    %cst_23 = arith.constant dense<0.000000e+00> : vector<8xf32>
    %28 = vector.multi_reduction <add>, %27, %cst_23 [1] : vector<8x32xf32> to vector<8xf32>
    %29 = vector.shape_cast %28 : vector<8xf32> to vector<8x1xf32>
    %cst_24 = arith.constant 3.200000e+01 : f32
    %30 = vector.broadcast %cst_24 : f32 to vector<8x1xf32>
    %31 = arith.divf %29, %30 : vector<8x1xf32>
    %32 = vector.broadcast %24 : vector<8x1xf32> to vector<8x32xf32>
    %33 = arith.subf %18, %32 : vector<8x32xf32>
    %cst_25 = arith.constant 9.99999997E-7 : f32
    %34 = vector.broadcast %cst_25 : f32 to vector<8x1xf32>
    %35 = arith.addf %31, %34 : vector<8x1xf32>
    %36 = math.rsqrt %35 : vector<8x1xf32>
    %37 = vector.broadcast %36 : vector<8x1xf32> to vector<8x32xf32>
    %38 = arith.mulf %33, %37 : vector<8x32xf32>
    %39 = vector.broadcast %19 : vector<1x32xf32> to vector<8x32xf32>
    %40 = arith.mulf %38, %39 : vector<8x32xf32>
    %41 = vector.broadcast %20 : vector<1x32xf32> to vector<8x32xf32>
    %42 = arith.addf %40, %41 : vector<8x32xf32>
    %c0_26 = arith.constant 0 : index
    %c0_27 = arith.constant 0 : index
    %43 = vector.load %arg10[%c0_26, %c0_27] : memref<2x32xf32, #tpu.memory_space<vmem>>, vector<1x32xf32>
    %c0_28 = arith.constant 0 : index
    %c0_29 = arith.constant 0 : index
    %44 = vector.load %arg11[%c0_28, %c0_29] : memref<2x32xf32, #tpu.memory_space<vmem>>, vector<1x32xf32>
    %cst_30 = arith.constant dense<0.000000e+00> : vector<8xf32>
    %45 = vector.multi_reduction <add>, %42, %cst_30 [1] : vector<8x32xf32> to vector<8xf32>
    %46 = vector.shape_cast %45 : vector<8xf32> to vector<8x1xf32>
    %cst_31 = arith.constant 3.200000e+01 : f32
    %47 = vector.broadcast %cst_31 : f32 to vector<8x1xf32>
    %48 = arith.divf %46, %47 : vector<8x1xf32>
    %49 = vector.broadcast %48 : vector<8x1xf32> to vector<8x32xf32>
    %50 = arith.subf %42, %49 : vector<8x32xf32>
    %51 = arith.mulf %50, %50 : vector<8x32xf32>
    %cst_32 = arith.constant dense<0.000000e+00> : vector<8xf32>
    %52 = vector.multi_reduction <add>, %51, %cst_32 [1] : vector<8x32xf32> to vector<8xf32>
    %53 = vector.shape_cast %52 : vector<8xf32> to vector<8x1xf32>
    %cst_33 = arith.constant 3.200000e+01 : f32
    %54 = vector.broadcast %cst_33 : f32 to vector<8x1xf32>
    %55 = arith.divf %53, %54 : vector<8x1xf32>
    %56 = vector.broadcast %48 : vector<8x1xf32> to vector<8x32xf32>
    %57 = arith.subf %42, %56 : vector<8x32xf32>
    %cst_34 = arith.constant 9.99999997E-7 : f32
    %58 = vector.broadcast %cst_34 : f32 to vector<8x1xf32>
    %59 = arith.addf %55, %58 : vector<8x1xf32>
    %60 = math.rsqrt %59 : vector<8x1xf32>
    %61 = vector.broadcast %60 : vector<8x1xf32> to vector<8x32xf32>
    %62 = arith.mulf %57, %61 : vector<8x32xf32>
    %63 = vector.broadcast %43 : vector<1x32xf32> to vector<8x32xf32>
    %64 = arith.mulf %62, %63 : vector<8x32xf32>
    %65 = vector.broadcast %44 : vector<1x32xf32> to vector<8x32xf32>
    %66 = arith.addf %64, %65 : vector<8x32xf32>
    %c0_35 = arith.constant 0 : index
    %c0_36 = arith.constant 0 : index
    %c0_37 = arith.constant 0 : index
    %67 = vector.load %arg12[%c0_35, %c0_36, %c0_37] : memref<2x32x128xf32, #tpu.memory_space<vmem>>, vector<1x32x128xf32>
    %68 = vector.shape_cast %67 : vector<1x32x128xf32> to vector<32x128xf32>
    %cst_38 = arith.constant dense<0.000000e+00> : vector<8x128xf32>
    %69 = tpu.matmul %66, %68, %cst_38 {dimension_numbers = #tpu.dot_dimension_numbers<[1], [0], [0], [1], [0, 0, 1, 1], [], []>} : vector<8x32xf32>, vector<32x128xf32>, vector<8x128xf32> -> vector<8x128xf32>
    %c0_39 = arith.constant 0 : index
    %c0_40 = arith.constant 0 : index
    %70 = vector.load %arg13[%c0_39, %c0_40] : memref<2x128xf32, #tpu.memory_space<vmem>>, vector<1x128xf32>
    %71 = vector.broadcast %70 : vector<1x128xf32> to vector<8x128xf32>
    %72 = arith.addf %69, %71 : vector<8x128xf32>
    %cst_41 = arith.constant 0.000000e+00 : f32
    %73 = vector.broadcast %cst_41 : f32 to vector<8x128xf32>
    %74 = arith.maximumf %72, %73 : vector<8x128xf32>
    %c0_42 = arith.constant 0 : index
    %c0_43 = arith.constant 0 : index
    %c0_44 = arith.constant 0 : index
    %75 = vector.load %arg14[%c0_42, %c0_43, %c0_44] : memref<2x128x32xf32, #tpu.memory_space<vmem>>, vector<1x128x32xf32>
    %76 = vector.shape_cast %75 : vector<1x128x32xf32> to vector<128x32xf32>
    %cst_45 = arith.constant dense<0.000000e+00> : vector<8x32xf32>
    %77 = tpu.matmul %74, %76, %cst_45 {dimension_numbers = #tpu.dot_dimension_numbers<[1], [0], [0], [1], [0, 0, 1, 1], [], []>} : vector<8x128xf32>, vector<128x32xf32>, vector<8x32xf32> -> vector<8x32xf32>
    %c0_46 = arith.constant 0 : index
    %c0_47 = arith.constant 0 : index
    %78 = vector.load %arg15[%c0_46, %c0_47] : memref<2x32xf32, #tpu.memory_space<vmem>>, vector<1x32xf32>
    %79 = vector.broadcast %78 : vector<1x32xf32> to vector<8x32xf32>
    %80 = arith.addf %77, %79 : vector<8x32xf32>
    %81 = arith.addf %80, %42 : vector<8x32xf32>
    %82 = arith.addf %81, %81 : vector<8x32xf32>
    %c1_48 = arith.constant 1 : index
    %c0_49 = arith.constant 0 : index
    %83 = vector.load %arg8[%c1_48, %c0_49] : memref<2x32xf32, #tpu.memory_space<vmem>>, vector<1x32xf32>
    %c1_50 = arith.constant 1 : index
    %c0_51 = arith.constant 0 : index
    %84 = vector.load %arg9[%c1_50, %c0_51] : memref<2x32xf32, #tpu.memory_space<vmem>>, vector<1x32xf32>
    %cst_52 = arith.constant dense<0.000000e+00> : vector<8xf32>
    %85 = vector.multi_reduction <add>, %82, %cst_52 [1] : vector<8x32xf32> to vector<8xf32>
    %86 = vector.shape_cast %85 : vector<8xf32> to vector<8x1xf32>
    %cst_53 = arith.constant 3.200000e+01 : f32
    %87 = vector.broadcast %cst_53 : f32 to vector<8x1xf32>
    %88 = arith.divf %86, %87 : vector<8x1xf32>
    %89 = vector.broadcast %88 : vector<8x1xf32> to vector<8x32xf32>
    %90 = arith.subf %82, %89 : vector<8x32xf32>
    %91 = arith.mulf %90, %90 : vector<8x32xf32>
    %cst_54 = arith.constant dense<0.000000e+00> : vector<8xf32>
    %92 = vector.multi_reduction <add>, %91, %cst_54 [1] : vector<8x32xf32> to vector<8xf32>
    %93 = vector.shape_cast %92 : vector<8xf32> to vector<8x1xf32>
    %cst_55 = arith.constant 3.200000e+01 : f32
    %94 = vector.broadcast %cst_55 : f32 to vector<8x1xf32>
    %95 = arith.divf %93, %94 : vector<8x1xf32>
    %96 = vector.broadcast %88 : vector<8x1xf32> to vector<8x32xf32>
    %97 = arith.subf %82, %96 : vector<8x32xf32>
    %cst_56 = arith.constant 9.99999997E-7 : f32
    %98 = vector.broadcast %cst_56 : f32 to vector<8x1xf32>
    %99 = arith.addf %95, %98 : vector<8x1xf32>
    %100 = math.rsqrt %99 : vector<8x1xf32>
    %101 = vector.broadcast %100 : vector<8x1xf32> to vector<8x32xf32>
    %102 = arith.mulf %97, %101 : vector<8x32xf32>
    %103 = vector.broadcast %83 : vector<1x32xf32> to vector<8x32xf32>
    %104 = arith.mulf %102, %103 : vector<8x32xf32>
    %105 = vector.broadcast %84 : vector<1x32xf32> to vector<8x32xf32>
    %106 = arith.addf %104, %105 : vector<8x32xf32>
    %c1_57 = arith.constant 1 : index
    %c0_58 = arith.constant 0 : index
    %107 = vector.load %arg10[%c1_57, %c0_58] : memref<2x32xf32, #tpu.memory_space<vmem>>, vector<1x32xf32>
    %c1_59 = arith.constant 1 : index
    %c0_60 = arith.constant 0 : index
    %108 = vector.load %arg11[%c1_59, %c0_60] : memref<2x32xf32, #tpu.memory_space<vmem>>, vector<1x32xf32>
    %cst_61 = arith.constant dense<0.000000e+00> : vector<8xf32>
    %109 = vector.multi_reduction <add>, %106, %cst_61 [1] : vector<8x32xf32> to vector<8xf32>
    %110 = vector.shape_cast %109 : vector<8xf32> to vector<8x1xf32>
    %cst_62 = arith.constant 3.200000e+01 : f32
    %111 = vector.broadcast %cst_62 : f32 to vector<8x1xf32>
    %112 = arith.divf %110, %111 : vector<8x1xf32>
    %113 = vector.broadcast %112 : vector<8x1xf32> to vector<8x32xf32>
    %114 = arith.subf %106, %113 : vector<8x32xf32>
    %115 = arith.mulf %114, %114 : vector<8x32xf32>
    %cst_63 = arith.constant dense<0.000000e+00> : vector<8xf32>
    %116 = vector.multi_reduction <add>, %115, %cst_63 [1] : vector<8x32xf32> to vector<8xf32>
    %117 = vector.shape_cast %116 : vector<8xf32> to vector<8x1xf32>
    %cst_64 = arith.constant 3.200000e+01 : f32
    %118 = vector.broadcast %cst_64 : f32 to vector<8x1xf32>
    %119 = arith.divf %117, %118 : vector<8x1xf32>
    %120 = vector.broadcast %112 : vector<8x1xf32> to vector<8x32xf32>
    %121 = arith.subf %106, %120 : vector<8x32xf32>
    %cst_65 = arith.constant 9.99999997E-7 : f32
    %122 = vector.broadcast %cst_65 : f32 to vector<8x1xf32>
    %123 = arith.addf %119, %122 : vector<8x1xf32>
    %124 = math.rsqrt %123 : vector<8x1xf32>
    %125 = vector.broadcast %124 : vector<8x1xf32> to vector<8x32xf32>
    %126 = arith.mulf %121, %125 : vector<8x32xf32>
    %127 = vector.broadcast %107 : vector<1x32xf32> to vector<8x32xf32>
    %128 = arith.mulf %126, %127 : vector<8x32xf32>
    %129 = vector.broadcast %108 : vector<1x32xf32> to vector<8x32xf32>
    %130 = arith.addf %128, %129 : vector<8x32xf32>
    %c1_66 = arith.constant 1 : index
    %c0_67 = arith.constant 0 : index
    %c0_68 = arith.constant 0 : index
    %131 = vector.load %arg12[%c1_66, %c0_67, %c0_68] : memref<2x32x128xf32, #tpu.memory_space<vmem>>, vector<1x32x128xf32>
    %132 = vector.shape_cast %131 : vector<1x32x128xf32> to vector<32x128xf32>
    %cst_69 = arith.constant dense<0.000000e+00> : vector<8x128xf32>
    %133 = tpu.matmul %130, %132, %cst_69 {dimension_numbers = #tpu.dot_dimension_numbers<[1], [0], [0], [1], [0, 0, 1, 1], [], []>} : vector<8x32xf32>, vector<32x128xf32>, vector<8x128xf32> -> vector<8x128xf32>
    %c1_70 = arith.constant 1 : index
    %c0_71 = arith.constant 0 : index
    %134 = vector.load %arg13[%c1_70, %c0_71] : memref<2x128xf32, #tpu.memory_space<vmem>>, vector<1x128xf32>
    %135 = vector.broadcast %134 : vector<1x128xf32> to vector<8x128xf32>
    %136 = arith.addf %133, %135 : vector<8x128xf32>
    %cst_72 = arith.constant 0.000000e+00 : f32
    %137 = vector.broadcast %cst_72 : f32 to vector<8x128xf32>
    %138 = arith.maximumf %136, %137 : vector<8x128xf32>
    %c1_73 = arith.constant 1 : index
    %c0_74 = arith.constant 0 : index
    %c0_75 = arith.constant 0 : index
    %139 = vector.load %arg14[%c1_73, %c0_74, %c0_75] : memref<2x128x32xf32, #tpu.memory_space<vmem>>, vector<1x128x32xf32>
    %140 = vector.shape_cast %139 : vector<1x128x32xf32> to vector<128x32xf32>
    %cst_76 = arith.constant dense<0.000000e+00> : vector<8x32xf32>
    %141 = tpu.matmul %138, %140, %cst_76 {dimension_numbers = #tpu.dot_dimension_numbers<[1], [0], [0], [1], [0, 0, 1, 1], [], []>} : vector<8x128xf32>, vector<128x32xf32>, vector<8x32xf32> -> vector<8x32xf32>
    %c1_77 = arith.constant 1 : index
    %c0_78 = arith.constant 0 : index
    %142 = vector.load %arg15[%c1_77, %c0_78] : memref<2x32xf32, #tpu.memory_space<vmem>>, vector<1x32xf32>
    %143 = vector.broadcast %142 : vector<1x32xf32> to vector<8x32xf32>
    %144 = arith.addf %141, %143 : vector<8x32xf32>
    %145 = arith.addf %144, %106 : vector<8x32xf32>
    %146 = arith.addf %145, %145 : vector<8x32xf32>
    %147 = vector.extract_strided_slice %146 {offsets = [0, 0], sizes = [1, 32], strides = [1, 1]} : vector<8x32xf32> to vector<1x32xf32>
    %148 = vector.extract_strided_slice %146 {offsets = [1, 0], sizes = [1, 32], strides = [1, 1]} : vector<8x32xf32> to vector<1x32xf32>
    %c0_79 = arith.constant 0 : index
    %c0_80 = arith.constant 0 : index
    %c0_81 = arith.constant 0 : index
    %149 = vector.load %arg34[%c0_79, %c0_80, %c0_81] : memref<1x1x32xf32, #tpu.memory_space<vmem>>, vector<1x1x32xf32>
    %150 = vector.shape_cast %149 : vector<1x1x32xf32> to vector<1x32xf32>
    %151 = vector.shape_cast %147 : vector<1x32xf32> to vector<1x1x32xf32>
    tpu.vector_store %arg34[%c0_79, %c0_80, %c0_81], %151 {strides = array<i32>} : memref<1x1x32xf32, #tpu.memory_space<vmem>>, vector<1x1x32xf32>,
    %c0_82 = arith.constant 0 : index
    %c0_83 = arith.constant 0 : index
    %c0_84 = arith.constant 0 : index
    %152 = vector.load %arg35[%c0_82, %c0_83, %c0_84] : memref<1x1x32xf32, #tpu.memory_space<vmem>>, vector<1x1x32xf32>
    %153 = vector.shape_cast %152 : vector<1x1x32xf32> to vector<1x32xf32>
    %154 = vector.shape_cast %148 : vector<1x32xf32> to vector<1x1x32xf32>
    tpu.vector_store %arg35[%c0_82, %c0_83, %c0_84], %154 {strides = array<i32>} : memref<1x1x32xf32, #tpu.memory_space<vmem>>, vector<1x1x32xf32>,
    %cst_85 = arith.constant 5.000000e-01 : f32
    %155 = vector.broadcast %cst_85 : f32 to vector<1x32xf32>
    %156 = arith.mulf %155, %148 : vector<1x32xf32>
    %157 = math.exp %156 : vector<1x32xf32>
    %158 = arith.mulf %6, %157 : vector<1x32xf32>
    %159 = arith.addf %158, %147 : vector<1x32xf32>
    %160 = arith.addf %159, %5 : vector<1x32xf32>
    %161 = tpu.iota {dimensions = array<i32: 0>} : vector<8x8xi32>
    %162 = tpu.iota {dimensions = array<i32: 1>} : vector<8x8xi32>
    %163 = arith.cmpi sgt, %162, %161 : vector<8x8xi32>
    %c0_86 = arith.constant 0 : index
    %c0_87 = arith.constant 0 : index
    %164 = vector.load %arg16[%c0_86, %c0_87] : memref<2x32xf32, #tpu.memory_space<vmem>>, vector<1x32xf32>
    %c0_88 = arith.constant 0 : index
    %c0_89 = arith.constant 0 : index
    %165 = vector.load %arg17[%c0_88, %c0_89] : memref<2x32xf32, #tpu.memory_space<vmem>>, vector<1x32xf32>
    %cst_90 = arith.constant dense<0.000000e+00> : vector<8xf32>
    %166 = vector.multi_reduction <add>, %0, %cst_90 [1] : vector<8x32xf32> to vector<8xf32>
    %167 = vector.shape_cast %166 : vector<8xf32> to vector<8x1xf32>
    %cst_91 = arith.constant 3.200000e+01 : f32
    %168 = vector.broadcast %cst_91 : f32 to vector<8x1xf32>
    %169 = arith.divf %167, %168 : vector<8x1xf32>
    %170 = vector.broadcast %169 : vector<8x1xf32> to vector<8x32xf32>
    %171 = arith.subf %0, %170 : vector<8x32xf32>
    %172 = arith.mulf %171, %171 : vector<8x32xf32>
    %cst_92 = arith.constant dense<0.000000e+00> : vector<8xf32>
    %173 = vector.multi_reduction <add>, %172, %cst_92 [1] : vector<8x32xf32> to vector<8xf32>
    %174 = vector.shape_cast %173 : vector<8xf32> to vector<8x1xf32>
    %cst_93 = arith.constant 3.200000e+01 : f32
    %175 = vector.broadcast %cst_93 : f32 to vector<8x1xf32>
    %176 = arith.divf %174, %175 : vector<8x1xf32>
    %177 = vector.broadcast %169 : vector<8x1xf32> to vector<8x32xf32>
    %178 = arith.subf %0, %177 : vector<8x32xf32>
    %cst_94 = arith.constant 9.99999997E-7 : f32
    %179 = vector.broadcast %cst_94 : f32 to vector<8x1xf32>
    %180 = arith.addf %176, %179 : vector<8x1xf32>
    %181 = math.rsqrt %180 : vector<8x1xf32>
    %182 = vector.broadcast %181 : vector<8x1xf32> to vector<8x32xf32>
    %183 = arith.mulf %178, %182 : vector<8x32xf32>
    %184 = vector.broadcast %164 : vector<1x32xf32> to vector<8x32xf32>
    %185 = arith.mulf %183, %184 : vector<8x32xf32>
    %186 = vector.broadcast %165 : vector<1x32xf32> to vector<8x32xf32>
    %187 = arith.addf %185, %186 : vector<8x32xf32>
    %c0_95 = arith.constant 0 : index
    %c0_96 = arith.constant 0 : index
    %c0_97 = arith.constant 0 : index
    %188 = vector.load %arg20[%c0_95, %c0_96, %c0_97] : memref<2x32x96xf32, #tpu.memory_space<vmem>>, vector<1x32x96xf32>
    %189 = vector.shape_cast %188 : vector<1x32x96xf32> to vector<32x96xf32>
    %cst_98 = arith.constant dense<0.000000e+00> : vector<8x96xf32>
    %190 = tpu.matmul %187, %189, %cst_98 {dimension_numbers = #tpu.dot_dimension_numbers<[1], [0], [0], [1], [0, 0, 1, 1], [], []>} : vector<8x32xf32>, vector<32x96xf32>, vector<8x96xf32> -> vector<8x96xf32>
    %c0_99 = arith.constant 0 : index
    %c0_100 = arith.constant 0 : index
    %191 = vector.load %arg21[%c0_99, %c0_100] : memref<2x96xf32, #tpu.memory_space<vmem>>, vector<1x96xf32>
    %192 = vector.broadcast %191 : vector<1x96xf32> to vector<8x96xf32>
    %193 = arith.addf %190, %192 : vector<8x96xf32>
    %c0_101 = arith.constant 0 : index
    %c0_102 = arith.constant 0 : index
    %c0_103 = arith.constant 0 : index
    %194 = vector.load %arg22[%c0_101, %c0_102, %c0_103] : memref<2x32x32xf32, #tpu.memory_space<vmem>>, vector<1x32x32xf32>
    %195 = vector.shape_cast %194 : vector<1x32x32xf32> to vector<32x32xf32>
    %cst_104 = arith.constant 0.000000e+00 : f32
    %196 = vector.broadcast %cst_104 : f32 to vector<8x32xf32>
    %197 = vector.extract_strided_slice %193 {offsets = [0, 0], sizes = [8, 8], strides = [1, 1]} : vector<8x96xf32> to vector<8x8xf32>
    %198 = vector.extract_strided_slice %193 {offsets = [0, 32], sizes = [8, 8], strides = [1, 1]} : vector<8x96xf32> to vector<8x8xf32>
    %199 = vector.extract_strided_slice %193 {offsets = [0, 64], sizes = [8, 8], strides = [1, 1]} : vector<8x96xf32> to vector<8x8xf32>
    %cst_105 = arith.constant dense<0.000000e+00> : vector<8x8xf32>
    %200 = tpu.matmul %197, %198, %cst_105 {dimension_numbers = #tpu.dot_dimension_numbers<[1], [1], [0], [0], [0, 0, 1, 0], [], []>} : vector<8x8xf32>, vector<8x8xf32>, vector<8x8xf32> -> vector<8x8xf32>
    %cst_106 = arith.constant 0.353553385 : f32
    %201 = vector.broadcast %cst_106 : f32 to vector<8x8xf32>
    %202 = arith.mulf %200, %201 : vector<8x8xf32>
    %cst_107 = arith.constant -1.000000e+09 : f32
    %203 = vector.broadcast %cst_107 : f32 to vector<8x8xf32>
    %204 = arith.select %163, %202, %203 : vector<8x8xi1>, vector<8x8xf32>
    %cst_108 = arith.constant dense<0xFF800000> : vector<8xf32>
    %205 = vector.multi_reduction <maximumf>, %204, %cst_108 [1] : vector<8x8xf32> to vector<8xf32>
    %206 = vector.shape_cast %205 : vector<8xf32> to vector<8x1xf32>
    %207 = vector.broadcast %206 : vector<8x1xf32> to vector<8x8xf32>
    %208 = arith.subf %204, %207 : vector<8x8xf32>
    %209 = math.exp %208 : vector<8x8xf32>
    %cst_109 = arith.constant dense<0.000000e+00> : vector<8xf32>
    %210 = vector.multi_reduction <add>, %209, %cst_109 [1] : vector<8x8xf32> to vector<8xf32>
    %211 = vector.shape_cast %210 : vector<8xf32> to vector<8x1xf32>
    %212 = tpu.reciprocal %211 {approx = true} : vector<8x1xf32> -> vector<8x1xf32>
    %213 = vector.broadcast %212 : vector<8x1xf32> to vector<8x8xf32>
    %214 = arith.mulf %209, %213 : vector<8x8xf32>
    %cst_110 = arith.constant dense<0.000000e+00> : vector<8x8xf32>
    %215 = tpu.matmul %214, %199, %cst_110 {dimension_numbers = #tpu.dot_dimension_numbers<[1], [0], [0], [1], [0, 0, 1, 1], [], []>} : vector<8x8xf32>, vector<8x8xf32>, vector<8x8xf32> -> vector<8x8xf32>
    %216 = vector.extract_strided_slice %195 {offsets = [0, 0], sizes = [8, 32], strides = [1, 1]} : vector<32x32xf32> to vector<8x32xf32>
    %cst_111 = arith.constant dense<0.000000e+00> : vector<8x32xf32>
    %217 = tpu.matmul %215, %216, %cst_111 {dimension_numbers = #tpu.dot_dimension_numbers<[1], [0], [0], [1], [0, 0, 1, 1], [], []>} : vector<8x8xf32>, vector<8x32xf32>, vector<8x32xf32> -> vector<8x32xf32>
    %218 = arith.addf %196, %217 : vector<8x32xf32>
    %219 = vector.extract_strided_slice %193 {offsets = [0, 8], sizes = [8, 8], strides = [1, 1]} : vector<8x96xf32> to vector<8x8xf32>
    %220 = vector.extract_strided_slice %193 {offsets = [0, 40], sizes = [8, 8], strides = [1, 1]} : vector<8x96xf32> to vector<8x8xf32>
    %221 = vector.extract_strided_slice %193 {offsets = [0, 72], sizes = [8, 8], strides = [1, 1]} : vector<8x96xf32> to vector<8x8xf32>
    %cst_112 = arith.constant dense<0.000000e+00> : vector<8x8xf32>
    %222 = tpu.matmul %219, %220, %cst_112 {dimension_numbers = #tpu.dot_dimension_numbers<[1], [1], [0], [0], [0, 0, 1, 0], [], []>} : vector<8x8xf32>, vector<8x8xf32>, vector<8x8xf32> -> vector<8x8xf32>
    %cst_113 = arith.constant 0.353553385 : f32
    %223 = vector.broadcast %cst_113 : f32 to vector<8x8xf32>
    %224 = arith.mulf %222, %223 : vector<8x8xf32>
    %cst_114 = arith.constant -1.000000e+09 : f32
    %225 = vector.broadcast %cst_114 : f32 to vector<8x8xf32>
    %226 = arith.select %163, %224, %225 : vector<8x8xi1>, vector<8x8xf32>
    %cst_115 = arith.constant dense<0xFF800000> : vector<8xf32>
    %227 = vector.multi_reduction <maximumf>, %226, %cst_115 [1] : vector<8x8xf32> to vector<8xf32>
    %228 = vector.shape_cast %227 : vector<8xf32> to vector<8x1xf32>
    %229 = vector.broadcast %228 : vector<8x1xf32> to vector<8x8xf32>
    %230 = arith.subf %226, %229 : vector<8x8xf32>
    %231 = math.exp %230 : vector<8x8xf32>
    %cst_116 = arith.constant dense<0.000000e+00> : vector<8xf32>
    %232 = vector.multi_reduction <add>, %231, %cst_116 [1] : vector<8x8xf32> to vector<8xf32>
    %233 = vector.shape_cast %232 : vector<8xf32> to vector<8x1xf32>
    %234 = tpu.reciprocal %233 {approx = true} : vector<8x1xf32> -> vector<8x1xf32>
    %235 = vector.broadcast %234 : vector<8x1xf32> to vector<8x8xf32>
    %236 = arith.mulf %231, %235 : vector<8x8xf32>
    %cst_117 = arith.constant dense<0.000000e+00> : vector<8x8xf32>
    %237 = tpu.matmul %236, %221, %cst_117 {dimension_numbers = #tpu.dot_dimension_numbers<[1], [0], [0], [1], [0, 0, 1, 1], [], []>} : vector<8x8xf32>, vector<8x8xf32>, vector<8x8xf32> -> vector<8x8xf32>
    %238 = vector.extract_strided_slice %195 {offsets = [8, 0], sizes = [8, 32], strides = [1, 1]} : vector<32x32xf32> to vector<8x32xf32>
    %cst_118 = arith.constant dense<0.000000e+00> : vector<8x32xf32>
    %239 = tpu.matmul %237, %238, %cst_118 {dimension_numbers = #tpu.dot_dimension_numbers<[1], [0], [0], [1], [0, 0, 1, 1], [], []>} : vector<8x8xf32>, vector<8x32xf32>, vector<8x32xf32> -> vector<8x32xf32>
    %240 = arith.addf %218, %239 : vector<8x32xf32>
    %241 = vector.extract_strided_slice %193 {offsets = [0, 16], sizes = [8, 8], strides = [1, 1]} : vector<8x96xf32> to vector<8x8xf32>
    %242 = vector.extract_strided_slice %193 {offsets = [0, 48], sizes = [8, 8], strides = [1, 1]} : vector<8x96xf32> to vector<8x8xf32>
    %243 = vector.extract_strided_slice %193 {offsets = [0, 80], sizes = [8, 8], strides = [1, 1]} : vector<8x96xf32> to vector<8x8xf32>
    %cst_119 = arith.constant dense<0.000000e+00> : vector<8x8xf32>
    %244 = tpu.matmul %241, %242, %cst_119 {dimension_numbers = #tpu.dot_dimension_numbers<[1], [1], [0], [0], [0, 0, 1, 0], [], []>} : vector<8x8xf32>, vector<8x8xf32>, vector<8x8xf32> -> vector<8x8xf32>
    %cst_120 = arith.constant 0.353553385 : f32
    %245 = vector.broadcast %cst_120 : f32 to vector<8x8xf32>
    %246 = arith.mulf %244, %245 : vector<8x8xf32>
    %cst_121 = arith.constant -1.000000e+09 : f32
    %247 = vector.broadcast %cst_121 : f32 to vector<8x8xf32>
    %248 = arith.select %163, %246, %247 : vector<8x8xi1>, vector<8x8xf32>
    %cst_122 = arith.constant dense<0xFF800000> : vector<8xf32>
    %249 = vector.multi_reduction <maximumf>, %248, %cst_122 [1] : vector<8x8xf32> to vector<8xf32>
    %250 = vector.shape_cast %249 : vector<8xf32> to vector<8x1xf32>
    %251 = vector.broadcast %250 : vector<8x1xf32> to vector<8x8xf32>
    %252 = arith.subf %248, %251 : vector<8x8xf32>
    %253 = math.exp %252 : vector<8x8xf32>
    %cst_123 = arith.constant dense<0.000000e+00> : vector<8xf32>
    %254 = vector.multi_reduction <add>, %253, %cst_123 [1] : vector<8x8xf32> to vector<8xf32>
    %255 = vector.shape_cast %254 : vector<8xf32> to vector<8x1xf32>
    %256 = tpu.reciprocal %255 {approx = true} : vector<8x1xf32> -> vector<8x1xf32>
    %257 = vector.broadcast %256 : vector<8x1xf32> to vector<8x8xf32>
    %258 = arith.mulf %253, %257 : vector<8x8xf32>
    %cst_124 = arith.constant dense<0.000000e+00> : vector<8x8xf32>
    %259 = tpu.matmul %258, %243, %cst_124 {dimension_numbers = #tpu.dot_dimension_numbers<[1], [0], [0], [1], [0, 0, 1, 1], [], []>} : vector<8x8xf32>, vector<8x8xf32>, vector<8x8xf32> -> vector<8x8xf32>
    %260 = vector.extract_strided_slice %195 {offsets = [16, 0], sizes = [8, 32], strides = [1, 1]} : vector<32x32xf32> to vector<8x32xf32>
    %cst_125 = arith.constant dense<0.000000e+00> : vector<8x32xf32>
    %261 = tpu.matmul %259, %260, %cst_125 {dimension_numbers = #tpu.dot_dimension_numbers<[1], [0], [0], [1], [0, 0, 1, 1], [], []>} : vector<8x8xf32>, vector<8x32xf32>, vector<8x32xf32> -> vector<8x32xf32>
    %262 = arith.addf %240, %261 : vector<8x32xf32>
    %263 = vector.extract_strided_slice %193 {offsets = [0, 24], sizes = [8, 8], strides = [1, 1]} : vector<8x96xf32> to vector<8x8xf32>
    %264 = vector.extract_strided_slice %193 {offsets = [0, 56], sizes = [8, 8], strides = [1, 1]} : vector<8x96xf32> to vector<8x8xf32>
    %265 = vector.extract_strided_slice %193 {offsets = [0, 88], sizes = [8, 8], strides = [1, 1]} : vector<8x96xf32> to vector<8x8xf32>
    %cst_126 = arith.constant dense<0.000000e+00> : vector<8x8xf32>
    %266 = tpu.matmul %263, %264, %cst_126 {dimension_numbers = #tpu.dot_dimension_numbers<[1], [1], [0], [0], [0, 0, 1, 0], [], []>} : vector<8x8xf32>, vector<8x8xf32>, vector<8x8xf32> -> vector<8x8xf32>
    %cst_127 = arith.constant 0.353553385 : f32
    %267 = vector.broadcast %cst_127 : f32 to vector<8x8xf32>
    %268 = arith.mulf %266, %267 : vector<8x8xf32>
    %cst_128 = arith.constant -1.000000e+09 : f32
    %269 = vector.broadcast %cst_128 : f32 to vector<8x8xf32>
    %270 = arith.select %163, %268, %269 : vector<8x8xi1>, vector<8x8xf32>
    %cst_129 = arith.constant dense<0xFF800000> : vector<8xf32>
    %271 = vector.multi_reduction <maximumf>, %270, %cst_129 [1] : vector<8x8xf32> to vector<8xf32>
    %272 = vector.shape_cast %271 : vector<8xf32> to vector<8x1xf32>
    %273 = vector.broadcast %272 : vector<8x1xf32> to vector<8x8xf32>
    %274 = arith.subf %270, %273 : vector<8x8xf32>
    %275 = math.exp %274 : vector<8x8xf32>
    %cst_130 = arith.constant dense<0.000000e+00> : vector<8xf32>
    %276 = vector.multi_reduction <add>, %275, %cst_130 [1] : vector<8x8xf32> to vector<8xf32>
    %277 = vector.shape_cast %276 : vector<8xf32> to vector<8x1xf32>
    %278 = tpu.reciprocal %277 {approx = true} : vector<8x1xf32> -> vector<8x1xf32>
    %279 = vector.broadcast %278 : vector<8x1xf32> to vector<8x8xf32>
    %280 = arith.mulf %275, %279 : vector<8x8xf32>
    %cst_131 = arith.constant dense<0.000000e+00> : vector<8x8xf32>
    %281 = tpu.matmul %280, %265, %cst_131 {dimension_numbers = #tpu.dot_dimension_numbers<[1], [0], [0], [1], [0, 0, 1, 1], [], []>} : vector<8x8xf32>, vector<8x8xf32>, vector<8x8xf32> -> vector<8x8xf32>
    %282 = vector.extract_strided_slice %195 {offsets = [24, 0], sizes = [8, 32], strides = [1, 1]} : vector<32x32xf32> to vector<8x32xf32>
    %cst_132 = arith.constant dense<0.000000e+00> : vector<8x32xf32>
    %283 = tpu.matmul %281, %282, %cst_132 {dimension_numbers = #tpu.dot_dimension_numbers<[1], [0], [0], [1], [0, 0, 1, 1], [], []>} : vector<8x8xf32>, vector<8x32xf32>, vector<8x32xf32> -> vector<8x32xf32>
    %284 = arith.addf %262, %283 : vector<8x32xf32>
    %c0_133 = arith.constant 0 : index
    %c0_134 = arith.constant 0 : index
    %285 = vector.load %arg23[%c0_133, %c0_134] : memref<2x32xf32, #tpu.memory_space<vmem>>, vector<1x32xf32>
    %286 = vector.broadcast %285 : vector<1x32xf32> to vector<8x32xf32>
    %287 = arith.addf %284, %286 : vector<8x32xf32>
    %288 = arith.addf %187, %287 : vector<8x32xf32>
    %c0_135 = arith.constant 0 : index
    %c0_136 = arith.constant 0 : index
    %289 = vector.load %arg18[%c0_135, %c0_136] : memref<2x32xf32, #tpu.memory_space<vmem>>, vector<1x32xf32>
    %c0_137 = arith.constant 0 : index
    %c0_138 = arith.constant 0 : index
    %290 = vector.load %arg19[%c0_137, %c0_138] : memref<2x32xf32, #tpu.memory_space<vmem>>, vector<1x32xf32>
    %cst_139 = arith.constant dense<0.000000e+00> : vector<8xf32>
    %291 = vector.multi_reduction <add>, %288, %cst_139 [1] : vector<8x32xf32> to vector<8xf32>
    %292 = vector.shape_cast %291 : vector<8xf32> to vector<8x1xf32>
    %cst_140 = arith.constant 3.200000e+01 : f32
    %293 = vector.broadcast %cst_140 : f32 to vector<8x1xf32>
    %294 = arith.divf %292, %293 : vector<8x1xf32>
    %295 = vector.broadcast %294 : vector<8x1xf32> to vector<8x32xf32>
    %296 = arith.subf %288, %295 : vector<8x32xf32>
    %297 = arith.mulf %296, %296 : vector<8x32xf32>
    %cst_141 = arith.constant dense<0.000000e+00> : vector<8xf32>
    %298 = vector.multi_reduction <add>, %297, %cst_141 [1] : vector<8x32xf32> to vector<8xf32>
    %299 = vector.shape_cast %298 : vector<8xf32> to vector<8x1xf32>
    %cst_142 = arith.constant 3.200000e+01 : f32
    %300 = vector.broadcast %cst_142 : f32 to vector<8x1xf32>
    %301 = arith.divf %299, %300 : vector<8x1xf32>
    %302 = vector.broadcast %294 : vector<8x1xf32> to vector<8x32xf32>
    %303 = arith.subf %288, %302 : vector<8x32xf32>
    %cst_143 = arith.constant 9.99999997E-7 : f32
    %304 = vector.broadcast %cst_143 : f32 to vector<8x1xf32>
    %305 = arith.addf %301, %304 : vector<8x1xf32>
    %306 = math.rsqrt %305 : vector<8x1xf32>
    %307 = vector.broadcast %306 : vector<8x1xf32> to vector<8x32xf32>
    %308 = arith.mulf %303, %307 : vector<8x32xf32>
    %309 = vector.broadcast %289 : vector<1x32xf32> to vector<8x32xf32>
    %310 = arith.mulf %308, %309 : vector<8x32xf32>
    %311 = vector.broadcast %290 : vector<1x32xf32> to vector<8x32xf32>
    %312 = arith.addf %310, %311 : vector<8x32xf32>
    %c0_144 = arith.constant 0 : index
    %c0_145 = arith.constant 0 : index
    %c0_146 = arith.constant 0 : index
    %313 = vector.load %arg24[%c0_144, %c0_145, %c0_146] : memref<2x32x32xf32, #tpu.memory_space<vmem>>, vector<1x32x32xf32>
    %314 = vector.shape_cast %313 : vector<1x32x32xf32> to vector<32x32xf32>
    %cst_147 = arith.constant dense<0.000000e+00> : vector<1x32xf32>
    %315 = tpu.matmul %160, %314, %cst_147 {dimension_numbers = #tpu.dot_dimension_numbers<[1], [0], [0], [1], [0, 0, 1, 1], [], []>} : vector<1x32xf32>, vector<32x32xf32>, vector<1x32xf32> -> vector<1x32xf32>
    %c0_148 = arith.constant 0 : index
    %c0_149 = arith.constant 0 : index
    %316 = vector.load %arg25[%c0_148, %c0_149] : memref<2x32xf32, #tpu.memory_space<vmem>>, vector<1x32xf32>
    %317 = arith.addf %315, %316 : vector<1x32xf32>
    %c0_150 = arith.constant 0 : index
    %c0_151 = arith.constant 0 : index
    %c0_152 = arith.constant 0 : index
    %318 = vector.load %arg26[%c0_150, %c0_151, %c0_152] : memref<2x32x32xf32, #tpu.memory_space<vmem>>, vector<1x32x32xf32>
    %319 = vector.shape_cast %318 : vector<1x32x32xf32> to vector<32x32xf32>
    %cst_153 = arith.constant dense<0.000000e+00> : vector<1x32xf32>
    %320 = tpu.matmul %317, %319, %cst_153 {dimension_numbers = #tpu.dot_dimension_numbers<[1], [0], [0], [1], [0, 0, 1, 1], [], []>} : vector<1x32xf32>, vector<32x32xf32>, vector<1x32xf32> -> vector<1x32xf32>
    %c0_154 = arith.constant 0 : index
    %c0_155 = arith.constant 0 : index
    %321 = vector.load %arg27[%c0_154, %c0_155] : memref<2x32xf32, #tpu.memory_space<vmem>>, vector<1x32xf32>
    %322 = arith.addf %320, %321 : vector<1x32xf32>
    %323 = vector.broadcast %322 : vector<1x32xf32> to vector<8x32xf32>
    %324 = arith.addf %323, %312 : vector<8x32xf32>
    %c0_156 = arith.constant 0 : index
    %c0_157 = arith.constant 0 : index
    %325 = vector.load %arg28[%c0_156, %c0_157] : memref<2x32xf32, #tpu.memory_space<vmem>>, vector<1x32xf32>
    %c0_158 = arith.constant 0 : index
    %c0_159 = arith.constant 0 : index
    %326 = vector.load %arg29[%c0_158, %c0_159] : memref<2x32xf32, #tpu.memory_space<vmem>>, vector<1x32xf32>
    %cst_160 = arith.constant dense<0.000000e+00> : vector<8xf32>
    %327 = vector.multi_reduction <add>, %324, %cst_160 [1] : vector<8x32xf32> to vector<8xf32>
    %328 = vector.shape_cast %327 : vector<8xf32> to vector<8x1xf32>
    %cst_161 = arith.constant 3.200000e+01 : f32
    %329 = vector.broadcast %cst_161 : f32 to vector<8x1xf32>
    %330 = arith.divf %328, %329 : vector<8x1xf32>
    %331 = vector.broadcast %330 : vector<8x1xf32> to vector<8x32xf32>
    %332 = arith.subf %324, %331 : vector<8x32xf32>
    %333 = arith.mulf %332, %332 : vector<8x32xf32>
    %cst_162 = arith.constant dense<0.000000e+00> : vector<8xf32>
    %334 = vector.multi_reduction <add>, %333, %cst_162 [1] : vector<8x32xf32> to vector<8xf32>
    %335 = vector.shape_cast %334 : vector<8xf32> to vector<8x1xf32>
    %cst_163 = arith.constant 3.200000e+01 : f32
    %336 = vector.broadcast %cst_163 : f32 to vector<8x1xf32>
    %337 = arith.divf %335, %336 : vector<8x1xf32>
    %338 = vector.broadcast %330 : vector<8x1xf32> to vector<8x32xf32>
    %339 = arith.subf %324, %338 : vector<8x32xf32>
    %cst_164 = arith.constant 9.99999997E-7 : f32
    %340 = vector.broadcast %cst_164 : f32 to vector<8x1xf32>
    %341 = arith.addf %337, %340 : vector<8x1xf32>
    %342 = math.rsqrt %341 : vector<8x1xf32>
    %343 = vector.broadcast %342 : vector<8x1xf32> to vector<8x32xf32>
    %344 = arith.mulf %339, %343 : vector<8x32xf32>
    %345 = vector.broadcast %325 : vector<1x32xf32> to vector<8x32xf32>
    %346 = arith.mulf %344, %345 : vector<8x32xf32>
    %347 = vector.broadcast %326 : vector<1x32xf32> to vector<8x32xf32>
    %348 = arith.addf %346, %347 : vector<8x32xf32>
    %c0_165 = arith.constant 0 : index
    %c0_166 = arith.constant 0 : index
    %c0_167 = arith.constant 0 : index
    %349 = vector.load %arg30[%c0_165, %c0_166, %c0_167] : memref<2x32x128xf32, #tpu.memory_space<vmem>>, vector<1x32x128xf32>
    %350 = vector.shape_cast %349 : vector<1x32x128xf32> to vector<32x128xf32>
    %cst_168 = arith.constant dense<0.000000e+00> : vector<8x128xf32>
    %351 = tpu.matmul %348, %350, %cst_168 {dimension_numbers = #tpu.dot_dimension_numbers<[1], [0], [0], [1], [0, 0, 1, 1], [], []>} : vector<8x32xf32>, vector<32x128xf32>, vector<8x128xf32> -> vector<8x128xf32>
    %c0_169 = arith.constant 0 : index
    %c0_170 = arith.constant 0 : index
    %352 = vector.load %arg31[%c0_169, %c0_170] : memref<2x128xf32, #tpu.memory_space<vmem>>, vector<1x128xf32>
    %353 = vector.broadcast %352 : vector<1x128xf32> to vector<8x128xf32>
    %354 = arith.addf %351, %353 : vector<8x128xf32>
    %cst_171 = arith.constant 0.000000e+00 : f32
    %355 = vector.broadcast %cst_171 : f32 to vector<8x128xf32>
    %356 = arith.maximumf %354, %355 : vector<8x128xf32>
    %c0_172 = arith.constant 0 : index
    %c0_173 = arith.constant 0 : index
    %c0_174 = arith.constant 0 : index
    %357 = vector.load %arg32[%c0_172, %c0_173, %c0_174] : memref<2x128x32xf32, #tpu.memory_space<vmem>>, vector<1x128x32xf32>
    %358 = vector.shape_cast %357 : vector<1x128x32xf32> to vector<128x32xf32>
    %cst_175 = arith.constant dense<0.000000e+00> : vector<8x32xf32>
    %359 = tpu.matmul %356, %358, %cst_175 {dimension_numbers = #tpu.dot_dimension_numbers<[1], [0], [0], [1], [0, 0, 1, 1], [], []>} : vector<8x128xf32>, vector<128x32xf32>, vector<8x32xf32> -> vector<8x32xf32>
    %c0_176 = arith.constant 0 : index
    %c0_177 = arith.constant 0 : index
    %360 = vector.load %arg33[%c0_176, %c0_177] : memref<2x32xf32, #tpu.memory_space<vmem>>, vector<1x32xf32>
    %361 = vector.broadcast %360 : vector<1x32xf32> to vector<8x32xf32>
    %362 = arith.addf %359, %361 : vector<8x32xf32>
    %363 = arith.addf %362, %324 : vector<8x32xf32>
    %c1_178 = arith.constant 1 : index
    %c0_179 = arith.constant 0 : index
    %364 = vector.load %arg16[%c1_178, %c0_179] : memref<2x32xf32, #tpu.memory_space<vmem>>, vector<1x32xf32>
    %c1_180 = arith.constant 1 : index
    %c0_181 = arith.constant 0 : index
    %365 = vector.load %arg17[%c1_180, %c0_181] : memref<2x32xf32, #tpu.memory_space<vmem>>, vector<1x32xf32>
    %cst_182 = arith.constant dense<0.000000e+00> : vector<8xf32>
    %366 = vector.multi_reduction <add>, %363, %cst_182 [1] : vector<8x32xf32> to vector<8xf32>
    %367 = vector.shape_cast %366 : vector<8xf32> to vector<8x1xf32>
    %cst_183 = arith.constant 3.200000e+01 : f32
    %368 = vector.broadcast %cst_183 : f32 to vector<8x1xf32>
    %369 = arith.divf %367, %368 : vector<8x1xf32>
    %370 = vector.broadcast %369 : vector<8x1xf32> to vector<8x32xf32>
    %371 = arith.subf %363, %370 : vector<8x32xf32>
    %372 = arith.mulf %371, %371 : vector<8x32xf32>
    %cst_184 = arith.constant dense<0.000000e+00> : vector<8xf32>
    %373 = vector.multi_reduction <add>, %372, %cst_184 [1] : vector<8x32xf32> to vector<8xf32>
    %374 = vector.shape_cast %373 : vector<8xf32> to vector<8x1xf32>
    %cst_185 = arith.constant 3.200000e+01 : f32
    %375 = vector.broadcast %cst_185 : f32 to vector<8x1xf32>
    %376 = arith.divf %374, %375 : vector<8x1xf32>
    %377 = vector.broadcast %369 : vector<8x1xf32> to vector<8x32xf32>
    %378 = arith.subf %363, %377 : vector<8x32xf32>
    %cst_186 = arith.constant 9.99999997E-7 : f32
    %379 = vector.broadcast %cst_186 : f32 to vector<8x1xf32>
    %380 = arith.addf %376, %379 : vector<8x1xf32>
    %381 = math.rsqrt %380 : vector<8x1xf32>
    %382 = vector.broadcast %381 : vector<8x1xf32> to vector<8x32xf32>
    %383 = arith.mulf %378, %382 : vector<8x32xf32>
    %384 = vector.broadcast %364 : vector<1x32xf32> to vector<8x32xf32>
    %385 = arith.mulf %383, %384 : vector<8x32xf32>
    %386 = vector.broadcast %365 : vector<1x32xf32> to vector<8x32xf32>
    %387 = arith.addf %385, %386 : vector<8x32xf32>
    %c1_187 = arith.constant 1 : index
    %c0_188 = arith.constant 0 : index
    %c0_189 = arith.constant 0 : index
    %388 = vector.load %arg20[%c1_187, %c0_188, %c0_189] : memref<2x32x96xf32, #tpu.memory_space<vmem>>, vector<1x32x96xf32>
    %389 = vector.shape_cast %388 : vector<1x32x96xf32> to vector<32x96xf32>
    %cst_190 = arith.constant dense<0.000000e+00> : vector<8x96xf32>
    %390 = tpu.matmul %387, %389, %cst_190 {dimension_numbers = #tpu.dot_dimension_numbers<[1], [0], [0], [1], [0, 0, 1, 1], [], []>} : vector<8x32xf32>, vector<32x96xf32>, vector<8x96xf32> -> vector<8x96xf32>
    %c1_191 = arith.constant 1 : index
    %c0_192 = arith.constant 0 : index
    %391 = vector.load %arg21[%c1_191, %c0_192] : memref<2x96xf32, #tpu.memory_space<vmem>>, vector<1x96xf32>
    %392 = vector.broadcast %391 : vector<1x96xf32> to vector<8x96xf32>
    %393 = arith.addf %390, %392 : vector<8x96xf32>
    %c1_193 = arith.constant 1 : index
    %c0_194 = arith.constant 0 : index
    %c0_195 = arith.constant 0 : index
    %394 = vector.load %arg22[%c1_193, %c0_194, %c0_195] : memref<2x32x32xf32, #tpu.memory_space<vmem>>, vector<1x32x32xf32>
    %395 = vector.shape_cast %394 : vector<1x32x32xf32> to vector<32x32xf32>
    %cst_196 = arith.constant 0.000000e+00 : f32
    %396 = vector.broadcast %cst_196 : f32 to vector<8x32xf32>
    %397 = vector.extract_strided_slice %393 {offsets = [0, 0], sizes = [8, 8], strides = [1, 1]} : vector<8x96xf32> to vector<8x8xf32>
    %398 = vector.extract_strided_slice %393 {offsets = [0, 32], sizes = [8, 8], strides = [1, 1]} : vector<8x96xf32> to vector<8x8xf32>
    %399 = vector.extract_strided_slice %393 {offsets = [0, 64], sizes = [8, 8], strides = [1, 1]} : vector<8x96xf32> to vector<8x8xf32>
    %cst_197 = arith.constant dense<0.000000e+00> : vector<8x8xf32>
    %400 = tpu.matmul %397, %398, %cst_197 {dimension_numbers = #tpu.dot_dimension_numbers<[1], [1], [0], [0], [0, 0, 1, 0], [], []>} : vector<8x8xf32>, vector<8x8xf32>, vector<8x8xf32> -> vector<8x8xf32>
    %cst_198 = arith.constant 0.353553385 : f32
    %401 = vector.broadcast %cst_198 : f32 to vector<8x8xf32>
    %402 = arith.mulf %400, %401 : vector<8x8xf32>
    %cst_199 = arith.constant -1.000000e+09 : f32
    %403 = vector.broadcast %cst_199 : f32 to vector<8x8xf32>
    %404 = arith.select %163, %402, %403 : vector<8x8xi1>, vector<8x8xf32>
    %cst_200 = arith.constant dense<0xFF800000> : vector<8xf32>
    %405 = vector.multi_reduction <maximumf>, %404, %cst_200 [1] : vector<8x8xf32> to vector<8xf32>
    %406 = vector.shape_cast %405 : vector<8xf32> to vector<8x1xf32>
    %407 = vector.broadcast %406 : vector<8x1xf32> to vector<8x8xf32>
    %408 = arith.subf %404, %407 : vector<8x8xf32>
    %409 = math.exp %408 : vector<8x8xf32>
    %cst_201 = arith.constant dense<0.000000e+00> : vector<8xf32>
    %410 = vector.multi_reduction <add>, %409, %cst_201 [1] : vector<8x8xf32> to vector<8xf32>
    %411 = vector.shape_cast %410 : vector<8xf32> to vector<8x1xf32>
    %412 = tpu.reciprocal %411 {approx = true} : vector<8x1xf32> -> vector<8x1xf32>
    %413 = vector.broadcast %412 : vector<8x1xf32> to vector<8x8xf32>
    %414 = arith.mulf %409, %413 : vector<8x8xf32>
    %cst_202 = arith.constant dense<0.000000e+00> : vector<8x8xf32>
    %415 = tpu.matmul %414, %399, %cst_202 {dimension_numbers = #tpu.dot_dimension_numbers<[1], [0], [0], [1], [0, 0, 1, 1], [], []>} : vector<8x8xf32>, vector<8x8xf32>, vector<8x8xf32> -> vector<8x8xf32>
    %416 = vector.extract_strided_slice %395 {offsets = [0, 0], sizes = [8, 32], strides = [1, 1]} : vector<32x32xf32> to vector<8x32xf32>
    %cst_203 = arith.constant dense<0.000000e+00> : vector<8x32xf32>
    %417 = tpu.matmul %415, %416, %cst_203 {dimension_numbers = #tpu.dot_dimension_numbers<[1], [0], [0], [1], [0, 0, 1, 1], [], []>} : vector<8x8xf32>, vector<8x32xf32>, vector<8x32xf32> -> vector<8x32xf32>
    %418 = arith.addf %396, %417 : vector<8x32xf32>
    %419 = vector.extract_strided_slice %393 {offsets = [0, 8], sizes = [8, 8], strides = [1, 1]} : vector<8x96xf32> to vector<8x8xf32>
    %420 = vector.extract_strided_slice %393 {offsets = [0, 40], sizes = [8, 8], strides = [1, 1]} : vector<8x96xf32> to vector<8x8xf32>
    %421 = vector.extract_strided_slice %393 {offsets = [0, 72], sizes = [8, 8], strides = [1, 1]} : vector<8x96xf32> to vector<8x8xf32>
    %cst_204 = arith.constant dense<0.000000e+00> : vector<8x8xf32>
    %422 = tpu.matmul %419, %420, %cst_204 {dimension_numbers = #tpu.dot_dimension_numbers<[1], [1], [0], [0], [0, 0, 1, 0], [], []>} : vector<8x8xf32>, vector<8x8xf32>, vector<8x8xf32> -> vector<8x8xf32>
    %cst_205 = arith.constant 0.353553385 : f32
    %423 = vector.broadcast %cst_205 : f32 to vector<8x8xf32>
    %424 = arith.mulf %422, %423 : vector<8x8xf32>
    %cst_206 = arith.constant -1.000000e+09 : f32
    %425 = vector.broadcast %cst_206 : f32 to vector<8x8xf32>
    %426 = arith.select %163, %424, %425 : vector<8x8xi1>, vector<8x8xf32>
    %cst_207 = arith.constant dense<0xFF800000> : vector<8xf32>
    %427 = vector.multi_reduction <maximumf>, %426, %cst_207 [1] : vector<8x8xf32> to vector<8xf32>
    %428 = vector.shape_cast %427 : vector<8xf32> to vector<8x1xf32>
    %429 = vector.broadcast %428 : vector<8x1xf32> to vector<8x8xf32>
    %430 = arith.subf %426, %429 : vector<8x8xf32>
    %431 = math.exp %430 : vector<8x8xf32>
    %cst_208 = arith.constant dense<0.000000e+00> : vector<8xf32>
    %432 = vector.multi_reduction <add>, %431, %cst_208 [1] : vector<8x8xf32> to vector<8xf32>
    %433 = vector.shape_cast %432 : vector<8xf32> to vector<8x1xf32>
    %434 = tpu.reciprocal %433 {approx = true} : vector<8x1xf32> -> vector<8x1xf32>
    %435 = vector.broadcast %434 : vector<8x1xf32> to vector<8x8xf32>
    %436 = arith.mulf %431, %435 : vector<8x8xf32>
    %cst_209 = arith.constant dense<0.000000e+00> : vector<8x8xf32>
    %437 = tpu.matmul %436, %421, %cst_209 {dimension_numbers = #tpu.dot_dimension_numbers<[1], [0], [0], [1], [0, 0, 1, 1], [], []>} : vector<8x8xf32>, vector<8x8xf32>, vector<8x8xf32> -> vector<8x8xf32>
    %438 = vector.extract_strided_slice %395 {offsets = [8, 0], sizes = [8, 32], strides = [1, 1]} : vector<32x32xf32> to vector<8x32xf32>
    %cst_210 = arith.constant dense<0.000000e+00> : vector<8x32xf32>
    %439 = tpu.matmul %437, %438, %cst_210 {dimension_numbers = #tpu.dot_dimension_numbers<[1], [0], [0], [1], [0, 0, 1, 1], [], []>} : vector<8x8xf32>, vector<8x32xf32>, vector<8x32xf32> -> vector<8x32xf32>
    %440 = arith.addf %418, %439 : vector<8x32xf32>
    %441 = vector.extract_strided_slice %393 {offsets = [0, 16], sizes = [8, 8], strides = [1, 1]} : vector<8x96xf32> to vector<8x8xf32>
    %442 = vector.extract_strided_slice %393 {offsets = [0, 48], sizes = [8, 8], strides = [1, 1]} : vector<8x96xf32> to vector<8x8xf32>
    %443 = vector.extract_strided_slice %393 {offsets = [0, 80], sizes = [8, 8], strides = [1, 1]} : vector<8x96xf32> to vector<8x8xf32>
    %cst_211 = arith.constant dense<0.000000e+00> : vector<8x8xf32>
    %444 = tpu.matmul %441, %442, %cst_211 {dimension_numbers = #tpu.dot_dimension_numbers<[1], [1], [0], [0], [0, 0, 1, 0], [], []>} : vector<8x8xf32>, vector<8x8xf32>, vector<8x8xf32> -> vector<8x8xf32>
    %cst_212 = arith.constant 0.353553385 : f32
    %445 = vector.broadcast %cst_212 : f32 to vector<8x8xf32>
    %446 = arith.mulf %444, %445 : vector<8x8xf32>
    %cst_213 = arith.constant -1.000000e+09 : f32
    %447 = vector.broadcast %cst_213 : f32 to vector<8x8xf32>
    %448 = arith.select %163, %446, %447 : vector<8x8xi1>, vector<8x8xf32>
    %cst_214 = arith.constant dense<0xFF800000> : vector<8xf32>
    %449 = vector.multi_reduction <maximumf>, %448, %cst_214 [1] : vector<8x8xf32> to vector<8xf32>
    %450 = vector.shape_cast %449 : vector<8xf32> to vector<8x1xf32>
    %451 = vector.broadcast %450 : vector<8x1xf32> to vector<8x8xf32>
    %452 = arith.subf %448, %451 : vector<8x8xf32>
    %453 = math.exp %452 : vector<8x8xf32>
    %cst_215 = arith.constant dense<0.000000e+00> : vector<8xf32>
    %454 = vector.multi_reduction <add>, %453, %cst_215 [1] : vector<8x8xf32> to vector<8xf32>
    %455 = vector.shape_cast %454 : vector<8xf32> to vector<8x1xf32>
    %456 = tpu.reciprocal %455 {approx = true} : vector<8x1xf32> -> vector<8x1xf32>
    %457 = vector.broadcast %456 : vector<8x1xf32> to vector<8x8xf32>
    %458 = arith.mulf %453, %457 : vector<8x8xf32>
    %cst_216 = arith.constant dense<0.000000e+00> : vector<8x8xf32>
    %459 = tpu.matmul %458, %443, %cst_216 {dimension_numbers = #tpu.dot_dimension_numbers<[1], [0], [0], [1], [0, 0, 1, 1], [], []>} : vector<8x8xf32>, vector<8x8xf32>, vector<8x8xf32> -> vector<8x8xf32>
    %460 = vector.extract_strided_slice %395 {offsets = [16, 0], sizes = [8, 32], strides = [1, 1]} : vector<32x32xf32> to vector<8x32xf32>
    %cst_217 = arith.constant dense<0.000000e+00> : vector<8x32xf32>
    %461 = tpu.matmul %459, %460, %cst_217 {dimension_numbers = #tpu.dot_dimension_numbers<[1], [0], [0], [1], [0, 0, 1, 1], [], []>} : vector<8x8xf32>, vector<8x32xf32>, vector<8x32xf32> -> vector<8x32xf32>
    %462 = arith.addf %440, %461 : vector<8x32xf32>
    %463 = vector.extract_strided_slice %393 {offsets = [0, 24], sizes = [8, 8], strides = [1, 1]} : vector<8x96xf32> to vector<8x8xf32>
    %464 = vector.extract_strided_slice %393 {offsets = [0, 56], sizes = [8, 8], strides = [1, 1]} : vector<8x96xf32> to vector<8x8xf32>
    %465 = vector.extract_strided_slice %393 {offsets = [0, 88], sizes = [8, 8], strides = [1, 1]} : vector<8x96xf32> to vector<8x8xf32>
    %cst_218 = arith.constant dense<0.000000e+00> : vector<8x8xf32>
    %466 = tpu.matmul %463, %464, %cst_218 {dimension_numbers = #tpu.dot_dimension_numbers<[1], [1], [0], [0], [0, 0, 1, 0], [], []>} : vector<8x8xf32>, vector<8x8xf32>, vector<8x8xf32> -> vector<8x8xf32>
    %cst_219 = arith.constant 0.353553385 : f32
    %467 = vector.broadcast %cst_219 : f32 to vector<8x8xf32>
    %468 = arith.mulf %466, %467 : vector<8x8xf32>
    %cst_220 = arith.constant -1.000000e+09 : f32
    %469 = vector.broadcast %cst_220 : f32 to vector<8x8xf32>
    %470 = arith.select %163, %468, %469 : vector<8x8xi1>, vector<8x8xf32>
    %cst_221 = arith.constant dense<0xFF800000> : vector<8xf32>
    %471 = vector.multi_reduction <maximumf>, %470, %cst_221 [1] : vector<8x8xf32> to vector<8xf32>
    %472 = vector.shape_cast %471 : vector<8xf32> to vector<8x1xf32>
    %473 = vector.broadcast %472 : vector<8x1xf32> to vector<8x8xf32>
    %474 = arith.subf %470, %473 : vector<8x8xf32>
    %475 = math.exp %474 : vector<8x8xf32>
    %cst_222 = arith.constant dense<0.000000e+00> : vector<8xf32>
    %476 = vector.multi_reduction <add>, %475, %cst_222 [1] : vector<8x8xf32> to vector<8xf32>
    %477 = vector.shape_cast %476 : vector<8xf32> to vector<8x1xf32>
    %478 = tpu.reciprocal %477 {approx = true} : vector<8x1xf32> -> vector<8x1xf32>
    %479 = vector.broadcast %478 : vector<8x1xf32> to vector<8x8xf32>
    %480 = arith.mulf %475, %479 : vector<8x8xf32>
    %cst_223 = arith.constant dense<0.000000e+00> : vector<8x8xf32>
    %481 = tpu.matmul %480, %465, %cst_223 {dimension_numbers = #tpu.dot_dimension_numbers<[1], [0], [0], [1], [0, 0, 1, 1], [], []>} : vector<8x8xf32>, vector<8x8xf32>, vector<8x8xf32> -> vector<8x8xf32>
    %482 = vector.extract_strided_slice %395 {offsets = [24, 0], sizes = [8, 32], strides = [1, 1]} : vector<32x32xf32> to vector<8x32xf32>
    %cst_224 = arith.constant dense<0.000000e+00> : vector<8x32xf32>
    %483 = tpu.matmul %481, %482, %cst_224 {dimension_numbers = #tpu.dot_dimension_numbers<[1], [0], [0], [1], [0, 0, 1, 1], [], []>} : vector<8x8xf32>, vector<8x32xf32>, vector<8x32xf32> -> vector<8x32xf32>
    %484 = arith.addf %462, %483 : vector<8x32xf32>
    %c1_225 = arith.constant 1 : index
    %c0_226 = arith.constant 0 : index
    %485 = vector.load %arg23[%c1_225, %c0_226] : memref<2x32xf32, #tpu.memory_space<vmem>>, vector<1x32xf32>
    %486 = vector.broadcast %485 : vector<1x32xf32> to vector<8x32xf32>
    %487 = arith.addf %484, %486 : vector<8x32xf32>
    %488 = arith.addf %387, %487 : vector<8x32xf32>
    %c1_227 = arith.constant 1 : index
    %c0_228 = arith.constant 0 : index
    %489 = vector.load %arg18[%c1_227, %c0_228] : memref<2x32xf32, #tpu.memory_space<vmem>>, vector<1x32xf32>
    %c1_229 = arith.constant 1 : index
    %c0_230 = arith.constant 0 : index
    %490 = vector.load %arg19[%c1_229, %c0_230] : memref<2x32xf32, #tpu.memory_space<vmem>>, vector<1x32xf32>
    %cst_231 = arith.constant dense<0.000000e+00> : vector<8xf32>
    %491 = vector.multi_reduction <add>, %488, %cst_231 [1] : vector<8x32xf32> to vector<8xf32>
    %492 = vector.shape_cast %491 : vector<8xf32> to vector<8x1xf32>
    %cst_232 = arith.constant 3.200000e+01 : f32
    %493 = vector.broadcast %cst_232 : f32 to vector<8x1xf32>
    %494 = arith.divf %492, %493 : vector<8x1xf32>
    %495 = vector.broadcast %494 : vector<8x1xf32> to vector<8x32xf32>
    %496 = arith.subf %488, %495 : vector<8x32xf32>
    %497 = arith.mulf %496, %496 : vector<8x32xf32>
    %cst_233 = arith.constant dense<0.000000e+00> : vector<8xf32>
    %498 = vector.multi_reduction <add>, %497, %cst_233 [1] : vector<8x32xf32> to vector<8xf32>
    %499 = vector.shape_cast %498 : vector<8xf32> to vector<8x1xf32>
    %cst_234 = arith.constant 3.200000e+01 : f32
    %500 = vector.broadcast %cst_234 : f32 to vector<8x1xf32>
    %501 = arith.divf %499, %500 : vector<8x1xf32>
    %502 = vector.broadcast %494 : vector<8x1xf32> to vector<8x32xf32>
    %503 = arith.subf %488, %502 : vector<8x32xf32>
    %cst_235 = arith.constant 9.99999997E-7 : f32
    %504 = vector.broadcast %cst_235 : f32 to vector<8x1xf32>
    %505 = arith.addf %501, %504 : vector<8x1xf32>
    %506 = math.rsqrt %505 : vector<8x1xf32>
    %507 = vector.broadcast %506 : vector<8x1xf32> to vector<8x32xf32>
    %508 = arith.mulf %503, %507 : vector<8x32xf32>
    %509 = vector.broadcast %489 : vector<1x32xf32> to vector<8x32xf32>
    %510 = arith.mulf %508, %509 : vector<8x32xf32>
    %511 = vector.broadcast %490 : vector<1x32xf32> to vector<8x32xf32>
    %512 = arith.addf %510, %511 : vector<8x32xf32>
    %c1_236 = arith.constant 1 : index
    %c0_237 = arith.constant 0 : index
    %c0_238 = arith.constant 0 : index
    %513 = vector.load %arg24[%c1_236, %c0_237, %c0_238] : memref<2x32x32xf32, #tpu.memory_space<vmem>>, vector<1x32x32xf32>
    %514 = vector.shape_cast %513 : vector<1x32x32xf32> to vector<32x32xf32>
    %cst_239 = arith.constant dense<0.000000e+00> : vector<1x32xf32>
    %515 = tpu.matmul %160, %514, %cst_239 {dimension_numbers = #tpu.dot_dimension_numbers<[1], [0], [0], [1], [0, 0, 1, 1], [], []>} : vector<1x32xf32>, vector<32x32xf32>, vector<1x32xf32> -> vector<1x32xf32>
    %c1_240 = arith.constant 1 : index
    %c0_241 = arith.constant 0 : index
    %516 = vector.load %arg25[%c1_240, %c0_241] : memref<2x32xf32, #tpu.memory_space<vmem>>, vector<1x32xf32>
    %517 = arith.addf %515, %516 : vector<1x32xf32>
    %c1_242 = arith.constant 1 : index
    %c0_243 = arith.constant 0 : index
    %c0_244 = arith.constant 0 : index
    %518 = vector.load %arg26[%c1_242, %c0_243, %c0_244] : memref<2x32x32xf32, #tpu.memory_space<vmem>>, vector<1x32x32xf32>
    %519 = vector.shape_cast %518 : vector<1x32x32xf32> to vector<32x32xf32>
    %cst_245 = arith.constant dense<0.000000e+00> : vector<1x32xf32>
    %520 = tpu.matmul %517, %519, %cst_245 {dimension_numbers = #tpu.dot_dimension_numbers<[1], [0], [0], [1], [0, 0, 1, 1], [], []>} : vector<1x32xf32>, vector<32x32xf32>, vector<1x32xf32> -> vector<1x32xf32>
    %c1_246 = arith.constant 1 : index
    %c0_247 = arith.constant 0 : index
    %521 = vector.load %arg27[%c1_246, %c0_247] : memref<2x32xf32, #tpu.memory_space<vmem>>, vector<1x32xf32>
    %522 = arith.addf %520, %521 : vector<1x32xf32>
    %523 = vector.broadcast %522 : vector<1x32xf32> to vector<8x32xf32>
    %524 = arith.addf %523, %512 : vector<8x32xf32>
    %c1_248 = arith.constant 1 : index
    %c0_249 = arith.constant 0 : index
    %525 = vector.load %arg28[%c1_248, %c0_249] : memref<2x32xf32, #tpu.memory_space<vmem>>, vector<1x32xf32>
    %c1_250 = arith.constant 1 : index
    %c0_251 = arith.constant 0 : index
    %526 = vector.load %arg29[%c1_250, %c0_251] : memref<2x32xf32, #tpu.memory_space<vmem>>, vector<1x32xf32>
    %cst_252 = arith.constant dense<0.000000e+00> : vector<8xf32>
    %527 = vector.multi_reduction <add>, %524, %cst_252 [1] : vector<8x32xf32> to vector<8xf32>
    %528 = vector.shape_cast %527 : vector<8xf32> to vector<8x1xf32>
    %cst_253 = arith.constant 3.200000e+01 : f32
    %529 = vector.broadcast %cst_253 : f32 to vector<8x1xf32>
    %530 = arith.divf %528, %529 : vector<8x1xf32>
    %531 = vector.broadcast %530 : vector<8x1xf32> to vector<8x32xf32>
    %532 = arith.subf %524, %531 : vector<8x32xf32>
    %533 = arith.mulf %532, %532 : vector<8x32xf32>
    %cst_254 = arith.constant dense<0.000000e+00> : vector<8xf32>
    %534 = vector.multi_reduction <add>, %533, %cst_254 [1] : vector<8x32xf32> to vector<8xf32>
    %535 = vector.shape_cast %534 : vector<8xf32> to vector<8x1xf32>
    %cst_255 = arith.constant 3.200000e+01 : f32
    %536 = vector.broadcast %cst_255 : f32 to vector<8x1xf32>
    %537 = arith.divf %535, %536 : vector<8x1xf32>
    %538 = vector.broadcast %530 : vector<8x1xf32> to vector<8x32xf32>
    %539 = arith.subf %524, %538 : vector<8x32xf32>
    %cst_256 = arith.constant 9.99999997E-7 : f32
    %540 = vector.broadcast %cst_256 : f32 to vector<8x1xf32>
    %541 = arith.addf %537, %540 : vector<8x1xf32>
    %542 = math.rsqrt %541 : vector<8x1xf32>
    %543 = vector.broadcast %542 : vector<8x1xf32> to vector<8x32xf32>
    %544 = arith.mulf %539, %543 : vector<8x32xf32>
    %545 = vector.broadcast %525 : vector<1x32xf32> to vector<8x32xf32>
    %546 = arith.mulf %544, %545 : vector<8x32xf32>
    %547 = vector.broadcast %526 : vector<1x32xf32> to vector<8x32xf32>
    %548 = arith.addf %546, %547 : vector<8x32xf32>
    %c1_257 = arith.constant 1 : index
    %c0_258 = arith.constant 0 : index
    %c0_259 = arith.constant 0 : index
    %549 = vector.load %arg30[%c1_257, %c0_258, %c0_259] : memref<2x32x128xf32, #tpu.memory_space<vmem>>, vector<1x32x128xf32>
    %550 = vector.shape_cast %549 : vector<1x32x128xf32> to vector<32x128xf32>
    %cst_260 = arith.constant dense<0.000000e+00> : vector<8x128xf32>
    %551 = tpu.matmul %548, %550, %cst_260 {dimension_numbers = #tpu.dot_dimension_numbers<[1], [0], [0], [1], [0, 0, 1, 1], [], []>} : vector<8x32xf32>, vector<32x128xf32>, vector<8x128xf32> -> vector<8x128xf32>
    %c1_261 = arith.constant 1 : index
    %c0_262 = arith.constant 0 : index
    %552 = vector.load %arg31[%c1_261, %c0_262] : memref<2x128xf32, #tpu.memory_space<vmem>>, vector<1x128xf32>
    %553 = vector.broadcast %552 : vector<1x128xf32> to vector<8x128xf32>
    %554 = arith.addf %551, %553 : vector<8x128xf32>
    %cst_263 = arith.constant 0.000000e+00 : f32
    %555 = vector.broadcast %cst_263 : f32 to vector<8x128xf32>
    %556 = arith.maximumf %554, %555 : vector<8x128xf32>
    %c1_264 = arith.constant 1 : index
    %c0_265 = arith.constant 0 : index
    %c0_266 = arith.constant 0 : index
    %557 = vector.load %arg32[%c1_264, %c0_265, %c0_266] : memref<2x128x32xf32, #tpu.memory_space<vmem>>, vector<1x128x32xf32>
    %558 = vector.shape_cast %557 : vector<1x128x32xf32> to vector<128x32xf32>
    %cst_267 = arith.constant dense<0.000000e+00> : vector<8x32xf32>
    %559 = tpu.matmul %556, %558, %cst_267 {dimension_numbers = #tpu.dot_dimension_numbers<[1], [0], [0], [1], [0, 0, 1, 1], [], []>} : vector<8x128xf32>, vector<128x32xf32>, vector<8x32xf32> -> vector<8x32xf32>
    %c1_268 = arith.constant 1 : index
    %c0_269 = arith.constant 0 : index
    %560 = vector.load %arg33[%c1_268, %c0_269] : memref<2x32xf32, #tpu.memory_space<vmem>>, vector<1x32xf32>
    %561 = vector.broadcast %560 : vector<1x32xf32> to vector<8x32xf32>
    %562 = arith.addf %559, %561 : vector<8x32xf32>
    %563 = arith.addf %562, %524 : vector<8x32xf32>
    %c0_270 = arith.constant 0 : index
    %c0_271 = arith.constant 0 : index
    %564 = vector.load %arg6[%c0_270, %c0_271] : memref<32x16xf32, #tpu.memory_space<vmem>>, vector<32x16xf32>
    %cst_272 = arith.constant dense<0.000000e+00> : vector<8x16xf32>
    %565 = tpu.matmul %563, %564, %cst_272 {dimension_numbers = #tpu.dot_dimension_numbers<[1], [0], [0], [1], [0, 0, 1, 1], [], []>} : vector<8x32xf32>, vector<32x16xf32>, vector<8x16xf32> -> vector<8x16xf32>
    %c0_273 = arith.constant 0 : index
    %c0_274 = arith.constant 0 : index
    %566 = vector.load %arg7[%c0_273, %c0_274] : memref<1x16xf32, #tpu.memory_space<vmem>>, vector<1x16xf32>
    %567 = vector.broadcast %566 : vector<1x16xf32> to vector<8x16xf32>
    %568 = arith.addf %565, %567 : vector<8x16xf32>
    %c0_275 = arith.constant 0 : index
    %c0_276 = arith.constant 0 : index
    %c0_277 = arith.constant 0 : index
    %569 = vector.load %arg36[%c0_275, %c0_276, %c0_277] : memref<1x8x16xf32, #tpu.memory_space<vmem>>, vector<1x8x16xf32>
    %570 = vector.shape_cast %569 : vector<1x8x16xf32> to vector<8x16xf32>
    %571 = vector.shape_cast %568 : vector<8x16xf32> to vector<1x8x16xf32>
    tpu.vector_store %arg36[%c0_275, %c0_276, %c0_277], %571 {strides = array<i32>} : memref<1x8x16xf32, #tpu.memory_space<vmem>>, vector<1x8x16xf32>,
    return
  }
  func.func @transform_0(%arg0: i32) -> (i32, i32, i32) {
    %c0_i32 = arith.constant 0 : i32
    %c0_i32_0 = arith.constant 0 : i32
    %c0_i32_1 = arith.constant 0 : i32
    return %arg0, %c0_i32, %c0_i32_0 : i32, i32, i32
  }
  func.func @transform_1(%arg0: i32) -> (i32, i32, i32) {
    %c0_i32 = arith.constant 0 : i32
    %c0_i32_0 = arith.constant 0 : i32
    %c0_i32_1 = arith.constant 0 : i32
    return %arg0, %c0_i32, %c0_i32_0 : i32, i32, i32
  }
  func.func @transform_2(%arg0: i32) -> (i32, i32) {
    %c0_i32 = arith.constant 0 : i32
    %c0_i32_0 = arith.constant 0 : i32
    %c0_i32_1 = arith.constant 0 : i32
    return %c0_i32, %c0_i32_0 : i32, i32
  }
  func.func @transform_3(%arg0: i32) -> (i32, i32) {
    %c0_i32 = arith.constant 0 : i32
    %c0_i32_0 = arith.constant 0 : i32
    %c0_i32_1 = arith.constant 0 : i32
    return %c0_i32, %c0_i32_0 : i32, i32
  }
  func.func @transform_4(%arg0: i32) -> (i32, i32) {
    %c0_i32 = arith.constant 0 : i32
    %c0_i32_0 = arith.constant 0 : i32
    %c0_i32_1 = arith.constant 0 : i32
    return %c0_i32, %c0_i32_0 : i32, i32
  }
  func.func @transform_5(%arg0: i32) -> (i32, i32) {
    %c0_i32 = arith.constant 0 : i32
    %c0_i32_0 = arith.constant 0 : i32
    %c0_i32_1 = arith.constant 0 : i32
    return %c0_i32, %c0_i32_0 : i32, i32
  }
  func.func @transform_6(%arg0: i32) -> (i32, i32) {
    %c0_i32 = arith.constant 0 : i32
    %c0_i32_0 = arith.constant 0 : i32
    %c0_i32_1 = arith.constant 0 : i32
    return %c0_i32, %c0_i32_0 : i32, i32
  }
  func.func @transform_7(%arg0: i32) -> (i32, i32) {
    %c0_i32 = arith.constant 0 : i32
    %c0_i32_0 = arith.constant 0 : i32
    %c0_i32_1 = arith.constant 0 : i32
    return %c0_i32, %c0_i32_0 : i32, i32
  }
  func.func @transform_8(%arg0: i32) -> (i32, i32) {
    %c0_i32 = arith.constant 0 : i32
    %c0_i32_0 = arith.constant 0 : i32
    %c0_i32_1 = arith.constant 0 : i32
    return %c0_i32, %c0_i32_0 : i32, i32
  }
  func.func @transform_9(%arg0: i32) -> (i32, i32) {
    %c0_i32 = arith.constant 0 : i32
    %c0_i32_0 = arith.constant 0 : i32
    %c0_i32_1 = arith.constant 0 : i32
    return %c0_i32, %c0_i32_0 : i32, i32
  }
  func.func @transform_10(%arg0: i32) -> (i32, i32) {
    %c0_i32 = arith.constant 0 : i32
    %c0_i32_0 = arith.constant 0 : i32
    %c0_i32_1 = arith.constant 0 : i32
    return %c0_i32, %c0_i32_0 : i32, i32
  }
  func.func @transform_11(%arg0: i32) -> (i32, i32, i32) {
    %c0_i32 = arith.constant 0 : i32
    %c0_i32_0 = arith.constant 0 : i32
    %c0_i32_1 = arith.constant 0 : i32
    %c0_i32_2 = arith.constant 0 : i32
    return %c0_i32, %c0_i32_0, %c0_i32_1 : i32, i32, i32
  }
  func.func @transform_12(%arg0: i32) -> (i32, i32) {
    %c0_i32 = arith.constant 0 : i32
    %c0_i32_0 = arith.constant 0 : i32
    %c0_i32_1 = arith.constant 0 : i32
    return %c0_i32, %c0_i32_0 : i32, i32
  }
  func.func @transform_13(%arg0: i32) -> (i32, i32, i32) {
    %c0_i32 = arith.constant 0 : i32
    %c0_i32_0 = arith.constant 0 : i32
    %c0_i32_1 = arith.constant 0 : i32
    %c0_i32_2 = arith.constant 0 : i32
    return %c0_i32, %c0_i32_0, %c0_i32_1 : i32, i32, i32
  }
  func.func @transform_14(%arg0: i32) -> (i32, i32) {
    %c0_i32 = arith.constant 0 : i32
    %c0_i32_0 = arith.constant 0 : i32
    %c0_i32_1 = arith.constant 0 : i32
    return %c0_i32, %c0_i32_0 : i32, i32
  }
  func.func @transform_15(%arg0: i32) -> (i32, i32) {
    %c0_i32 = arith.constant 0 : i32
    %c0_i32_0 = arith.constant 0 : i32
    %c0_i32_1 = arith.constant 0 : i32
    return %c0_i32, %c0_i32_0 : i32, i32
  }
  func.func @transform_16(%arg0: i32) -> (i32, i32) {
    %c0_i32 = arith.constant 0 : i32
    %c0_i32_0 = arith.constant 0 : i32
    %c0_i32_1 = arith.constant 0 : i32
    return %c0_i32, %c0_i32_0 : i32, i32
  }
  func.func @transform_17(%arg0: i32) -> (i32, i32) {
    %c0_i32 = arith.constant 0 : i32
    %c0_i32_0 = arith.constant 0 : i32
    %c0_i32_1 = arith.constant 0 : i32
    return %c0_i32, %c0_i32_0 : i32, i32
  }
  func.func @transform_18(%arg0: i32) -> (i32, i32) {
    %c0_i32 = arith.constant 0 : i32
    %c0_i32_0 = arith.constant 0 : i32
    %c0_i32_1 = arith.constant 0 : i32
    return %c0_i32, %c0_i32_0 : i32, i32
  }
  func.func @transform_19(%arg0: i32) -> (i32, i32, i32) {
    %c0_i32 = arith.constant 0 : i32
    %c0_i32_0 = arith.constant 0 : i32
    %c0_i32_1 = arith.constant 0 : i32
    %c0_i32_2 = arith.constant 0 : i32
    return %c0_i32, %c0_i32_0, %c0_i32_1 : i32, i32, i32
  }
  func.func @transform_20(%arg0: i32) -> (i32, i32) {
    %c0_i32 = arith.constant 0 : i32
    %c0_i32_0 = arith.constant 0 : i32
    %c0_i32_1 = arith.constant 0 : i32
    return %c0_i32, %c0_i32_0 : i32, i32
  }
  func.func @transform_21(%arg0: i32) -> (i32, i32, i32) {
    %c0_i32 = arith.constant 0 : i32
    %c0_i32_0 = arith.constant 0 : i32
    %c0_i32_1 = arith.constant 0 : i32
    %c0_i32_2 = arith.constant 0 : i32
    return %c0_i32, %c0_i32_0, %c0_i32_1 : i32, i32, i32
  }
  func.func @transform_22(%arg0: i32) -> (i32, i32) {
    %c0_i32 = arith.constant 0 : i32
    %c0_i32_0 = arith.constant 0 : i32
    %c0_i32_1 = arith.constant 0 : i32
    return %c0_i32, %c0_i32_0 : i32, i32
  }
  func.func @transform_23(%arg0: i32) -> (i32, i32, i32) {
    %c0_i32 = arith.constant 0 : i32
    %c0_i32_0 = arith.constant 0 : i32
    %c0_i32_1 = arith.constant 0 : i32
    %c0_i32_2 = arith.constant 0 : i32
    return %c0_i32, %c0_i32_0, %c0_i32_1 : i32, i32, i32
  }
  func.func @transform_24(%arg0: i32) -> (i32, i32) {
    %c0_i32 = arith.constant 0 : i32
    %c0_i32_0 = arith.constant 0 : i32
    %c0_i32_1 = arith.constant 0 : i32
    return %c0_i32, %c0_i32_0 : i32, i32
  }
  func.func @transform_25(%arg0: i32) -> (i32, i32, i32) {
    %c0_i32 = arith.constant 0 : i32
    %c0_i32_0 = arith.constant 0 : i32
    %c0_i32_1 = arith.constant 0 : i32
    %c0_i32_2 = arith.constant 0 : i32
    return %c0_i32, %c0_i32_0, %c0_i32_1 : i32, i32, i32
  }
  func.func @transform_26(%arg0: i32) -> (i32, i32) {
    %c0_i32 = arith.constant 0 : i32
    %c0_i32_0 = arith.constant 0 : i32
    %c0_i32_1 = arith.constant 0 : i32
    return %c0_i32, %c0_i32_0 : i32, i32
  }
  func.func @transform_27(%arg0: i32) -> (i32, i32) {
    %c0_i32 = arith.constant 0 : i32
    %c0_i32_0 = arith.constant 0 : i32
    %c0_i32_1 = arith.constant 0 : i32
    return %c0_i32, %c0_i32_0 : i32, i32
  }
  func.func @transform_28(%arg0: i32) -> (i32, i32) {
    %c0_i32 = arith.constant 0 : i32
    %c0_i32_0 = arith.constant 0 : i32
    %c0_i32_1 = arith.constant 0 : i32
    return %c0_i32, %c0_i32_0 : i32, i32
  }
  func.func @transform_29(%arg0: i32) -> (i32, i32, i32) {
    %c0_i32 = arith.constant 0 : i32
    %c0_i32_0 = arith.constant 0 : i32
    %c0_i32_1 = arith.constant 0 : i32
    %c0_i32_2 = arith.constant 0 : i32
    return %c0_i32, %c0_i32_0, %c0_i32_1 : i32, i32, i32
  }
  func.func @transform_30(%arg0: i32) -> (i32, i32) {
    %c0_i32 = arith.constant 0 : i32
    %c0_i32_0 = arith.constant 0 : i32
    %c0_i32_1 = arith.constant 0 : i32
    return %c0_i32, %c0_i32_0 : i32, i32
  }
  func.func @transform_31(%arg0: i32) -> (i32, i32, i32) {
    %c0_i32 = arith.constant 0 : i32
    %c0_i32_0 = arith.constant 0 : i32
    %c0_i32_1 = arith.constant 0 : i32
    %c0_i32_2 = arith.constant 0 : i32
    return %c0_i32, %c0_i32_0, %c0_i32_1 : i32, i32, i32
  }
  func.func @transform_32(%arg0: i32) -> (i32, i32) {
    %c0_i32 = arith.constant 0 : i32
    %c0_i32_0 = arith.constant 0 : i32
    %c0_i32_1 = arith.constant 0 : i32
    return %c0_i32, %c0_i32_0 : i32, i32
  }
  func.func @transform_33(%arg0: i32) -> (i32, i32, i32) {
    %c0_i32 = arith.constant 0 : i32
    %c0_i32_0 = arith.constant 0 : i32
    %c0_i32_1 = arith.constant 0 : i32
    return %arg0, %c0_i32, %c0_i32_0 : i32, i32, i32
  }
  func.func @transform_34(%arg0: i32) -> (i32, i32, i32) {
    %c0_i32 = arith.constant 0 : i32
    %c0_i32_0 = arith.constant 0 : i32
    %c0_i32_1 = arith.constant 0 : i32
    return %arg0, %c0_i32, %c0_i32_0 : i32, i32, i32
  }
  func.func @transform_35(%arg0: i32) -> (i32, i32, i32) {
    %c0_i32 = arith.constant 0 : i32
    %c0_i32_0 = arith.constant 0 : i32
    %c0_i32_1 = arith.constant 0 : i32
    return %arg0, %c0_i32, %c0_i32_0 : i32, i32, i32
  }
}

</mosaic_0001>

<llo_original>
// kernel: run.1
$region0: #{run.1}
  #allocation0 [shape = 'u32[]', space=smem, size = 0x4, offset = 0x4, fixed_abs, tag = 'smem constant byte address 0x4 - core index']
  #allocation1 [shape = 'u32[144,128]{1,0:T(1,128)}', space=vmem, size = 0x12000, scoped, tag = 'internal scratch']
  #allocation2 [shape = 'f32[8,32]{1,0:T(8,128)}', space=vmem, size = 0x1000, scoped, tag = 'scratch operand']
  %s0 = inlined_call_operand.smem [shape: u32[36], index: -1, kind: input, shape index: {}]
  %s1 = sld [smem:[%s0]]
  %s2 = scalar_lea.smem %s0, 1
  %s3 = sld [smem:[%s2]]
  %s4 = scalar_lea.smem %s0, 2
  %s5 = sld [smem:[%s4]]
  %s6 = scalar_lea.smem %s0, 3
  %s7 = sld [smem:[%s6]]
  %s8 = scalar_lea.smem %s0, 4
  %s9 = sld [smem:[%s8]]
  %s10 = scalar_lea.smem %s0, 5
  %s11 = sld [smem:[%s10]]
  %s12 = scalar_lea.smem %s0, 6
  %s13 = sld [smem:[%s12]]
  %s14 = scalar_lea.smem %s0, 7
  %s15 = sld [smem:[%s14]]
  %s16 = scalar_lea.smem %s0, 8
  %s17 = sld [smem:[%s16]]
  %s18 = scalar_lea.smem %s0, 9
  %s19 = sld [smem:[%s18]]
  %s20 = scalar_lea.smem %s0, 10
  %s21 = sld [smem:[%s20]]
  %s22 = scalar_lea.smem %s0, 11
  %s23 = sld [smem:[%s22]]
  %s24 = scalar_lea.smem %s0, 12
  %s25 = sld [smem:[%s24]]
  %s26 = scalar_lea.smem %s0, 13
  %s27 = sld [smem:[%s26]]
  %s28 = scalar_lea.smem %s0, 14
  %s29 = sld [smem:[%s28]]
  %s30 = scalar_lea.smem %s0, 15
  %s31 = sld [smem:[%s30]]
  %s32 = scalar_lea.smem %s0, 16
  %s33 = sld [smem:[%s32]]
  %s34 = scalar_lea.smem %s0, 17
  %s35 = sld [smem:[%s34]]
  %s36 = scalar_lea.smem %s0, 18
  %s37 = sld [smem:[%s36]]
  %s38 = scalar_lea.smem %s0, 19
  %s39 = sld [smem:[%s38]]
  %s40 = scalar_lea.smem %s0, 20
  %s41 = sld [smem:[%s40]]
  %s42 = scalar_lea.smem %s0, 21
  %s43 = sld [smem:[%s42]]
  %s44 = scalar_lea.smem %s0, 22
  %s45 = sld [smem:[%s44]]
  %s46 = scalar_lea.smem %s0, 23
  %s47 = sld [smem:[%s46]]
  %s48 = scalar_lea.smem %s0, 24
  %s49 = sld [smem:[%s48]]
  %s50 = scalar_lea.smem %s0, 25
  %s51 = sld [smem:[%s50]]
  %s52 = scalar_lea.smem %s0, 26
  %s53 = sld [smem:[%s52]]
  %s54 = scalar_lea.smem %s0, 27
  %s55 = sld [smem:[%s54]]
  %s56 = scalar_lea.smem %s0, 28
  %s57 = sld [smem:[%s56]]
  %s58 = scalar_lea.smem %s0, 29
  %s59 = sld [smem:[%s58]]
  %s60 = scalar_lea.smem %s0, 30
  %s61 = sld [smem:[%s60]]
  %s62 = scalar_lea.smem %s0, 31
  %s63 = sld [smem:[%s62]]
  %s64 = scalar_lea.smem %s0, 32
  %s65 = sld [smem:[%s64]]
  %s66 = scalar_lea.smem %s0, 33
  %s67 = sld [smem:[%s66]]
  %s68 = scalar_lea.smem %s0, 34
  %s69 = sld [smem:[%s68]]
  %s70 = scalar_lea.smem %s0, 35
  %s71 = sld [smem:[%s70]]
  %72 = xla_tuple %s67, %s69, %s71
  %s73 = sld [smem:[#allocation0]]
  $region181: #{run.1} parent=0
    _
  %s75 = ssub.s32 1, %s73
  %s76 = scalar_select 0, %s75, %s73
  $region1: #{run.1} parent=0
    #allocation3 [shape = 'u8[1024]{0}', space=vmem, size = 0x400, scoped, tag = 'output window, operand 0']
    #allocation4 [shape = 's32[2]{0}', space=sflag, size = 0x8, scoped, tag = 'scoped memory for run.1']
    #allocation5 [shape = 'u8[1024]{0}', space=vmem, size = 0x400, scoped, tag = 'output window, operand 1']
    #allocation6 [shape = 's32[2]{0}', space=sflag, size = 0x8, scoped, tag = 'scoped memory for run.1']
    #allocation7 [shape = 'u8[8192]{0}', space=vmem, size = 0x2000, scoped, tag = 'output window, operand 2']
    %77 = vsyncpa [#allocation4], 0
    %s78 = scalar_lea.sflag [#allocation4], 1
    %79 = vsyncpa %s78, 0
    %80 = vsyncpa [#allocation6], 0
    %s81 = scalar_lea.sflag [#allocation6], 1
    %82 = vsyncpa %s81, 0
    loop: start=0, step=1, limit=4
    $region2: #{run.1} parent=1 // loop_pre_header
      _
    $region3: #{run.1} parent=1 // loop_header
      %s84 = sphi 0, %s88
      %p85 = scmp.ge.s32.totalorder %s84, 4
      %s94 = sphi 0, %s96
      %s97 = sphi 0, %s94
      %s98 = sphi 0, %s97
      %s114 = sphi 0, %s98
      %s120 = sphi 0, %s122
      %s123 = sphi 0, %s120
      %s124 = sphi 0, %s123
      %s140 = sphi 0, %s124
      %s144 = sphi 0, %s144
      %s146 = sphi 0, %s144
      %s147 = sphi 0, %s146
      %s161 = sphi 0, %s147
      %s165 = sphi 0, %s165
      %s167 = sphi 0, %s165
      %s168 = sphi 0, %s167
      %s182 = sphi 0, %s168
      %s186 = sphi 0, %s186
      %s188 = sphi 0, %s186
      %s189 = sphi 0, %s188
      %s203 = sphi 0, %s189
      %s207 = sphi 0, %s207
      %s209 = sphi 0, %s207
      %s210 = sphi 0, %s209
      %s224 = sphi 0, %s210
      %s228 = sphi 0, %s228
      %s230 = sphi 0, %s228
      %s231 = sphi 0, %s230
      %s245 = sphi 0, %s231
      %s249 = sphi 0, %s249
      %s251 = sphi 0, %s249
      %s252 = sphi 0, %s251
      %s266 = sphi 0, %s252
      %s270 = sphi 0, %s270
      %s272 = sphi 0, %s270
      %s273 = sphi 0, %s272
      %s287 = sphi 0, %s273
      %s291 = sphi 0, %s291
      %s293 = sphi 0, %s291
      %s294 = sphi 0, %s293
      %s308 = sphi 0, %s294
      %s312 = sphi 0, %s312
      %s314 = sphi 0, %s312
      %s315 = sphi 0, %s314
      %s329 = sphi 0, %s315
      %s333 = sphi 0, %s333
      %s335 = sphi 0, %s333
      %s336 = sphi 0, %s335
      %s350 = sphi 0, %s336
      %s354 = sphi 0, %s354
      %s356 = sphi 0, %s354
      %s357 = sphi 0, %s356
      %s371 = sphi 0, %s357
      %s375 = sphi 0, %s375
      %s377 = sphi 0, %s375
      %s378 = sphi 0, %s377
      %s392 = sphi 0, %s378
      %s396 = sphi 0, %s396
      %s398 = sphi 0, %s396
      %s399 = sphi 0, %s398
      %s413 = sphi 0, %s399
      %s417 = sphi 0, %s417
      %s419 = sphi 0, %s417
      %s420 = sphi 0, %s419
      %s434 = sphi 0, %s420
      %s438 = sphi 0, %s438
      %s440 = sphi 0, %s438
      %s441 = sphi 0, %s440
      %s455 = sphi 0, %s441
      %s459 = sphi 0, %s459
      %s461 = sphi 0, %s459
      %s462 = sphi 0, %s461
      %s476 = sphi 0, %s462
      %s480 = sphi 0, %s480
      %s482 = sphi 0, %s480
      %s483 = sphi 0, %s482
      %s497 = sphi 0, %s483
      %s501 = sphi 0, %s501
      %s503 = sphi 0, %s501
      %s504 = sphi 0, %s503
      %s518 = sphi 0, %s504
      %s522 = sphi 0, %s522
      %s524 = sphi 0, %s522
      %s525 = sphi 0, %s524
      %s539 = sphi 0, %s525
      %s543 = sphi 0, %s543
      %s545 = sphi 0, %s543
      %s546 = sphi 0, %s545
      %s560 = sphi 0, %s546
      %s564 = sphi 0, %s564
      %s566 = sphi 0, %s564
      %s567 = sphi 0, %s566
      %s581 = sphi 0, %s567
      %s585 = sphi 0, %s585
      %s587 = sphi 0, %s585
      %s588 = sphi 0, %s587
      %s602 = sphi 0, %s588
      %s606 = sphi 0, %s606
      %s608 = sphi 0, %s606
      %s609 = sphi 0, %s608
      %s623 = sphi 0, %s609
      %s627 = sphi 0, %s627
      %s629 = sphi 0, %s627
      %s630 = sphi 0, %s629
      %s644 = sphi 0, %s630
      %s648 = sphi 0, %s648
      %s650 = sphi 0, %s648
      %s651 = sphi 0, %s650
      %s665 = sphi 0, %s651
      %s669 = sphi 0, %s669
      %s671 = sphi 0, %s669
      %s672 = sphi 0, %s671
      %s686 = sphi 0, %s672
      %s690 = sphi 0, %s690
      %s692 = sphi 0, %s690
      %s693 = sphi 0, %s692
      %s707 = sphi 0, %s693
      %s711 = sphi 0, %s711
      %s713 = sphi 0, %s711
      %s714 = sphi 0, %s713
      %s728 = sphi 0, %s714
      %s732 = sphi 0, %s732
      %s734 = sphi 0, %s732
      %s735 = sphi 0, %s734
      %s749 = sphi 0, %s735
      %s753 = sphi 0, %s753
      %s755 = sphi 0, %s753
      %s756 = sphi 0, %s755
      %s770 = sphi 0, %s756
      %s774 = sphi 0, %s774
      %s776 = sphi 0, %s774
      %s777 = sphi 0, %s776
      %s791 = sphi 0, %s777
      %s797 = sphi 0, %s799
      %s800 = sphi 0, %s797
      %s801 = sphi 0, %s800
      %s817 = sphi 0, %s801
      %s823 = sphi 0, %s825
      %s826 = sphi 0, %s823
      %s827 = sphi 0, %s826
      %s843 = sphi 0, %s827
      %s849 = sphi 0, %s851
      %s852 = sphi 0, %s849
      %s853 = sphi 0, %s852
      %s869 = sphi 0, %s853
    $region4: #{run.1} parent=1 // loop_header_branch
      %87 = sbr.rel (%p85) target = $region8
    $region5: #{run.1} parent=1 // loop_body
      %s89 = ssub.s32 %s84, 1
      %s90 = ssub.s32 %s84, 2
      %s91 = sadd.s32 %s84, 1
      %s92 = ssub.s32 %s84, %s91
      %p93 = scmp.eq.s32.totalorder %s92, 0
      %s95 = sadd.s32 %s94, 1
      %s96 = scalar_select %p93, %s94, %s95
      %p99 = pneg %p93
      %p100 = scmp.eq.s32.totalorder %s84, 1
      %p101 = por %p99, %p100
      %p102 = scmp.ne.s32.totalorder %s94, %s97
      %p103 = scmp.eq.s32.totalorder %s84, 0
      %p104 = por %p102, %p103
      %p105 = scmp.ne.s32.totalorder %s94, %s97
      %p106 = scmp.eq.s32.totalorder %s89, 1
      %p107 = por %p105, %p106
      %p108 = scmp.ne.s32.totalorder %s97, %s98
      %p109 = scmp.eq.s32.totalorder %s89, 0
      %p110 = por %p108, %p109
      %p111 = scmp.ne.s32.totalorder %s97, %s98
      %p112 = scmp.eq.s32.totalorder %s90, 1
      %p113 = por %p111, %p112
      %p115 = scmp.ne.s32.totalorder %s98, %s114
      %p116 = scmp.eq.s32.totalorder %s90, 0
      %p117 = por %p115, %p116
      %s118 = ssub.s32 %s84, %s91
      %p119 = scmp.eq.s32.totalorder %s118, 0
      %s121 = sadd.s32 %s120, 1
      %s122 = scalar_select %p119, %s120, %s121
      %p125 = pneg %p119
      %p126 = scmp.eq.s32.totalorder %s84, 1
      %p127 = por %p125, %p126
      %p128 = scmp.ne.s32.totalorder %s120, %s123
      %p129 = scmp.eq.s32.totalorder %s84, 0
      %p130 = por %p128, %p129
      %p131 = scmp.ne.s32.totalorder %s120, %s123
      %p132 = scmp.eq.s32.totalorder %s89, 1
      %p133 = por %p131, %p132
      %p134 = scmp.ne.s32.totalorder %s123, %s124
      %p135 = scmp.eq.s32.totalorder %s89, 0
      %p136 = por %p134, %p135
      %p137 = scmp.ne.s32.totalorder %s123, %s124
      %p138 = scmp.eq.s32.totalorder %s90, 1
      %p139 = por %p137, %p138
      %p141 = scmp.ne.s32.totalorder %s124, %s140
      %p142 = scmp.eq.s32.totalorder %s90, 0
      %p143 = por %p141, %p142
      %s145 = sadd.s32 %s144, 1
      %p148 = scmp.eq.s32.totalorder %s84, 1
      %p149 = scmp.ne.s32.totalorder %s144, %s146
      %p150 = scmp.eq.s32.totalorder %s84, 0
      %p151 = por %p149, %p150
      %p152 = scmp.ne.s32.totalorder %s144, %s146
      %p153 = scmp.eq.s32.totalorder %s89, 1
      %p154 = por %p152, %p153
      %p155 = scmp.ne.s32.totalorder %s146, %s147
      %p156 = scmp.eq.s32.totalorder %s89, 0
      %p157 = por %p155, %p156
      %p158 = scmp.ne.s32.totalorder %s146, %s147
      %p159 = scmp.eq.s32.totalorder %s90, 1
      %p160 = por %p158, %p159
      %p162 = scmp.ne.s32.totalorder %s147, %s161
      %p163 = scmp.eq.s32.totalorder %s90, 0
      %p164 = por %p162, %p163
      %s166 = sadd.s32 %s165, 1
      %p169 = scmp.eq.s32.totalorder %s84, 1
      %p170 = scmp.ne.s32.totalorder %s165, %s167
      %p171 = scmp.eq.s32.totalorder %s84, 0
      %p172 = por %p170, %p171
      %p173 = scmp.ne.s32.totalorder %s165, %s167
      %p174 = scmp.eq.s32.totalorder %s89, 1
      %p175 = por %p173, %p174
      %p176 = scmp.ne.s32.totalorder %s167, %s168
      %p177 = scmp.eq.s32.totalorder %s89, 0
      %p178 = por %p176, %p177
      %p179 = scmp.ne.s32.totalorder %s167, %s168
      %p180 = scmp.eq.s32.totalorder %s90, 1
      %p181 = por %p179, %p180
      %p183 = scmp.ne.s32.totalorder %s168, %s182
      %p184 = scmp.eq.s32.totalorder %s90, 0
      %p185 = por %p183, %p184
      %s187 = sadd.s32 %s186, 1
      %p190 = scmp.eq.s32.totalorder %s84, 1
      %p191 = scmp.ne.s32.totalorder %s186, %s188
      %p192 = scmp.eq.s32.totalorder %s84, 0
      %p193 = por %p191, %p192
      %p194 = scmp.ne.s32.totalorder %s186, %s188
      %p195 = scmp.eq.s32.totalorder %s89, 1
      %p196 = por %p194, %p195
      %p197 = scmp.ne.s32.totalorder %s188, %s189
      %p198 = scmp.eq.s32.totalorder %s89, 0
      %p199 = por %p197, %p198
      %p200 = scmp.ne.s32.totalorder %s188, %s189
      %p201 = scmp.eq.s32.totalorder %s90, 1
      %p202 = por %p200, %p201
      %p204 = scmp.ne.s32.totalorder %s189, %s203
      %p205 = scmp.eq.s32.totalorder %s90, 0
      %p206 = por %p204, %p205
      %s208 = sadd.s32 %s207, 1
      %p211 = scmp.eq.s32.totalorder %s84, 1
      %p212 = scmp.ne.s32.totalorder %s207, %s209
      %p213 = scmp.eq.s32.totalorder %s84, 0
      %p214 = por %p212, %p213
      %p215 = scmp.ne.s32.totalorder %s207, %s209
      %p216 = scmp.eq.s32.totalorder %s89, 1
      %p217 = por %p215, %p216
      %p218 = scmp.ne.s32.totalorder %s209, %s210
      %p219 = scmp.eq.s32.totalorder %s89, 0
      %p220 = por %p218, %p219
      %p221 = scmp.ne.s32.totalorder %s209, %s210
      %p222 = scmp.eq.s32.totalorder %s90, 1
      %p223 = por %p221, %p222
      %p225 = scmp.ne.s32.totalorder %s210, %s224
      %p226 = scmp.eq.s32.totalorder %s90, 0
      %p227 = por %p225, %p226
      %s229 = sadd.s32 %s228, 1
      %p232 = scmp.eq.s32.totalorder %s84, 1
      %p233 = scmp.ne.s32.totalorder %s228, %s230
      %p234 = scmp.eq.s32.totalorder %s84, 0
      %p235 = por %p233, %p234
      %p236 = scmp.ne.s32.totalorder %s228, %s230
      %p237 = scmp.eq.s32.totalorder %s89, 1
      %p238 = por %p236, %p237
      %p239 = scmp.ne.s32.totalorder %s230, %s231
      %p240 = scmp.eq.s32.totalorder %s89, 0
      %p241 = por %p239, %p240
      %p242 = scmp.ne.s32.totalorder %s230, %s231
      %p243 = scmp.eq.s32.totalorder %s90, 1
      %p244 = por %p242, %p243
      %p246 = scmp.ne.s32.totalorder %s231, %s245
      %p247 = scmp.eq.s32.totalorder %s90, 0
      %p248 = por %p246, %p247
      %s250 = sadd.s32 %s249, 1
      %p253 = scmp.eq.s32.totalorder %s84, 1
      %p254 = scmp.ne.s32.totalorder %s249, %s251
      %p255 = scmp.eq.s32.totalorder %s84, 0
      %p256 = por %p254, %p255
      %p257 = scmp.ne.s32.totalorder %s249, %s251
      %p258 = scmp.eq.s32.totalorder %s89, 1
      %p259 = por %p257, %p258
      %p260 = scmp.ne.s32.totalorder %s251, %s252
      %p261 = scmp.eq.s32.totalorder %s89, 0
      %p262 = por %p260, %p261
      %p263 = scmp.ne.s32.totalorder %s251, %s252
      %p264 = scmp.eq.s32.totalorder %s90, 1
      %p265 = por %p263, %p264
      %p267 = scmp.ne.s32.totalorder %s252, %s266
      %p268 = scmp.eq.s32.totalorder %s90, 0
      %p269 = por %p267, %p268
      %s271 = sadd.s32 %s270, 1
      %p274 = scmp.eq.s32.totalorder %s84, 1
      %p275 = scmp.ne.s32.totalorder %s270, %s272
      %p276 = scmp.eq.s32.totalorder %s84, 0
      %p277 = por %p275, %p276
      %p278 = scmp.ne.s32.totalorder %s270, %s272
      %p279 = scmp.eq.s32.totalorder %s89, 1
      %p280 = por %p278, %p279
      %p281 = scmp.ne.s32.totalorder %s272, %s273
      %p282 = scmp.eq.s32.totalorder %s89, 0
      %p283 = por %p281, %p282
      %p284 = scmp.ne.s32.totalorder %s272, %s273
      %p285 = scmp.eq.s32.totalorder %s90, 1
      %p286 = por %p284, %p285
      %p288 = scmp.ne.s32.totalorder %s273, %s287
      %p289 = scmp.eq.s32.totalorder %s90, 0
      %p290 = por %p288, %p289
      %s292 = sadd.s32 %s291, 1
      %p295 = scmp.eq.s32.totalorder %s84, 1
      %p296 = scmp.ne.s32.totalorder %s291, %s293
      %p297 = scmp.eq.s32.totalorder %s84, 0
      %p298 = por %p296, %p297
      %p299 = scmp.ne.s32.totalorder %s291, %s293
      %p300 = scmp.eq.s32.totalorder %s89, 1
      %p301 = por %p299, %p300
      %p302 = scmp.ne.s32.totalorder %s293, %s294
      %p303 = scmp.eq.s32.totalorder %s89, 0
      %p304 = por %p302, %p303
      %p305 = scmp.ne.s32.totalorder %s293, %s294
      %p306 = scmp.eq.s32.totalorder %s90, 1
      %p307 = por %p305, %p306
      %p309 = scmp.ne.s32.totalorder %s294, %s308
      %p310 = scmp.eq.s32.totalorder %s90, 0
      %p311 = por %p309, %p310
      %s313 = sadd.s32 %s312, 1
      %p316 = scmp.eq.s32.totalorder %s84, 1
      %p317 = scmp.ne.s32.totalorder %s312, %s314
      %p318 = scmp.eq.s32.totalorder %s84, 0
      %p319 = por %p317, %p318
      %p320 = scmp.ne.s32.totalorder %s312, %s314
      %p321 = scmp.eq.s32.totalorder %s89, 1
      %p322 = por %p320, %p321
      %p323 = scmp.ne.s32.totalorder %s314, %s315
      %p324 = scmp.eq.s32.totalorder %s89, 0
      %p325 = por %p323, %p324
      %p326 = scmp.ne.s32.totalorder %s314, %s315
      %p327 = scmp.eq.s32.totalorder %s90, 1
      %p328 = por %p326, %p327
      %p330 = scmp.ne.s32.totalorder %s315, %s329
      %p331 = scmp.eq.s32.totalorder %s90, 0
      %p332 = por %p330, %p331
      %s334 = sadd.s32 %s333, 1
      %p337 = scmp.eq.s32.totalorder %s84, 1
      %p338 = scmp.ne.s32.totalorder %s333, %s335
      %p339 = scmp.eq.s32.totalorder %s84, 0
      %p340 = por %p338, %p339
      %p341 = scmp.ne.s32.totalorder %s333, %s335
      %p342 = scmp.eq.s32.totalorder %s89, 1
      %p343 = por %p341, %p342
      %p344 = scmp.ne.s32.totalorder %s335, %s336
      %p345 = scmp.eq.s32.totalorder %s89, 0
      %p346 = por %p344, %p345
      %p347 = scmp.ne.s32.totalorder %s335, %s336
      %p348 = scmp.eq.s32.totalorder %s90, 1
      %p349 = por %p347, %p348
      %p351 = scmp.ne.s32.totalorder %s336, %s350
      %p352 = scmp.eq.s32.totalorder %s90, 0
      %p353 = por %p351, %p352
      %s355 = sadd.s32 %s354, 1
      %p358 = scmp.eq.s32.totalorder %s84, 1
      %p359 = scmp.ne.s32.totalorder %s354, %s356
      %p360 = scmp.eq.s32.totalorder %s84, 0
      %p361 = por %p359, %p360
      %p362 = scmp.ne.s32.totalorder %s354, %s356
      %p363 = scmp.eq.s32.totalorder %s89, 1
      %p364 = por %p362, %p363
      %p365 = scmp.ne.s32.totalorder %s356, %s357
      %p366 = scmp.eq.s32.totalorder %s89, 0
      %p367 = por %p365, %p366
      %p368 = scmp.ne.s32.totalorder %s356, %s357
      %p369 = scmp.eq.s32.totalorder %s90, 1
      %p370 = por %p368, %p369
      %p372 = scmp.ne.s32.totalorder %s357, %s371
      %p373 = scmp.eq.s32.totalorder %s90, 0
      %p374 = por %p372, %p373
      %s376 = sadd.s32 %s375, 1
      %p379 = scmp.eq.s32.totalorder %s84, 1
      %p380 = scmp.ne.s32.totalorder %s375, %s377
      %p381 = scmp.eq.s32.totalorder %s84, 0
      %p382 = por %p380, %p381
      %p383 = scmp.ne.s32.totalorder %s375, %s377
      %p384 = scmp.eq.s32.totalorder %s89, 1
      %p385 = por %p383, %p384
      %p386 = scmp.ne.s32.totalorder %s377, %s378
      %p387 = scmp.eq.s32.totalorder %s89, 0
      %p388 = por %p386, %p387
      %p389 = scmp.ne.s32.totalorder %s377, %s378
      %p390 = scmp.eq.s32.totalorder %s90, 1
      %p391 = por %p389, %p390
      %p393 = scmp.ne.s32.totalorder %s378, %s392
      %p394 = scmp.eq.s32.totalorder %s90, 0
      %p395 = por %p393, %p394
      %s397 = sadd.s32 %s396, 1
      %p400 = scmp.eq.s32.totalorder %s84, 1
      %p401 = scmp.ne.s32.totalorder %s396, %s398
      %p402 = scmp.eq.s32.totalorder %s84, 0
      %p403 = por %p401, %p402
      %p404 = scmp.ne.s32.totalorder %s396, %s398
      %p405 = scmp.eq.s32.totalorder %s89, 1
      %p406 = por %p404, %p405
      %p407 = scmp.ne.s32.totalorder %s398, %s399
      %p408 = scmp.eq.s32.totalorder %s89, 0
      %p409 = por %p407, %p408
      %p410 = scmp.ne.s32.totalorder %s398, %s399
      %p411 = scmp.eq.s32.totalorder %s90, 1
      %p412 = por %p410, %p411
      %p414 = scmp.ne.s32.totalorder %s399, %s413
      %p415 = scmp.eq.s32.totalorder %s90, 0
      %p416 = por %p414, %p415
      %s418 = sadd.s32 %s417, 1
      %p421 = scmp.eq.s32.totalorder %s84, 1
      %p422 = scmp.ne.s32.totalorder %s417, %s419
      %p423 = scmp.eq.s32.totalorder %s84, 0
      %p424 = por %p422, %p423
      %p425 = scmp.ne.s32.totalorder %s417, %s419
      %p426 = scmp.eq.s32.totalorder %s89, 1
      %p427 = por %p425, %p426
      %p428 = scmp.ne.s32.totalorder %s419, %s420
      %p429 = scmp.eq.s32.totalorder %s89, 0
      %p430 = por %p428, %p429
      %p431 = scmp.ne.s32.totalorder %s419, %s420
      %p432 = scmp.eq.s32.totalorder %s90, 1
      %p433 = por %p431, %p432
      %p435 = scmp.ne.s32.totalorder %s420, %s434
      %p436 = scmp.eq.s32.totalorder %s90, 0
      %p437 = por %p435, %p436
      %s439 = sadd.s32 %s438, 1
      %p442 = scmp.eq.s32.totalorder %s84, 1
      %p443 = scmp.ne.s32.totalorder %s438, %s440
      %p444 = scmp.eq.s32.totalorder %s84, 0
      %p445 = por %p443, %p444
      %p446 = scmp.ne.s32.totalorder %s438, %s440
      %p447 = scmp.eq.s32.totalorder %s89, 1
      %p448 = por %p446, %p447
      %p449 = scmp.ne.s32.totalorder %s440, %s441
      %p450 = scmp.eq.s32.totalorder %s89, 0
      %p451 = por %p449, %p450
      %p452 = scmp.ne.s32.totalorder %s440, %s441
      %p453 = scmp.eq.s32.totalorder %s90, 1
      %p454 = por %p452, %p453
      %p456 = scmp.ne.s32.totalorder %s441, %s455
      %p457 = scmp.eq.s32.totalorder %s90, 0
      %p458 = por %p456, %p457
      %s460 = sadd.s32 %s459, 1
      %p463 = scmp.eq.s32.totalorder %s84, 1
      %p464 = scmp.ne.s32.totalorder %s459, %s461
      %p465 = scmp.eq.s32.totalorder %s84, 0
      %p466 = por %p464, %p465
      %p467 = scmp.ne.s32.totalorder %s459, %s461
      %p468 = scmp.eq.s32.totalorder %s89, 1
      %p469 = por %p467, %p468
      %p470 = scmp.ne.s32.totalorder %s461, %s462
      %p471 = scmp.eq.s32.totalorder %s89, 0
      %p472 = por %p470, %p471
      %p473 = scmp.ne.s32.totalorder %s461, %s462
      %p474 = scmp.eq.s32.totalorder %s90, 1
      %p475 = por %p473, %p474
      %p477 = scmp.ne.s32.totalorder %s462, %s476
      %p478 = scmp.eq.s32.totalorder %s90, 0
      %p479 = por %p477, %p478
      %s481 = sadd.s32 %s480, 1
      %p484 = scmp.eq.s32.totalorder %s84, 1
      %p485 = scmp.ne.s32.totalorder %s480, %s482
      %p486 = scmp.eq.s32.totalorder %s84, 0
      %p487 = por %p485, %p486
      %p488 = scmp.ne.s32.totalorder %s480, %s482
      %p489 = scmp.eq.s32.totalorder %s89, 1
      %p490 = por %p488, %p489
      %p491 = scmp.ne.s32.totalorder %s482, %s483
      %p492 = scmp.eq.s32.totalorder %s89, 0
      %p493 = por %p491, %p492
      %p494 = scmp.ne.s32.totalorder %s482, %s483
      %p495 = scmp.eq.s32.totalorder %s90, 1
      %p496 = por %p494, %p495
      %p498 = scmp.ne.s32.totalorder %s483, %s497
      %p499 = scmp.eq.s32.totalorder %s90, 0
      %p500 = por %p498, %p499
      %s502 = sadd.s32 %s501, 1
      %p505 = scmp.eq.s32.totalorder %s84, 1
      %p506 = scmp.ne.s32.totalorder %s501, %s503
      %p507 = scmp.eq.s32.totalorder %s84, 0
      %p508 = por %p506, %p507
      %p509 = scmp.ne.s32.totalorder %s501, %s503
      %p510 = scmp.eq.s32.totalorder %s89, 1
      %p511 = por %p509, %p510
      %p512 = scmp.ne.s32.totalorder %s503, %s504
      %p513 = scmp.eq.s32.totalorder %s89, 0
      %p514 = por %p512, %p513
      %p515 = scmp.ne.s32.totalorder %s503, %s504
      %p516 = scmp.eq.s32.totalorder %s90, 1
      %p517 = por %p515, %p516
      %p519 = scmp.ne.s32.totalorder %s504, %s518
      %p520 = scmp.eq.s32.totalorder %s90, 0
      %p521 = por %p519, %p520
      %s523 = sadd.s32 %s522, 1
      %p526 = scmp.eq.s32.totalorder %s84, 1
      %p527 = scmp.ne.s32.totalorder %s522, %s524
      %p528 = scmp.eq.s32.totalorder %s84, 0
      %p529 = por %p527, %p528
      %p530 = scmp.ne.s32.totalorder %s522, %s524
      %p531 = scmp.eq.s32.totalorder %s89, 1
      %p532 = por %p530, %p531
      %p533 = scmp.ne.s32.totalorder %s524, %s525
      %p534 = scmp.eq.s32.totalorder %s89, 0
      %p535 = por %p533, %p534
      %p536 = scmp.ne.s32.totalorder %s524, %s525
      %p537 = scmp.eq.s32.totalorder %s90, 1
      %p538 = por %p536, %p537
      %p540 = scmp.ne.s32.totalorder %s525, %s539
      %p541 = scmp.eq.s32.totalorder %s90, 0
      %p542 = por %p540, %p541
      %s544 = sadd.s32 %s543, 1
      %p547 = scmp.eq.s32.totalorder %s84, 1
      %p548 = scmp.ne.s32.totalorder %s543, %s545
      %p549 = scmp.eq.s32.totalorder %s84, 0
      %p550 = por %p548, %p549
      %p551 = scmp.ne.s32.totalorder %s543, %s545
      %p552 = scmp.eq.s32.totalorder %s89, 1
      %p553 = por %p551, %p552
      %p554 = scmp.ne.s32.totalorder %s545, %s546
      %p555 = scmp.eq.s32.totalorder %s89, 0
      %p556 = por %p554, %p555
      %p557 = scmp.ne.s32.totalorder %s545, %s546
      %p558 = scmp.eq.s32.totalorder %s90, 1
      %p559 = por %p557, %p558
      %p561 = scmp.ne.s32.totalorder %s546, %s560
      %p562 = scmp.eq.s32.totalorder %s90, 0
      %p563 = por %p561, %p562
      %s565 = sadd.s32 %s564, 1
      %p568 = scmp.eq.s32.totalorder %s84, 1
      %p569 = scmp.ne.s32.totalorder %s564, %s566
      %p570 = scmp.eq.s32.totalorder %s84, 0
      %p571 = por %p569, %p570
      %p572 = scmp.ne.s32.totalorder %s564, %s566
      %p573 = scmp.eq.s32.totalorder %s89, 1
      %p574 = por %p572, %p573
      %p575 = scmp.ne.s32.totalorder %s566, %s567
      %p576 = scmp.eq.s32.totalorder %s89, 0
      %p577 = por %p575, %p576
      %p578 = scmp.ne.s32.totalorder %s566, %s567
      %p579 = scmp.eq.s32.totalorder %s90, 1
      %p580 = por %p578, %p579
      %p582 = scmp.ne.s32.totalorder %s567, %s581
      %p583 = scmp.eq.s32.totalorder %s90, 0
      %p584 = por %p582, %p583
      %s586 = sadd.s32 %s585, 1
      %p589 = scmp.eq.s32.totalorder %s84, 1
      %p590 = scmp.ne.s32.totalorder %s585, %s587
      %p591 = scmp.eq.s32.totalorder %s84, 0
      %p592 = por %p590, %p591
      %p593 = scmp.ne.s32.totalorder %s585, %s587
      %p594 = scmp.eq.s32.totalorder %s89, 1
      %p595 = por %p593, %p594
      %p596 = scmp.ne.s32.totalorder %s587, %s588
      %p597 = scmp.eq.s32.totalorder %s89, 0
      %p598 = por %p596, %p597
      %p599 = scmp.ne.s32.totalorder %s587, %s588
      %p600 = scmp.eq.s32.totalorder %s90, 1
      %p601 = por %p599, %p600
      %p603 = scmp.ne.s32.totalorder %s588, %s602
      %p604 = scmp.eq.s32.totalorder %s90, 0
      %p605 = por %p603, %p604
      %s607 = sadd.s32 %s606, 1
      %p610 = scmp.eq.s32.totalorder %s84, 1
      %p611 = scmp.ne.s32.totalorder %s606, %s608
      %p612 = scmp.eq.s32.totalorder %s84, 0
      %p613 = por %p611, %p612
      %p614 = scmp.ne.s32.totalorder %s606, %s608
      %p615 = scmp.eq.s32.totalorder %s89, 1
      %p616 = por %p614, %p615
      %p617 = scmp.ne.s32.totalorder %s608, %s609
      %p618 = scmp.eq.s32.totalorder %s89, 0
      %p619 = por %p617, %p618
      %p620 = scmp.ne.s32.totalorder %s608, %s609
      %p621 = scmp.eq.s32.totalorder %s90, 1
      %p622 = por %p620, %p621
      %p624 = scmp.ne.s32.totalorder %s609, %s623
      %p625 = scmp.eq.s32.totalorder %s90, 0
      %p626 = por %p624, %p625
      %s628 = sadd.s32 %s627, 1
      %p631 = scmp.eq.s32.totalorder %s84, 1
      %p632 = scmp.ne.s32.totalorder %s627, %s629
      %p633 = scmp.eq.s32.totalorder %s84, 0
      %p634 = por %p632, %p633
      %p635 = scmp.ne.s32.totalorder %s627, %s629
      %p636 = scmp.eq.s32.totalorder %s89, 1
      %p637 = por %p635, %p636
      %p638 = scmp.ne.s32.totalorder %s629, %s630
      %p639 = scmp.eq.s32.totalorder %s89, 0
      %p640 = por %p638, %p639
      %p641 = scmp.ne.s32.totalorder %s629, %s630
      %p642 = scmp.eq.s32.totalorder %s90, 1
      %p643 = por %p641, %p642
      %p645 = scmp.ne.s32.totalorder %s630, %s644
      %p646 = scmp.eq.s32.totalorder %s90, 0
      %p647 = por %p645, %p646
      %s649 = sadd.s32 %s648, 1
      %p652 = scmp.eq.s32.totalorder %s84, 1
      %p653 = scmp.ne.s32.totalorder %s648, %s650
      %p654 = scmp.eq.s32.totalorder %s84, 0
      %p655 = por %p653, %p654
      %p656 = scmp.ne.s32.totalorder %s648, %s650
      %p657 = scmp.eq.s32.totalorder %s89, 1
      %p658 = por %p656, %p657
      %p659 = scmp.ne.s32.totalorder %s650, %s651
      %p660 = scmp.eq.s32.totalorder %s89, 0
      %p661 = por %p659, %p660
      %p662 = scmp.ne.s32.totalorder %s650, %s651
      %p663 = scmp.eq.s32.totalorder %s90, 1
      %p664 = por %p662, %p663
      %p666 = scmp.ne.s32.totalorder %s651, %s665
      %p667 = scmp.eq.s32.totalorder %s90, 0
      %p668 = por %p666, %p667
      %s670 = sadd.s32 %s669, 1
      %p673 = scmp.eq.s32.totalorder %s84, 1
      %p674 = scmp.ne.s32.totalorder %s669, %s671
      %p675 = scmp.eq.s32.totalorder %s84, 0
      %p676 = por %p674, %p675
      %p677 = scmp.ne.s32.totalorder %s669, %s671
      %p678 = scmp.eq.s32.totalorder %s89, 1
      %p679 = por %p677, %p678
      %p680 = scmp.ne.s32.totalorder %s671, %s672
      %p681 = scmp.eq.s32.totalorder %s89, 0
      %p682 = por %p680, %p681
      %p683 = scmp.ne.s32.totalorder %s671, %s672
      %p684 = scmp.eq.s32.totalorder %s90, 1
      %p685 = por %p683, %p684
      %p687 = scmp.ne.s32.totalorder %s672, %s686
      %p688 = scmp.eq.s32.totalorder %s90, 0
      %p689 = por %p687, %p688
      %s691 = sadd.s32 %s690, 1
      %p694 = scmp.eq.s32.totalorder %s84, 1
      %p695 = scmp.ne.s32.totalorder %s690, %s692
      %p696 = scmp.eq.s32.totalorder %s84, 0
      %p697 = por %p695, %p696
      %p698 = scmp.ne.s32.totalorder %s690, %s692
      %p699 = scmp.eq.s32.totalorder %s89, 1
      %p700 = por %p698, %p699
      %p701 = scmp.ne.s32.totalorder %s692, %s693
      %p702 = scmp.eq.s32.totalorder %s89, 0
      %p703 = por %p701, %p702
      %p704 = scmp.ne.s32.totalorder %s692, %s693
      %p705 = scmp.eq.s32.totalorder %s90, 1
      %p706 = por %p704, %p705
      %p708 = scmp.ne.s32.totalorder %s693, %s707
      %p709 = scmp.eq.s32.totalorder %s90, 0
      %p710 = por %p708, %p709
      %s712 = sadd.s32 %s711, 1
      %p715 = scmp.eq.s32.totalorder %s84, 1
      %p716 = scmp.ne.s32.totalorder %s711, %s713
      %p717 = scmp.eq.s32.totalorder %s84, 0
      %p718 = por %p716, %p717
      %p719 = scmp.ne.s32.totalorder %s711, %s713
      %p720 = scmp.eq.s32.totalorder %s89, 1
      %p721 = por %p719, %p720
      %p722 = scmp.ne.s32.totalorder %s713, %s714
      %p723 = scmp.eq.s32.totalorder %s89, 0
      %p724 = por %p722, %p723
      %p725 = scmp.ne.s32.totalorder %s713, %s714
      %p726 = scmp.eq.s32.totalorder %s90, 1
      %p727 = por %p725, %p726
      %p729 = scmp.ne.s32.totalorder %s714, %s728
      %p730 = scmp.eq.s32.totalorder %s90, 0
      %p731 = por %p729, %p730
      %s733 = sadd.s32 %s732, 1
      %p736 = scmp.eq.s32.totalorder %s84, 1
      %p737 = scmp.ne.s32.totalorder %s732, %s734
      %p738 = scmp.eq.s32.totalorder %s84, 0
      %p739 = por %p737, %p738
      %p740 = scmp.ne.s32.totalorder %s732, %s734
      %p741 = scmp.eq.s32.totalorder %s89, 1
      %p742 = por %p740, %p741
      %p743 = scmp.ne.s32.totalorder %s734, %s735
      %p744 = scmp.eq.s32.totalorder %s89, 0
      %p745 = por %p743, %p744
      %p746 = scmp.ne.s32.totalorder %s734, %s735
      %p747 = scmp.eq.s32.totalorder %s90, 1
      %p748 = por %p746, %p747
      %p750 = scmp.ne.s32.totalorder %s735, %s749
      %p751 = scmp.eq.s32.totalorder %s90, 0
      %p752 = por %p750, %p751
      %s754 = sadd.s32 %s753, 1
      %p757 = scmp.eq.s32.totalorder %s84, 1
      %p758 = scmp.ne.s32.totalorder %s753, %s755
      %p759 = scmp.eq.s32.totalorder %s84, 0
      %p760 = por %p758, %p759
      %p761 = scmp.ne.s32.totalorder %s753, %s755
      %p762 = scmp.eq.s32.totalorder %s89, 1
      %p763 = por %p761, %p762
      %p764 = scmp.ne.s32.totalorder %s755, %s756
      %p765 = scmp.eq.s32.totalorder %s89, 0
      %p766 = por %p764, %p765
      %p767 = scmp.ne.s32.totalorder %s755, %s756
      %p768 = scmp.eq.s32.totalorder %s90, 1
      %p769 = por %p767, %p768
      %p771 = scmp.ne.s32.totalorder %s756, %s770
      %p772 = scmp.eq.s32.totalorder %s90, 0
      %p773 = por %p771, %p772
      %s775 = sadd.s32 %s774, 1
      %p778 = scmp.eq.s32.totalorder %s84, 1
      %p779 = scmp.ne.s32.totalorder %s774, %s776
      %p780 = scmp.eq.s32.totalorder %s84, 0
      %p781 = por %p779, %p780
      %p782 = scmp.ne.s32.totalorder %s774, %s776
      %p783 = scmp.eq.s32.totalorder %s89, 1
      %p784 = por %p782, %p783
      %p785 = scmp.ne.s32.totalorder %s776, %s777
      %p786 = scmp.eq.s32.totalorder %s89, 0
      %p787 = por %p785, %p786
      %p788 = scmp.ne.s32.totalorder %s776, %s777
      %p789 = scmp.eq.s32.totalorder %s90, 1
      %p790 = por %p788, %p789
      %p792 = scmp.ne.s32.totalorder %s777, %s791
      %p793 = scmp.eq.s32.totalorder %s90, 0
      %p794 = por %p792, %p793
      %s795 = ssub.s32 %s84, %s91
      %p796 = scmp.eq.s32.totalorder %s795, 0
      %s798 = sadd.s32 %s797, 1
      %s799 = scalar_select %p796, %s797, %s798
      %p802 = pneg %p796
      %p803 = scmp.eq.s32.totalorder %s84, 1
      %p804 = por %p802, %p803
      %p805 = scmp.ne.s32.totalorder %s797, %s800
      %p806 = scmp.eq.s32.totalorder %s84, 0
      %p807 = por %p805, %p806
      %p808 = scmp.ne.s32.totalorder %s797, %s800
      %p809 = scmp.eq.s32.totalorder %s89, 1
      %p810 = por %p808, %p809
      %p811 = scmp.ne.s32.totalorder %s800, %s801
      %p812 = scmp.eq.s32.totalorder %s89, 0
      %p813 = por %p811, %p812
      %p814 = scmp.ne.s32.totalorder %s800, %s801
      %p815 = scmp.eq.s32.totalorder %s90, 1
      %p816 = por %p814, %p815
      %p818 = scmp.ne.s32.totalorder %s801, %s817
      %p819 = scmp.eq.s32.totalorder %s90, 0
      %p820 = por %p818, %p819
      %s821 = ssub.s32 %s84, %s91
      %p822 = scmp.eq.s32.totalorder %s821, 0
      %s824 = sadd.s32 %s823, 1
      %s825 = scalar_select %p822, %s823, %s824
      %p828 = pneg %p822
      %p829 = scmp.eq.s32.totalorder %s84, 1
      %p830 = por %p828, %p829
      %p831 = scmp.ne.s32.totalorder %s823, %s826
      %p832 = scmp.eq.s32.totalorder %s84, 0
      %p833 = por %p831, %p832
      %p834 = scmp.ne.s32.totalorder %s823, %s826
      %p835 = scmp.eq.s32.totalorder %s89, 1
      %p836 = por %p834, %p835
      %p837 = scmp.ne.s32.totalorder %s826, %s827
      %p838 = scmp.eq.s32.totalorder %s89, 0
      %p839 = por %p837, %p838
      %p840 = scmp.ne.s32.totalorder %s826, %s827
      %p841 = scmp.eq.s32.totalorder %s90, 1
      %p842 = por %p840, %p841
      %p844 = scmp.ne.s32.totalorder %s827, %s843
      %p845 = scmp.eq.s32.totalorder %s90, 0
      %p846 = por %p844, %p845
      %s847 = ssub.s32 %s84, %s91
      %p848 = scmp.eq.s32.totalorder %s847, 0
      %s850 = sadd.s32 %s849, 1
      %s851 = scalar_select %p848, %s849, %s850
      %p854 = pneg %p848
      %p855 = scmp.eq.s32.totalorder %s84, 1
      %p856 = por %p854, %p855
      %p857 = scmp.ne.s32.totalorder %s849, %s852
      %p858 = scmp.eq.s32.totalorder %s84, 0
      %p859 = por %p857, %p858
      %p860 = scmp.ne.s32.totalorder %s849, %s852
      %p861 = scmp.eq.s32.totalorder %s89, 1
      %p862 = por %p860, %p861
      %p863 = scmp.ne.s32.totalorder %s852, %s853
      %p864 = scmp.eq.s32.totalorder %s89, 0
      %p865 = por %p863, %p864
      %p866 = scmp.ne.s32.totalorder %s852, %s853
      %p867 = scmp.eq.s32.totalorder %s90, 1
      %p868 = por %p866, %p867
      %p870 = scmp.ne.s32.totalorder %s853, %s869
      %p871 = scmp.eq.s32.totalorder %s90, 0
      %p872 = por %p870, %p871
      %p873 = scmp.le.s32.totalorder 1, %s84
      %p874 = scmp.lt.s32.totalorder %s84, 3
      %p875 = pnand %p873, %p874
      %p876 = pneg %p875
      // Predicated region
      $region9: #{run.1} parent=5 // pred_check
        _
      $region10: #{run.1} parent=5 // pred_check_branch
        %878 = sbr.rel (%p875) target = $region12
      $region11: #{run.1} parent=5 // pred_region
        %s879 = ssub.s32 %s84, 1
        // Predicated region
        $region13: #{run.1} parent=11 // pred_check
          %p880 = pneg %p157
        $region14: #{run.1} parent=11 // pred_check_branch
          %882 = sbr.rel (%p880) target = $region16
        $region15: #{run.1} parent=11 // pred_region
          _
        $region16: #{run.1} parent=11 // pred_fallthru
          _
        // Predicated region
        $region17: #{run.1} parent=11 // pred_check
          %p883 = pneg %p178
        $region18: #{run.1} parent=11 // pred_check_branch
          %885 = sbr.rel (%p883) target = $region20
        $region19: #{run.1} parent=11 // pred_region
          _
        $region20: #{run.1} parent=11 // pred_fallthru
          _
        // Predicated region
        $region21: #{run.1} parent=11 // pred_check
          %p886 = pneg %p199
        $region22: #{run.1} parent=11 // pred_check_branch
          %888 = sbr.rel (%p886) target = $region24
        $region23: #{run.1} parent=11 // pred_region
          _
        $region24: #{run.1} parent=11 // pred_fallthru
          _
        // Predicated region
        $region25: #{run.1} parent=11 // pred_check
          %p889 = pneg %p220
        $region26: #{run.1} parent=11 // pred_check_branch
          %891 = sbr.rel (%p889) target = $region28
        $region27: #{run.1} parent=11 // pred_region
          _
        $region28: #{run.1} parent=11 // pred_fallthru
          _
        // Predicated region
        $region29: #{run.1} parent=11 // pred_check
          %p892 = pneg %p241
        $region30: #{run.1} parent=11 // pred_check_branch
          %894 = sbr.rel (%p892) target = $region32
        $region31: #{run.1} parent=11 // pred_region
          _
        $region32: #{run.1} parent=11 // pred_fallthru
          _
        // Predicated region
        $region33: #{run.1} parent=11 // pred_check
          %p895 = pneg %p262
        $region34: #{run.1} parent=11 // pred_check_branch
          %897 = sbr.rel (%p895) target = $region36
        $region35: #{run.1} parent=11 // pred_region
          _
        $region36: #{run.1} parent=11 // pred_fallthru
          _
        // Predicated region
        $region37: #{run.1} parent=11 // pred_check
          %p898 = pneg %p283
        $region38: #{run.1} parent=11 // pred_check_branch
          %900 = sbr.rel (%p898) target = $region40
        $region39: #{run.1} parent=11 // pred_region
          _
        $region40: #{run.1} parent=11 // pred_fallthru
          _
        // Predicated region
        $region41: #{run.1} parent=11 // pred_check
          %p901 = pneg %p304
        $region42: #{run.1} parent=11 // pred_check_branch
          %903 = sbr.rel (%p901) target = $region44
        $region43: #{run.1} parent=11 // pred_region
          _
        $region44: #{run.1} parent=11 // pred_fallthru
          _
        // Predicated region
        $region45: #{run.1} parent=11 // pred_check
          %p904 = pneg %p325
        $region46: #{run.1} parent=11 // pred_check_branch
          %906 = sbr.rel (%p904) target = $region48
        $region47: #{run.1} parent=11 // pred_region
          _
        $region48: #{run.1} parent=11 // pred_fallthru
          _
        // Predicated region
        $region49: #{run.1} parent=11 // pred_check
          %p907 = pneg %p346
        $region50: #{run.1} parent=11 // pred_check_branch
          %909 = sbr.rel (%p907) target = $region52
        $region51: #{run.1} parent=11 // pred_region
          _
        $region52: #{run.1} parent=11 // pred_fallthru
          _
        // Predicated region
        $region53: #{run.1} parent=11 // pred_check
          %p910 = pneg %p367
        $region54: #{run.1} parent=11 // pred_check_branch
          %912 = sbr.rel (%p910) target = $region56
        $region55: #{run.1} parent=11 // pred_region
          _
        $region56: #{run.1} parent=11 // pred_fallthru
          _
        // Predicated region
        $region57: #{run.1} parent=11 // pred_check
          %p913 = pneg %p388
        $region58: #{run.1} parent=11 // pred_check_branch
          %915 = sbr.rel (%p913) target = $region60
        $region59: #{run.1} parent=11 // pred_region
          _
        $region60: #{run.1} parent=11 // pred_fallthru
          _
        // Predicated region
        $region61: #{run.1} parent=11 // pred_check
          %p916 = pneg %p409
        $region62: #{run.1} parent=11 // pred_check_branch
          %918 = sbr.rel (%p916) target = $region64
        $region63: #{run.1} parent=11 // pred_region
          _
        $region64: #{run.1} parent=11 // pred_fallthru
          _
        // Predicated region
        $region65: #{run.1} parent=11 // pred_check
          %p919 = pneg %p430
        $region66: #{run.1} parent=11 // pred_check_branch
          %921 = sbr.rel (%p919) target = $region68
        $region67: #{run.1} parent=11 // pred_region
          _
        $region68: #{run.1} parent=11 // pred_fallthru
          _
        // Predicated region
        $region69: #{run.1} parent=11 // pred_check
          %p922 = pneg %p451
        $region70: #{run.1} parent=11 // pred_check_branch
          %924 = sbr.rel (%p922) target = $region72
        $region71: #{run.1} parent=11 // pred_region
          _
        $region72: #{run.1} parent=11 // pred_fallthru
          _
        // Predicated region
        $region73: #{run.1} parent=11 // pred_check
          %p925 = pneg %p472
        $region74: #{run.1} parent=11 // pred_check_branch
          %927 = sbr.rel (%p925) target = $region76
        $region75: #{run.1} parent=11 // pred_region
          _
        $region76: #{run.1} parent=11 // pred_fallthru
          _
        // Predicated region
        $region77: #{run.1} parent=11 // pred_check
          %p928 = pneg %p493
        $region78: #{run.1} parent=11 // pred_check_branch
          %930 = sbr.rel (%p928) target = $region80
        $region79: #{run.1} parent=11 // pred_region
          _
        $region80: #{run.1} parent=11 // pred_fallthru
          _
        // Predicated region
        $region81: #{run.1} parent=11 // pred_check
          %p931 = pneg %p514
        $region82: #{run.1} parent=11 // pred_check_branch
          %933 = sbr.rel (%p931) target = $region84
        $region83: #{run.1} parent=11 // pred_region
          _
        $region84: #{run.1} parent=11 // pred_fallthru
          _
        // Predicated region
        $region85: #{run.1} parent=11 // pred_check
          %p934 = pneg %p535
        $region86: #{run.1} parent=11 // pred_check_branch
          %936 = sbr.rel (%p934) target = $region88
        $region87: #{run.1} parent=11 // pred_region
          _
        $region88: #{run.1} parent=11 // pred_fallthru
          _
        // Predicated region
        $region89: #{run.1} parent=11 // pred_check
          %p937 = pneg %p556
        $region90: #{run.1} parent=11 // pred_check_branch
          %939 = sbr.rel (%p937) target = $region92
        $region91: #{run.1} parent=11 // pred_region
          _
        $region92: #{run.1} parent=11 // pred_fallthru
          _
        // Predicated region
        $region93: #{run.1} parent=11 // pred_check
          %p940 = pneg %p577
        $region94: #{run.1} parent=11 // pred_check_branch
          %942 = sbr.rel (%p940) target = $region96
        $region95: #{run.1} parent=11 // pred_region
          _
        $region96: #{run.1} parent=11 // pred_fallthru
          _
        // Predicated region
        $region97: #{run.1} parent=11 // pred_check
          %p943 = pneg %p598
        $region98: #{run.1} parent=11 // pred_check_branch
          %945 = sbr.rel (%p943) target = $region100
        $region99: #{run.1} parent=11 // pred_region
          _
        $region100: #{run.1} parent=11 // pred_fallthru
          _
        // Predicated region
        $region101: #{run.1} parent=11 // pred_check
          %p946 = pneg %p619
        $region102: #{run.1} parent=11 // pred_check_branch
          %948 = sbr.rel (%p946) target = $region104
        $region103: #{run.1} parent=11 // pred_region
          _
        $region104: #{run.1} parent=11 // pred_fallthru
          _
        // Predicated region
        $region105: #{run.1} parent=11 // pred_check
          %p949 = pneg %p640
        $region106: #{run.1} parent=11 // pred_check_branch
          %951 = sbr.rel (%p949) target = $region108
        $region107: #{run.1} parent=11 // pred_region
          _
        $region108: #{run.1} parent=11 // pred_fallthru
          _
        // Predicated region
        $region109: #{run.1} parent=11 // pred_check
          %p952 = pneg %p661
        $region110: #{run.1} parent=11 // pred_check_branch
          %954 = sbr.rel (%p952) target = $region112
        $region111: #{run.1} parent=11 // pred_region
          _
        $region112: #{run.1} parent=11 // pred_fallthru
          _
        // Predicated region
        $region113: #{run.1} parent=11 // pred_check
          %p955 = pneg %p682
        $region114: #{run.1} parent=11 // pred_check_branch
          %957 = sbr.rel (%p955) target = $region116
        $region115: #{run.1} parent=11 // pred_region
          _
        $region116: #{run.1} parent=11 // pred_fallthru
          _
        // Predicated region
        $region117: #{run.1} parent=11 // pred_check
          %p958 = pneg %p703
        $region118: #{run.1} parent=11 // pred_check_branch
          %960 = sbr.rel (%p958) target = $region120
        $region119: #{run.1} parent=11 // pred_region
          _
        $region120: #{run.1} parent=11 // pred_fallthru
          _
        // Predicated region
        $region121: #{run.1} parent=11 // pred_check
          %p961 = pneg %p724
        $region122: #{run.1} parent=11 // pred_check_branch
          %963 = sbr.rel (%p961) target = $region124
        $region123: #{run.1} parent=11 // pred_region
          _
        $region124: #{run.1} parent=11 // pred_fallthru
          _
        // Predicated region
        $region125: #{run.1} parent=11 // pred_check
          %p964 = pneg %p745
        $region126: #{run.1} parent=11 // pred_check_branch
          %966 = sbr.rel (%p964) target = $region128
        $region127: #{run.1} parent=11 // pred_region
          _
        $region128: #{run.1} parent=11 // pred_fallthru
          _
        // Predicated region
        $region129: #{run.1} parent=11 // pred_check
          %p967 = pneg %p766
        $region130: #{run.1} parent=11 // pred_check_branch
          %969 = sbr.rel (%p967) target = $region132
        $region131: #{run.1} parent=11 // pred_region
          _
        $region132: #{run.1} parent=11 // pred_fallthru
          _
        // Predicated region
        $region133: #{run.1} parent=11 // pred_check
          %p970 = pneg %p787
        $region134: #{run.1} parent=11 // pred_check_branch
          %972 = sbr.rel (%p970) target = $region136
        $region135: #{run.1} parent=11 // pred_region
          _
        $region136: #{run.1} parent=11 // pred_fallthru
          _
      $region12: #{run.1} parent=5 // pred_fallthru
        _
      %p973 = scmp.lt.s32.totalorder %s84, 2
      // Predicated region
      $region137: #{run.1} parent=5 // pred_check
        %p974 = pneg %p973
      $region138: #{run.1} parent=5 // pred_check_branch
        %976 = sbr.rel (%p974) target = $region140
      $region139: #{run.1} parent=5 // pred_region
        // Predicated region
        $region141: #{run.1} parent=139 // pred_check
          %p977 = pneg %p104
        $region142: #{run.1} parent=139 // pred_check_branch
          %979 = sbr.rel (%p977) target = $region144
        $region143: #{run.1} parent=139 // pred_region
          %p980 = scmp.lt.s32.totalorder %s84, 1
          %s981 = scalar_select %p980, %s84, 1
          %s982 = smul.addr %s981, 8
          %s983 = scalar_lea.vmem %s1, %s982
        $region144: #{run.1} parent=139 // pred_fallthru
          _
        // Predicated region
        $region145: #{run.1} parent=139 // pred_check
          %p984 = pneg %p130
        $region146: #{run.1} parent=139 // pred_check_branch
          %986 = sbr.rel (%p984) target = $region148
        $region147: #{run.1} parent=139 // pred_region
          %p987 = scmp.lt.s32.totalorder %s84, 1
          %s988 = scalar_select %p987, %s84, 1
          %s989 = smul.addr %s988, 4
          %s990 = scalar_lea.vmem %s3, %s989
        $region148: #{run.1} parent=139 // pred_fallthru
          _
      $region140: #{run.1} parent=5 // pred_fallthru
        _
      %p991 = scmp.le.s32.totalorder 1, %s84
      %p992 = scmp.lt.s32.totalorder %s84, 3
      %p993 = pnand %p991, %p992
      %p994 = pneg %p993
      // Predicated region
      $region149: #{run.1} parent=5 // pred_check
        _
      $region150: #{run.1} parent=5 // pred_check_branch
        %996 = sbr.rel (%p993) target = $region152
      $region151: #{run.1} parent=5 // pred_region
        %s997 = ssub.s32 %s84, 1
        %p998 = scmp.lt.s32.totalorder %s89, 1
        %s999 = scalar_select %p998, %s89, 1
        %s1000 = smul.addr %s999, 8
        %s1001 = scalar_lea.vmem %s1, %s1000
        %p1002 = pneg %p110
        %p1003 = pneg %p107
        %p1004 = scmp.lt.s32.totalorder %s89, 1
        %s1005 = scalar_select %p1004, %s89, 1
        %s1006 = smul.addr %s1005, 4
        %s1007 = scalar_lea.vmem %s3, %s1006
        %p1008 = pneg %p136
        %p1009 = pneg %p133
        %p1010 = pneg %p157
        %p1011 = pneg %p154
        %p1012 = pneg %p178
        %p1013 = pneg %p175
        %p1014 = pneg %p199
        %p1015 = pneg %p196
        %p1016 = pneg %p220
        %p1017 = pneg %p217
        %p1018 = pneg %p241
        %p1019 = pneg %p238
        %p1020 = pneg %p262
        %p1021 = pneg %p259
        %p1022 = pneg %p283
        %p1023 = pneg %p280
        %p1024 = pneg %p304
        %p1025 = pneg %p301
        %p1026 = pneg %p325
        %p1027 = pneg %p322
        %p1028 = pneg %p346
        %p1029 = pneg %p343
        %p1030 = pneg %p367
        %p1031 = pneg %p364
        %p1032 = pneg %p388
        %p1033 = pneg %p385
        %p1034 = pneg %p409
        %p1035 = pneg %p406
        %p1036 = pneg %p430
        %p1037 = pneg %p427
        %p1038 = pneg %p451
        %p1039 = pneg %p448
        %p1040 = pneg %p472
        %p1041 = pneg %p469
        %p1042 = pneg %p493
        %p1043 = pneg %p490
        %p1044 = pneg %p514
        %p1045 = pneg %p511
        %p1046 = pneg %p535
        %p1047 = pneg %p532
        %p1048 = pneg %p556
        %p1049 = pneg %p553
        %p1050 = pneg %p577
        %p1051 = pneg %p574
        %p1052 = pneg %p598
        %p1053 = pneg %p595
        %p1054 = pneg %p619
        %p1055 = pneg %p616
        %p1056 = pneg %p640
        %p1057 = pneg %p637
        %p1058 = pneg %p661
        %p1059 = pneg %p658
        %p1060 = pneg %p682
        %p1061 = pneg %p679
        %p1062 = pneg %p703
        %p1063 = pneg %p700
        %p1064 = pneg %p724
        %p1065 = pneg %p721
        %p1066 = pneg %p745
        %p1067 = pneg %p742
        %p1068 = pneg %p766
        %p1069 = pneg %p763
        %p1070 = pneg %p787
        %p1071 = pneg %p784
        %p1072 = pneg %p813
        %p1073 = pneg %p810
        %s1074 = sand.u32 %s800, 1
        %s1075 = scalar_lea.sflag [#allocation4], %s1074
        %s1076 = sand.u32 %s800, 1
        %s1077 = scalar_lea.vmem [#allocation3], %s1076
        %p1078 = pneg %p839
        %p1079 = pneg %p836
        %s1080 = sand.u32 %s89, 1
        %s1081 = scalar_lea.sflag [#allocation6], %s1080
        %s1082 = sand.u32 %s826, 1
        %s1083 = scalar_lea.vmem [#allocation5], %s1082
        %p1084 = pneg %p865
        %p1085 = pneg %p862
        %s1086 = sand.u32 %s89, 1
        %s1087 = scalar_lea.sflag [#allocation6], %s1086
        %s1088 = sand.u32 %s852, 1
        %s1089 = smul.addr %s1088, 8
        %s1090 = scalar_lea.vmem [#allocation7], %s1089
        %p1091 = scmp.lt.s32.totalorder %s89, 1
        %s1092 = scalar_select %p1091, %s89, 1
        %s1093 = smul.addr %s1092, 8
        %s1094 = scalar_lea.vmem %s1, %s1093
        %p1095 = scmp.lt.s32.totalorder %s89, 1
        %s1096 = scalar_select %p1095, %s89, 1
        %s1097 = smul.addr %s1096, 4
        %s1098 = scalar_lea.vmem %s3, %s1097
        %v1099 = vld [vmem:[%s5] sm:$0xff]
        %v1100 = vld [vmem:[%s1098] sm:$0xf]
        %v1101 = vld [vmem:[%s1094] sm:$0x3f]
        %v1102 = vld [vmem:[%s7] sm:$0xff]
        %v1103 = vld [vmem:[%s7 + $0x8] sm:$0xff]
        %v1104 = vld [vmem:[%s9] sm:$0x1]
        %v1106 = vlaneseq
        %v1107 = vshrl.u32 %v1106, 7
        %v1108 = vsub.s32 0, %v1107
        %v1109 = vrot.slane %v1104, %v1108
        %vm1111 = vcmask 130048
        %v1113 = vsel %vm1111, %v1101, 0
        %1115 = vmatprep.subr.mxu0 0.0
        %1116 = vmatpush1.msra.mxu0 %v1102
        %1117 = vmatprep.subr.mxu0 0.0
        %1118 = vmatpush1.msra.mxu0 %v1103
        %1119 = vmatprep.subr.mxu0 0.0
        %1120 = vmatpush1.msra.mxu0 0.0
        %1121 = vmatprep.subr.mxu0 0.0
        %1122 = vmatpush1.msra.mxu0 0.0
        %1123 = vmatprep.subr.mxu0 0.0
        %1124 = vmatpush1.msra.mxu0 0.0
        %1125 = vmatprep.subr.mxu0 0.0
        %1126 = vmatpush1.msra.mxu0 0.0
        %1127 = vmatprep.subr.mxu0 0.0
        %1128 = vmatpush1.msra.mxu0 0.0
        %1129 = vmatprep.subr.mxu0 0.0
        %1130 = vmatpush1.msra.mxu0 0.0
        %1131 = vmatprep.subr.mxu0 0.0
        %1132 = vmatpush1.msra.mxu0 0.0
        %1133 = vmatprep.subr.mxu0 0.0
        %1134 = vmatpush1.msra.mxu0 0.0
        %1135 = vmatprep.subr.mxu0 0.0
        %1136 = vmatpush1.msra.mxu0 0.0
        %1137 = vmatprep.subr.mxu0 0.0
        %1138 = vmatpush1.msra.mxu0 0.0
        %1139 = vmatprep.subr.mxu0 0.0
        %1140 = vmatpush1.msra.mxu0 0.0
        %1141 = vmatprep.subr.mxu0 0.0
        %1142 = vmatpush1.msra.mxu0 0.0
        %1143 = vmatprep.subr.mxu0 0.0
        %1144 = vmatpush1.msra.mxu0 0.0
        %1145 = vmatprep.subr.mxu0 0.0
        %1146 = vmatpush1.msra.mxu0 0.0
        %1147 = vmatprep.subr.mxu0 0.0
        %1148 = vmatpush1.msra.mxu0 0.0
        %1149 = vmatprep.subr.mxu0 0.0
        %1150 = vmatpush1.msra.mxu0 0.0
        %1151 = vmatprep.subr.mxu0 0.0
        %1152 = vmatpush1.msra.mxu0 0.0
        %1153 = vmatprep.subr.mxu0 0.0
        %1154 = vmatpush1.msra.mxu0 0.0
        %1155 = vmatprep.subr.mxu0 0.0
        %1156 = vmatpush1.msra.mxu0 0.0
        %1157 = vmatprep.subr.mxu0 0.0
        %1158 = vmatpush1.msra.mxu0 0.0
        %1159 = vmatprep.subr.mxu0 0.0
        %1160 = vmatpush1.msra.mxu0 0.0
        %1161 = vmatprep.subr.mxu0 0.0
        %1162 = vmatpush1.msra.mxu0 0.0
        %1163 = vmatprep.subr.mxu0 0.0
        %1164 = vmatpush1.msra.mxu0 0.0
        %1165 = vmatprep.subr.mxu0 0.0
        %1166 = vmatpush1.msra.mxu0 0.0
        %1167 = vmatprep.subr.mxu0 0.0
        %1168 = vmatpush1.msra.mxu0 0.0
        %1169 = vmatprep.subr.mxu0 0.0
        %1170 = vmatpush1.msra.mxu0 0.0
        %1171 = vmatprep.subr.mxu0 0.0
        %1172 = vmatpush1.msra.mxu0 0.0
        %1173 = vmatprep.subr.mxu0 0.0
        %1174 = vmatpush1.msra.mxu0 0.0
        %1175 = vmatprep.subr.mxu0 0.0
        %1176 = vmatpush1.msra.mxu0 0.0
        %1177 = vmatprep.subr.mxu0 0.0
        %1178 = vmatpush1.msra.mxu0 0.0
        %1179 = vmatprep.mubr.f32.mxu0 0.0
        %1180 = vmatmul.mubr.f32.gmra.mrb[0].mxu0 %v1113
        %v1181 = vpop.f32.mrb[0].mxu0
        %v1182 = vadd.f32 %v1109, %v1181
        %v1183 = vpop.f32.mrb[0].mxu0
        %1184 = vdwg.mxu0
        %vm1185 = vcmask 253952
        %1186 = vst.msk [vmem:[#allocation2] sm:$0x1] %vm1185, %v1100
        %vm1187 = vcmask 254977
        %1188 = vst.msk [vmem:[#allocation2] sm:$0x2] %vm1187, %v1100
        %vm1189 = vcmask 259072
        %1190 = vst.msk [vmem:[#allocation2 + $0x2] sm:$0x3f] %vm1189, %v1182
        %v1191 = vld [vmem:[#allocation2] sm:$0xff]
        %v1192 = vadd.f32 %v1191, %v1099
        %v1193 = vld [vmem:[%s15] sm:$0x1]
        %v1194 = vld [vmem:[%s17] sm:$0x1]
        %vm1195 = vcmask 261120
        %v1196 = vsel %vm1195, %v1192, 0.0
        %1197 = vadd.xlane.f32.xlu0 %v1196
        %v1198 = vpop.xlane.xlu0 %1197
        %v1199 = vrcp.pop 32.0
        %v1200 = vmul.f32 %v1198, %v1199
        %v1201 = vsub.f32 %v1192, %v1200
        %v1202 = vmul.f32 %v1201, %v1201
        %v1203 = vsel %vm1195, %v1202, 0.0
        %1204 = vadd.xlane.f32.xlu0 %v1203
        %v1205 = vpop.xlane.xlu0 %1204
        %v1206 = vmul.f32 %v1205, %v1199
        %v1207 = vadd.f32 %v1206, 1e-06
        %v1208 = vrsqrt.pop %v1207
        %v1209 = vmul.f32 %v1201, %v1208
        %v1210 = vlaneseq
        %v1211 = vshrl.u32 %v1210, 7
        %v1212 = vsub.s32 0, %v1211
        %v1213 = vrot.slane %v1193, %v1212
        %v1214 = vmul.f32 %v1209, %v1213
        %v1215 = vlaneseq
        %v1216 = vshrl.u32 %v1215, 7
        %v1217 = vsub.s32 0, %v1216
        %v1218 = vrot.slane %v1194, %v1217
        %v1219 = vadd.f32 %v1214, %v1218
        %v1220 = vld [vmem:[%s19] sm:$0x1]
        %v1221 = vld [vmem:[%s21] sm:$0x1]
        %v1222 = vsel %vm1195, %v1219, 0.0
        %1223 = vadd.xlane.f32.xlu0 %v1222
        %v1224 = vpop.xlane.xlu0 %1223
        %v1225 = vmul.f32 %v1224, %v1199
        %v1226 = vsub.f32 %v1219, %v1225
        %v1227 = vmul.f32 %v1226, %v1226
        %v1228 = vsel %vm1195, %v1227, 0.0
        %1229 = vadd.xlane.f32.xlu0 %v1228
        %v1230 = vpop.xlane.xlu0 %1229
        %v1231 = vmul.f32 %v1230, %v1199
        %v1232 = vadd.f32 %v1231, 1e-06
        %v1233 = vrsqrt.pop %v1232
        %v1234 = vmul.f32 %v1226, %v1233
        %v1235 = vlaneseq
        %v1236 = vshrl.u32 %v1235, 7
        %v1237 = vsub.s32 0, %v1236
        %v1238 = vrot.slane %v1220, %v1237
        %v1239 = vmul.f32 %v1234, %v1238
        %v1240 = vlaneseq
        %v1241 = vshrl.u32 %v1240, 7
        %v1242 = vsub.s32 0, %v1241
        %v1243 = vrot.slane %v1221, %v1242
        %v1244 = vadd.f32 %v1239, %v1243
        %v1245 = vld [vmem:[%s23] sm:$0xff]
        %v1246 = vld [vmem:[%s23 + $0x8] sm:$0xff]
        %v1247 = vld [vmem:[%s23 + $0x10] sm:$0xff]
        %v1248 = vld [vmem:[%s23 + $0x18] sm:$0xff]
        %v1249 = vld [vmem:[%s25] sm:$0x1]
        %v1250 = vlaneseq
        %v1251 = vshrl.u32 %v1250, 7
        %v1252 = vsub.s32 0, %v1251
        %v1253 = vrot.slane %v1249, %v1252
        %v1255 = vsel %vm1195, %v1244, 0
        %1257 = vmatprep.subr.mxu0 0.0
        %1258 = vmatpush1.msra.mxu0 %v1245
        %1259 = vmatprep.subr.mxu0 0.0
        %1260 = vmatpush1.msra.mxu0 %v1246
        %1261 = vmatprep.subr.mxu0 0.0
        %1262 = vmatpush1.msra.mxu0 %v1247
        %1263 = vmatprep.subr.mxu0 0.0
        %1264 = vmatpush1.msra.mxu0 %v1248
        %1265 = vmatprep.subr.mxu0 0.0
        %1266 = vmatpush1.msra.mxu0 0.0
        %1267 = vmatprep.subr.mxu0 0.0
        %1268 = vmatpush1.msra.mxu0 0.0
        %1269 = vmatprep.subr.mxu0 0.0
        %1270 = vmatpush1.msra.mxu0 0.0
        %1271 = vmatprep.subr.mxu0 0.0
        %1272 = vmatpush1.msra.mxu0 0.0
        %1273 = vmatprep.subr.mxu0 0.0
        %1274 = vmatpush1.msra.mxu0 0.0
        %1275 = vmatprep.subr.mxu0 0.0
        %1276 = vmatpush1.msra.mxu0 0.0
        %1277 = vmatprep.subr.mxu0 0.0
        %1278 = vmatpush1.msra.mxu0 0.0
        %1279 = vmatprep.subr.mxu0 0.0
        %1280 = vmatpush1.msra.mxu0 0.0
        %1281 = vmatprep.subr.mxu0 0.0
        %1282 = vmatpush1.msra.mxu0 0.0
        %1283 = vmatprep.subr.mxu0 0.0
        %1284 = vmatpush1.msra.mxu0 0.0
        %1285 = vmatprep.subr.mxu0 0.0
        %1286 = vmatpush1.msra.mxu0 0.0
        %1287 = vmatprep.subr.mxu0 0.0
        %1288 = vmatpush1.msra.mxu0 0.0
        %1289 = vmatprep.subr.mxu0 0.0
        %1290 = vmatpush1.msra.mxu0 0.0
        %1291 = vmatprep.subr.mxu0 0.0
        %1292 = vmatpush1.msra.mxu0 0.0
        %1293 = vmatprep.subr.mxu0 0.0
        %1294 = vmatpush1.msra.mxu0 0.0
        %1295 = vmatprep.subr.mxu0 0.0
        %1296 = vmatpush1.msra.mxu0 0.0
        %1297 = vmatprep.subr.mxu0 0.0
        %1298 = vmatpush1.msra.mxu0 0.0
        %1299 = vmatprep.subr.mxu0 0.0
        %1300 = vmatpush1.msra.mxu0 0.0
        %1301 = vmatprep.subr.mxu0 0.0
        %1302 = vmatpush1.msra.mxu0 0.0
        %1303 = vmatprep.subr.mxu0 0.0
        %1304 = vmatpush1.msra.mxu0 0.0
        %1305 = vmatprep.subr.mxu0 0.0
        %1306 = vmatpush1.msra.mxu0 0.0
        %1307 = vmatprep.subr.mxu0 0.0
        %1308 = vmatpush1.msra.mxu0 0.0
        %1309 = vmatprep.subr.mxu0 0.0
        %1310 = vmatpush1.msra.mxu0 0.0
        %1311 = vmatprep.subr.mxu0 0.0
        %1312 = vmatpush1.msra.mxu0 0.0
        %1313 = vmatprep.subr.mxu0 0.0
        %1314 = vmatpush1.msra.mxu0 0.0
        %1315 = vmatprep.subr.mxu0 0.0
        %1316 = vmatpush1.msra.mxu0 0.0
        %1317 = vmatprep.subr.mxu0 0.0
        %1318 = vmatpush1.msra.mxu0 0.0
        %1319 = vmatprep.subr.mxu0 0.0
        %1320 = vmatpush1.msra.mxu0 0.0
        %1321 = vmatprep.mubr.f32.mxu0 0.0
        %1322 = vmatmul.mubr.f32.gmra.mrb[0].mxu0 %v1255
        %v1323 = vpop.f32.mrb[0].mxu0
        %v1324 = vadd.f32 %v1253, %v1323
        %v1325 = vpop.f32.mrb[0].mxu0
        %1326 = vdwg.mxu0
        %v1327 = vmax.f32 %v1324, 0.0
        %v1328 = vld [vmem:[%s27] sm:$0xff]
        %v1329 = vld [vmem:[%s27 + $0x8] sm:$0xff]
        %v1330 = vld [vmem:[%s27 + $0x10] sm:$0xff]
        %v1331 = vld [vmem:[%s27 + $0x18] sm:$0xff]
        %v1332 = vld [vmem:[%s27 + $0x20] sm:$0xff]
        %v1333 = vld [vmem:[%s27 + $0x28] sm:$0xff]
        %v1334 = vld [vmem:[%s27 + $0x30] sm:$0xff]
        %v1335 = vld [vmem:[%s27 + $0x38] sm:$0xff]
        %v1336 = vld [vmem:[%s27 + $0x40] sm:$0xff]
        %v1337 = vld [vmem:[%s27 + $0x48] sm:$0xff]
        %v1338 = vld [vmem:[%s27 + $0x50] sm:$0xff]
        %v1339 = vld [vmem:[%s27 + $0x58] sm:$0xff]
        %v1340 = vld [vmem:[%s27 + $0x60] sm:$0xff]
        %v1341 = vld [vmem:[%s27 + $0x68] sm:$0xff]
        %v1342 = vld [vmem:[%s27 + $0x70] sm:$0xff]
        %v1343 = vld [vmem:[%s27 + $0x78] sm:$0xff]
        %v1344 = vld [vmem:[%s29] sm:$0x1]
        %v1345 = vlaneseq
        %v1346 = vshrl.u32 %v1345, 7
        %v1347 = vsub.s32 0, %v1346
        %v1348 = vrot.slane %v1344, %v1347
        %1349 = vmatprep.subr.mxu0 0.0
        %1350 = vmatpush1.msra.mxu0 %v1328
        %1351 = vmatprep.subr.mxu0 0.0
        %1352 = vmatpush1.msra.mxu0 %v1329
        %1353 = vmatprep.subr.mxu0 0.0
        %1354 = vmatpush1.msra.mxu0 %v1330
        %1355 = vmatprep.subr.mxu0 0.0
        %1356 = vmatpush1.msra.mxu0 %v1331
        %1357 = vmatprep.subr.mxu0 0.0
        %1358 = vmatpush1.msra.mxu0 %v1332
        %1359 = vmatprep.subr.mxu0 0.0
        %1360 = vmatpush1.msra.mxu0 %v1333
        %1361 = vmatprep.subr.mxu0 0.0
        %1362 = vmatpush1.msra.mxu0 %v1334
        %1363 = vmatprep.subr.mxu0 0.0
        %1364 = vmatpush1.msra.mxu0 %v1335
        %1365 = vmatprep.subr.mxu0 0.0
        %1366 = vmatpush1.msra.mxu0 %v1336
        %1367 = vmatprep.subr.mxu0 0.0
        %1368 = vmatpush1.msra.mxu0 %v1337
        %1369 = vmatprep.subr.mxu0 0.0
        %1370 = vmatpush1.msra.mxu0 %v1338
        %1371 = vmatprep.subr.mxu0 0.0
        %1372 = vmatpush1.msra.mxu0 %v1339
        %1373 = vmatprep.subr.mxu0 0.0
        %1374 = vmatpush1.msra.mxu0 %v1340
        %1375 = vmatprep.subr.mxu0 0.0
        %1376 = vmatpush1.msra.mxu0 %v1341
        %1377 = vmatprep.subr.mxu0 0.0
        %1378 = vmatpush1.msra.mxu0 %v1342
        %1379 = vmatprep.subr.mxu0 0.0
        %1380 = vmatpush1.msra.mxu0 %v1343
        %1381 = vmatprep.subr.mxu0 0.0
        %1382 = vmatpush1.msra.mxu0 0.0
        %1383 = vmatprep.subr.mxu0 0.0
        %1384 = vmatpush1.msra.mxu0 0.0
        %1385 = vmatprep.subr.mxu0 0.0
        %1386 = vmatpush1.msra.mxu0 0.0
        %1387 = vmatprep.subr.mxu0 0.0
        %1388 = vmatpush1.msra.mxu0 0.0
        %1389 = vmatprep.subr.mxu0 0.0
        %1390 = vmatpush1.msra.mxu0 0.0
        %1391 = vmatprep.subr.mxu0 0.0
        %1392 = vmatpush1.msra.mxu0 0.0
        %1393 = vmatprep.subr.mxu0 0.0
        %1394 = vmatpush1.msra.mxu0 0.0
        %1395 = vmatprep.subr.mxu0 0.0
        %1396 = vmatpush1.msra.mxu0 0.0
        %1397 = vmatprep.subr.mxu0 0.0
        %1398 = vmatpush1.msra.mxu0 0.0
        %1399 = vmatprep.subr.mxu0 0.0
        %1400 = vmatpush1.msra.mxu0 0.0
        %1401 = vmatprep.subr.mxu0 0.0
        %1402 = vmatpush1.msra.mxu0 0.0
        %1403 = vmatprep.subr.mxu0 0.0
        %1404 = vmatpush1.msra.mxu0 0.0
        %1405 = vmatprep.subr.mxu0 0.0
        %1406 = vmatpush1.msra.mxu0 0.0
        %1407 = vmatprep.subr.mxu0 0.0
        %1408 = vmatpush1.msra.mxu0 0.0
        %1409 = vmatprep.subr.mxu0 0.0
        %1410 = vmatpush1.msra.mxu0 0.0
        %1411 = vmatprep.subr.mxu0 0.0
        %1412 = vmatpush1.msra.mxu0 0.0
        %1413 = vmatprep.mubr.f32.mxu0 0.0
        %1414 = vmatmul.mubr.f32.gmra.mrb[0].mxu0 %v1327
        %v1415 = vpop.f32.mrb[0].mxu0
        %v1416 = vadd.f32 %v1348, %v1415
        %v1417 = vpop.f32.mrb[0].mxu0
        %1418 = vdwg.mxu0
        %v1419 = vadd.f32 %v1416, %v1219
        %v1420 = vadd.f32 %v1419, %v1419
        %v1421 = vld [vmem:[%s15 + $0x1] sm:$0x1]
        %v1422 = vld [vmem:[%s17 + $0x1] sm:$0x1]
        %v1423 = vsel %vm1195, %v1420, 0.0
        %1424 = vadd.xlane.f32.xlu0 %v1423
        %v1425 = vpop.xlane.xlu0 %1424
        %v1426 = vmul.f32 %v1425, %v1199
        %v1427 = vsub.f32 %v1420, %v1426
        %v1428 = vmul.f32 %v1427, %v1427
        %v1429 = vsel %vm1195, %v1428, 0.0
        %1430 = vadd.xlane.f32.xlu0 %v1429
        %v1431 = vpop.xlane.xlu0 %1430
        %v1432 = vmul.f32 %v1431, %v1199
        %v1433 = vadd.f32 %v1432, 1e-06
        %v1434 = vrsqrt.pop %v1433
        %v1435 = vmul.f32 %v1427, %v1434
        %v1436 = vlaneseq
        %v1437 = vshrl.u32 %v1436, 7
        %v1438 = vsub.s32 0, %v1437
        %v1439 = vrot.slane %v1421, %v1438
        %v1440 = vmul.f32 %v1435, %v1439
        %v1441 = vlaneseq
        %v1442 = vshrl.u32 %v1441, 7
        %v1443 = vsub.s32 0, %v1442
        %v1444 = vrot.slane %v1422, %v1443
        %v1445 = vadd.f32 %v1440, %v1444
        %v1446 = vld [vmem:[%s19 + $0x1] sm:$0x1]
        %v1447 = vld [vmem:[%s21 + $0x1] sm:$0x1]
        %v1448 = vsel %vm1195, %v1445, 0.0
        %1449 = vadd.xlane.f32.xlu0 %v1448
        %v1450 = vpop.xlane.xlu0 %1449
        %v1451 = vmul.f32 %v1450, %v1199
        %v1452 = vsub.f32 %v1445, %v1451
        %v1453 = vmul.f32 %v1452, %v1452
        %v1454 = vsel %vm1195, %v1453, 0.0
        %1455 = vadd.xlane.f32.xlu0 %v1454
        %v1456 = vpop.xlane.xlu0 %1455
        %v1457 = vmul.f32 %v1456, %v1199
        %v1458 = vadd.f32 %v1457, 1e-06
        %v1459 = vrsqrt.pop %v1458
        %v1460 = vmul.f32 %v1452, %v1459
        %v1461 = vlaneseq
        %v1462 = vshrl.u32 %v1461, 7
        %v1463 = vsub.s32 0, %v1462
        %v1464 = vrot.slane %v1446, %v1463
        %v1465 = vmul.f32 %v1460, %v1464
        %v1466 = vlaneseq
        %v1467 = vshrl.u32 %v1466, 7
        %v1468 = vsub.s32 0, %v1467
        %v1469 = vrot.slane %v1447, %v1468
        %v1470 = vadd.f32 %v1465, %v1469
        %s1471 = scalar_lea.vmem %s23, 32
        %v1472 = vld [vmem:[%s1471] sm:$0xff]
        %v1473 = vld [vmem:[%s1471 + $0x8] sm:$0xff]
        %v1474 = vld [vmem:[%s1471 + $0x10] sm:$0xff]
        %v1475 = vld [vmem:[%s1471 + $0x18] sm:$0xff]
        %v1476 = vld [vmem:[%s25 + $0x1] sm:$0x1]
        %v1477 = vlaneseq
        %v1478 = vshrl.u32 %v1477, 7
        %v1479 = vsub.s32 0, %v1478
        %v1480 = vrot.slane %v1476, %v1479
        %v1482 = vsel %vm1195, %v1470, 0
        %1484 = vmatprep.subr.mxu0 0.0
        %1485 = vmatpush1.msra.mxu0 %v1472
        %1486 = vmatprep.subr.mxu0 0.0
        %1487 = vmatpush1.msra.mxu0 %v1473
        %1488 = vmatprep.subr.mxu0 0.0
        %1489 = vmatpush1.msra.mxu0 %v1474
        %1490 = vmatprep.subr.mxu0 0.0
        %1491 = vmatpush1.msra.mxu0 %v1475
        %1492 = vmatprep.subr.mxu0 0.0
        %1493 = vmatpush1.msra.mxu0 0.0
        %1494 = vmatprep.subr.mxu0 0.0
        %1495 = vmatpush1.msra.mxu0 0.0
        %1496 = vmatprep.subr.mxu0 0.0
        %1497 = vmatpush1.msra.mxu0 0.0
        %1498 = vmatprep.subr.mxu0 0.0
        %1499 = vmatpush1.msra.mxu0 0.0
        %1500 = vmatprep.subr.mxu0 0.0
        %1501 = vmatpush1.msra.mxu0 0.0
        %1502 = vmatprep.subr.mxu0 0.0
        %1503 = vmatpush1.msra.mxu0 0.0
        %1504 = vmatprep.subr.mxu0 0.0
        %1505 = vmatpush1.msra.mxu0 0.0
        %1506 = vmatprep.subr.mxu0 0.0
        %1507 = vmatpush1.msra.mxu0 0.0
        %1508 = vmatprep.subr.mxu0 0.0
        %1509 = vmatpush1.msra.mxu0 0.0
        %1510 = vmatprep.subr.mxu0 0.0
        %1511 = vmatpush1.msra.mxu0 0.0
        %1512 = vmatprep.subr.mxu0 0.0
        %1513 = vmatpush1.msra.mxu0 0.0
        %1514 = vmatprep.subr.mxu0 0.0
        %1515 = vmatpush1.msra.mxu0 0.0
        %1516 = vmatprep.subr.mxu0 0.0
        %1517 = vmatpush1.msra.mxu0 0.0
        %1518 = vmatprep.subr.mxu0 0.0
        %1519 = vmatpush1.msra.mxu0 0.0
        %1520 = vmatprep.subr.mxu0 0.0
        %1521 = vmatpush1.msra.mxu0 0.0
        %1522 = vmatprep.subr.mxu0 0.0
        %1523 = vmatpush1.msra.mxu0 0.0
        %1524 = vmatprep.subr.mxu0 0.0
        %1525 = vmatpush1.msra.mxu0 0.0
        %1526 = vmatprep.subr.mxu0 0.0
        %1527 = vmatpush1.msra.mxu0 0.0
        %1528 = vmatprep.subr.mxu0 0.0
        %1529 = vmatpush1.msra.mxu0 0.0
        %1530 = vmatprep.subr.mxu0 0.0
        %1531 = vmatpush1.msra.mxu0 0.0
        %1532 = vmatprep.subr.mxu0 0.0
        %1533 = vmatpush1.msra.mxu0 0.0
        %1534 = vmatprep.subr.mxu0 0.0
        %1535 = vmatpush1.msra.mxu0 0.0
        %1536 = vmatprep.subr.mxu0 0.0
        %1537 = vmatpush1.msra.mxu0 0.0
        %1538 = vmatprep.subr.mxu0 0.0
        %1539 = vmatpush1.msra.mxu0 0.0
        %1540 = vmatprep.subr.mxu0 0.0
        %1541 = vmatpush1.msra.mxu0 0.0
        %1542 = vmatprep.subr.mxu0 0.0
        %1543 = vmatpush1.msra.mxu0 0.0
        %1544 = vmatprep.subr.mxu0 0.0
        %1545 = vmatpush1.msra.mxu0 0.0
        %1546 = vmatprep.subr.mxu0 0.0
        %1547 = vmatpush1.msra.mxu0 0.0
        %1548 = vmatprep.mubr.f32.mxu0 0.0
        %1549 = vmatmul.mubr.f32.gmra.mrb[0].mxu0 %v1482
        %v1550 = vpop.f32.mrb[0].mxu0
        %v1551 = vadd.f32 %v1480, %v1550
        %v1552 = vpop.f32.mrb[0].mxu0
        %1553 = vdwg.mxu0
        %v1554 = vmax.f32 %v1551, 0.0
        %s1555 = scalar_lea.vmem %s27, 128
        %v1556 = vld [vmem:[%s1555] sm:$0xff]
        %v1557 = vld [vmem:[%s1555 + $0x8] sm:$0xff]
        %v1558 = vld [vmem:[%s1555 + $0x10] sm:$0xff]
        %v1559 = vld [vmem:[%s1555 + $0x18] sm:$0xff]
        %v1560 = vld [vmem:[%s1555 + $0x20] sm:$0xff]
        %v1561 = vld [vmem:[%s1555 + $0x28] sm:$0xff]
        %v1562 = vld [vmem:[%s1555 + $0x30] sm:$0xff]
        %v1563 = vld [vmem:[%s1555 + $0x38] sm:$0xff]
        %v1564 = vld [vmem:[%s1555 + $0x40] sm:$0xff]
        %v1565 = vld [vmem:[%s1555 + $0x48] sm:$0xff]
        %v1566 = vld [vmem:[%s1555 + $0x50] sm:$0xff]
        %v1567 = vld [vmem:[%s1555 + $0x58] sm:$0xff]
        %v1568 = vld [vmem:[%s1555 + $0x60] sm:$0xff]
        %v1569 = vld [vmem:[%s1555 + $0x68] sm:$0xff]
        %v1570 = vld [vmem:[%s1555 + $0x70] sm:$0xff]
        %v1571 = vld [vmem:[%s1555 + $0x78] sm:$0xff]
        %v1572 = vld [vmem:[%s29 + $0x1] sm:$0x1]
        %v1573 = vlaneseq
        %v1574 = vshrl.u32 %v1573, 7
        %v1575 = vsub.s32 0, %v1574
        %v1576 = vrot.slane %v1572, %v1575
        %1577 = vmatprep.subr.mxu0 0.0
        %1578 = vmatpush1.msra.mxu0 %v1556
        %1579 = vmatprep.subr.mxu0 0.0
        %1580 = vmatpush1.msra.mxu0 %v1557
        %1581 = vmatprep.subr.mxu0 0.0
        %1582 = vmatpush1.msra.mxu0 %v1558
        %1583 = vmatprep.subr.mxu0 0.0
        %1584 = vmatpush1.msra.mxu0 %v1559
        %1585 = vmatprep.subr.mxu0 0.0
        %1586 = vmatpush1.msra.mxu0 %v1560
        %1587 = vmatprep.subr.mxu0 0.0
        %1588 = vmatpush1.msra.mxu0 %v1561
        %1589 = vmatprep.subr.mxu0 0.0
        %1590 = vmatpush1.msra.mxu0 %v1562
        %1591 = vmatprep.subr.mxu0 0.0
        %1592 = vmatpush1.msra.mxu0 %v1563
        %1593 = vmatprep.subr.mxu0 0.0
        %1594 = vmatpush1.msra.mxu0 %v1564
        %1595 = vmatprep.subr.mxu0 0.0
        %1596 = vmatpush1.msra.mxu0 %v1565
        %1597 = vmatprep.subr.mxu0 0.0
        %1598 = vmatpush1.msra.mxu0 %v1566
        %1599 = vmatprep.subr.mxu0 0.0
        %1600 = vmatpush1.msra.mxu0 %v1567
        %1601 = vmatprep.subr.mxu0 0.0
        %1602 = vmatpush1.msra.mxu0 %v1568
        %1603 = vmatprep.subr.mxu0 0.0
        %1604 = vmatpush1.msra.mxu0 %v1569
        %1605 = vmatprep.subr.mxu0 0.0
        %1606 = vmatpush1.msra.mxu0 %v1570
        %1607 = vmatprep.subr.mxu0 0.0
        %1608 = vmatpush1.msra.mxu0 %v1571
        %1609 = vmatprep.subr.mxu0 0.0
        %1610 = vmatpush1.msra.mxu0 0.0
        %1611 = vmatprep.subr.mxu0 0.0
        %1612 = vmatpush1.msra.mxu0 0.0
        %1613 = vmatprep.subr.mxu0 0.0
        %1614 = vmatpush1.msra.mxu0 0.0
        %1615 = vmatprep.subr.mxu0 0.0
        %1616 = vmatpush1.msra.mxu0 0.0
        %1617 = vmatprep.subr.mxu0 0.0
        %1618 = vmatpush1.msra.mxu0 0.0
        %1619 = vmatprep.subr.mxu0 0.0
        %1620 = vmatpush1.msra.mxu0 0.0
        %1621 = vmatprep.subr.mxu0 0.0
        %1622 = vmatpush1.msra.mxu0 0.0
        %1623 = vmatprep.subr.mxu0 0.0
        %1624 = vmatpush1.msra.mxu0 0.0
        %1625 = vmatprep.subr.mxu0 0.0
        %1626 = vmatpush1.msra.mxu0 0.0
        %1627 = vmatprep.subr.mxu0 0.0
        %1628 = vmatpush1.msra.mxu0 0.0
        %1629 = vmatprep.subr.mxu0 0.0
        %1630 = vmatpush1.msra.mxu0 0.0
        %1631 = vmatprep.subr.mxu0 0.0
        %1632 = vmatpush1.msra.mxu0 0.0
        %1633 = vmatprep.subr.mxu0 0.0
        %1634 = vmatpush1.msra.mxu0 0.0
        %1635 = vmatprep.subr.mxu0 0.0
        %1636 = vmatpush1.msra.mxu0 0.0
        %1637 = vmatprep.subr.mxu0 0.0
        %1638 = vmatpush1.msra.mxu0 0.0
        %1639 = vmatprep.subr.mxu0 0.0
        %1640 = vmatpush1.msra.mxu0 0.0
        %1641 = vmatprep.mubr.f32.mxu0 0.0
        %1642 = vmatmul.mubr.f32.gmra.mrb[0].mxu0 %v1554
        %v1643 = vpop.f32.mrb[0].mxu0
        %v1644 = vadd.f32 %v1576, %v1643
        %v1645 = vpop.f32.mrb[0].mxu0
        %1646 = vdwg.mxu0
        %v1647 = vadd.f32 %v1644, %v1445
        %v1648 = vadd.f32 %v1647, %v1647
        %1649 = vst.msk [vmem:[%s1077] sm:$0x1] %vm1185, %v1648
        %1650 = vst.msk [vmem:[%s1083 - $0x1] sm:$0x2] %vm1187, %v1648
        %v1651 = vmul.f32 %v1648, 0.5
        %v1652 = vmul.f32 %v1651, 1.442695
        %v1653 = vpow.pop %v1652
        %v1655 = vrot.slane %v1653, 6
        %v1657 = vmul.f32 %v1100, %v1655
        %v1659 = vrot.slane %v1648, 5
        %v1661 = vadd.f32 %v1657, %v1659
        %v1663 = vrot.slane %v1100, 7
        %v1665 = vadd.f32 %v1661, %v1663
        %v1666 = vlaneseq
        %v1667 = vshrl.u32 %v1666, 7
        %v1668 = vlaneseq
        %v1669 = vand.u32 %v1668, 127
        %vm1670 = vcmp.gt.s32.totalorder %v1669, %v1667
        %v1671 = vld [vmem:[%s31] sm:$0x1]
        %v1672 = vld [vmem:[%s33] sm:$0x1]
        %v1673 = vsel %vm1195, %v1099, 0.0
        %1674 = vadd.xlane.f32.xlu0 %v1673
        %v1675 = vpop.xlane.xlu0 %1674
        %v1676 = vmul.f32 %v1675, %v1199
        %v1677 = vsub.f32 %v1099, %v1676
        %v1678 = vmul.f32 %v1677, %v1677
        %v1679 = vsel %vm1195, %v1678, 0.0
        %1680 = vadd.xlane.f32.xlu0 %v1679
        %v1681 = vpop.xlane.xlu0 %1680
        %v1682 = vmul.f32 %v1681, %v1199
        %v1683 = vadd.f32 %v1682, 1e-06
        %v1684 = vrsqrt.pop %v1683
        %v1685 = vmul.f32 %v1677, %v1684
        %v1686 = vlaneseq
        %v1687 = vshrl.u32 %v1686, 7
        %v1688 = vsub.s32 0, %v1687
        %v1689 = vrot.slane %v1671, %v1688
        %v1690 = vmul.f32 %v1685, %v1689
        %v1691 = vlaneseq
        %v1692 = vshrl.u32 %v1691, 7
        %v1693 = vsub.s32 0, %v1692
        %v1694 = vrot.slane %v1672, %v1693
        %v1695 = vadd.f32 %v1690, %v1694
        %v1696 = vld [vmem:[%s39] sm:$0xff]
        %v1697 = vld [vmem:[%s39 + $0x8] sm:$0xff]
        %v1698 = vld [vmem:[%s39 + $0x10] sm:$0xff]
        %v1699 = vld [vmem:[%s39 + $0x18] sm:$0xff]
        %v1700 = vld [vmem:[%s41] sm:$0x1]
        %v1701 = vlaneseq
        %v1702 = vshrl.u32 %v1701, 7
        %v1703 = vsub.s32 0, %v1702
        %v1704 = vrot.slane %v1700, %v1703
        %v1706 = vsel %vm1195, %v1695, 0
        %1708 = vmatprep.subr.mxu0 0.0
        %1709 = vmatpush1.msra.mxu0 %v1696
        %1710 = vmatprep.subr.mxu0 0.0
        %1711 = vmatpush1.msra.mxu0 %v1697
        %1712 = vmatprep.subr.mxu0 0.0
        %1713 = vmatpush1.msra.mxu0 %v1698
        %1714 = vmatprep.subr.mxu0 0.0
        %1715 = vmatpush1.msra.mxu0 %v1699
        %1716 = vmatprep.subr.mxu0 0.0
        %1717 = vmatpush1.msra.mxu0 0.0
        %1718 = vmatprep.subr.mxu0 0.0
        %1719 = vmatpush1.msra.mxu0 0.0
        %1720 = vmatprep.subr.mxu0 0.0
        %1721 = vmatpush1.msra.mxu0 0.0
        %1722 = vmatprep.subr.mxu0 0.0
        %1723 = vmatpush1.msra.mxu0 0.0
        %1724 = vmatprep.subr.mxu0 0.0
        %1725 = vmatpush1.msra.mxu0 0.0
        %1726 = vmatprep.subr.mxu0 0.0
        %1727 = vmatpush1.msra.mxu0 0.0
        %1728 = vmatprep.subr.mxu0 0.0
        %1729 = vmatpush1.msra.mxu0 0.0
        %1730 = vmatprep.subr.mxu0 0.0
        %1731 = vmatpush1.msra.mxu0 0.0
        %1732 = vmatprep.subr.mxu0 0.0
        %1733 = vmatpush1.msra.mxu0 0.0
        %1734 = vmatprep.subr.mxu0 0.0
        %1735 = vmatpush1.msra.mxu0 0.0
        %1736 = vmatprep.subr.mxu0 0.0
        %1737 = vmatpush1.msra.mxu0 0.0
        %1738 = vmatprep.subr.mxu0 0.0
        %1739 = vmatpush1.msra.mxu0 0.0
        %1740 = vmatprep.subr.mxu0 0.0
        %1741 = vmatpush1.msra.mxu0 0.0
        %1742 = vmatprep.subr.mxu0 0.0
        %1743 = vmatpush1.msra.mxu0 0.0
        %1744 = vmatprep.subr.mxu0 0.0
        %1745 = vmatpush1.msra.mxu0 0.0
        %1746 = vmatprep.subr.mxu0 0.0
        %1747 = vmatpush1.msra.mxu0 0.0
        %1748 = vmatprep.subr.mxu0 0.0
        %1749 = vmatpush1.msra.mxu0 0.0
        %1750 = vmatprep.subr.mxu0 0.0
        %1751 = vmatpush1.msra.mxu0 0.0
        %1752 = vmatprep.subr.mxu0 0.0
        %1753 = vmatpush1.msra.mxu0 0.0
        %1754 = vmatprep.subr.mxu0 0.0
        %1755 = vmatpush1.msra.mxu0 0.0
        %1756 = vmatprep.subr.mxu0 0.0
        %1757 = vmatpush1.msra.mxu0 0.0
        %1758 = vmatprep.subr.mxu0 0.0
        %1759 = vmatpush1.msra.mxu0 0.0
        %1760 = vmatprep.subr.mxu0 0.0
        %1761 = vmatpush1.msra.mxu0 0.0
        %1762 = vmatprep.subr.mxu0 0.0
        %1763 = vmatpush1.msra.mxu0 0.0
        %1764 = vmatprep.subr.mxu0 0.0
        %1765 = vmatpush1.msra.mxu0 0.0
        %1766 = vmatprep.subr.mxu0 0.0
        %1767 = vmatpush1.msra.mxu0 0.0
        %1768 = vmatprep.subr.mxu0 0.0
        %1769 = vmatpush1.msra.mxu0 0.0
        %1770 = vmatprep.subr.mxu0 0.0
        %1771 = vmatpush1.msra.mxu0 0.0
        %1772 = vmatprep.mubr.f32.mxu0 0.0
        %1773 = vmatmul.mubr.f32.gmra.mrb[0].mxu0 %v1706
        %v1774 = vpop.f32.mrb[0].mxu0
        %v1775 = vadd.f32 %v1704, %v1774
        %v1776 = vpop.f32.mrb[0].mxu0
        %1777 = vdwg.mxu0
        %v1778 = vld [vmem:[%s43] sm:$0xff]
        %v1779 = vld [vmem:[%s43 + $0x8] sm:$0xff]
        %v1780 = vld [vmem:[%s43 + $0x10] sm:$0xff]
        %v1781 = vld [vmem:[%s43 + $0x18] sm:$0xff]
        %1783 = vrot.lane.b32.xlu0 %v1775, 96
        %v1784 = vpop.permute.xlu0 %1783
        %vm1785 = vcmask 64512
        %v1786 = vsel %vm1785, %v1775, 0
        %v1788 = vsel %vm1785, %v1784, 0
        %1790 = vmatprep.subr.mxu0 0.0
        %1791 = vmatpush1.xpose.msra.mxu0 %v1788
        %1792 = vmatprep.subr.mxu0 0.0
        %1793 = vmatpush1.xpose.msra.mxu0 0.0
        %1794 = vmatprep.subr.mxu0 0.0
        %1795 = vmatpush1.xpose.msra.mxu0 0.0
        %1796 = vmatprep.subr.mxu0 0.0
        %1797 = vmatpush1.xpose.msra.mxu0 0.0
        %1798 = vmatprep.subr.mxu0 0.0
        %1799 = vmatpush1.xpose.msra.mxu0 0.0
        %1800 = vmatprep.subr.mxu0 0.0
        %1801 = vmatpush1.xpose.msra.mxu0 0.0
        %1802 = vmatprep.subr.mxu0 0.0
        %1803 = vmatpush1.xpose.msra.mxu0 0.0
        %1804 = vmatprep.subr.mxu0 0.0
        %1805 = vmatpush1.xpose.msra.mxu0 0.0
        %1806 = vmatprep.subr.mxu0 0.0
        %1807 = vmatpush1.xpose.msra.mxu0 0.0
        %1808 = vmatprep.subr.mxu0 0.0
        %1809 = vmatpush1.xpose.msra.mxu0 0.0
        %1810 = vmatprep.subr.mxu0 0.0
        %1811 = vmatpush1.xpose.msra.mxu0 0.0
        %1812 = vmatprep.subr.mxu0 0.0
        %1813 = vmatpush1.xpose.msra.mxu0 0.0
        %1814 = vmatprep.subr.mxu0 0.0
        %1815 = vmatpush1.xpose.msra.mxu0 0.0
        %1816 = vmatprep.subr.mxu0 0.0
        %1817 = vmatpush1.xpose.msra.mxu0 0.0
        %1818 = vmatprep.subr.mxu0 0.0
        %1819 = vmatpush1.xpose.msra.mxu0 0.0
        %1820 = vmatprep.subr.mxu0 0.0
        %1821 = vmatpush1.xpose.msra.mxu0 0.0
        %1822 = vmatprep.subr.mxu0 0.0
        %1823 = vmatpush1.xpose.msra.mxu0 0.0
        %1824 = vmatprep.subr.mxu0 0.0
        %1825 = vmatpush1.xpose.msra.mxu0 0.0
        %1826 = vmatprep.subr.mxu0 0.0
        %1827 = vmatpush1.xpose.msra.mxu0 0.0
        %1828 = vmatprep.subr.mxu0 0.0
        %1829 = vmatpush1.xpose.msra.mxu0 0.0
        %1830 = vmatprep.subr.mxu0 0.0
        %1831 = vmatpush1.xpose.msra.mxu0 0.0
        %1832 = vmatprep.subr.mxu0 0.0
        %1833 = vmatpush1.xpose.msra.mxu0 0.0
        %1834 = vmatprep.subr.mxu0 0.0
        %1835 = vmatpush1.xpose.msra.mxu0 0.0
        %1836 = vmatprep.subr.mxu0 0.0
        %1837 = vmatpush1.xpose.msra.mxu0 0.0
        %1838 = vmatprep.subr.mxu0 0.0
        %1839 = vmatpush1.xpose.msra.mxu0 0.0
        %1840 = vmatprep.subr.mxu0 0.0
        %1841 = vmatpush1.xpose.msra.mxu0 0.0
        %1842 = vmatprep.subr.mxu0 0.0
        %1843 = vmatpush1.xpose.msra.mxu0 0.0
        %1844 = vmatprep.subr.mxu0 0.0
        %1845 = vmatpush1.xpose.msra.mxu0 0.0
        %1846 = vmatprep.subr.mxu0 0.0
        %1847 = vmatpush1.xpose.msra.mxu0 0.0
        %1848 = vmatprep.subr.mxu0 0.0
        %1849 = vmatpush1.xpose.msra.mxu0 0.0
        %1850 = vmatprep.subr.mxu0 0.0
        %1851 = vmatpush1.xpose.msra.mxu0 0.0
        %1852 = vmatprep.subr.mxu0 0.0
        %1853 = vmatpush1.xpose.msra.mxu0 0.0
        %1854 = vmatprep.mubr.f32.mxu0 0.0
        %1855 = vmatmul.mubr.f32.gmra.mrb[0].mxu0 %v1786
        %v1856 = vpop.f32.mrb[0].mxu0
        %v1857 = vadd.f32 0.0, %v1856
        %v1858 = vpop.f32.mrb[0].mxu0
        %1859 = vdwg.mxu0
        %v1860 = vmul.f32 %v1857, 0.35355338
        %v1861 = vsel %vm1670, %v1860, -1e+09
        %v1862 = vsel %vm1785, %v1861, -inf
        %1863 = vmax.xlane.f32.xlu0 %v1862
        %v1864 = vpop.xlane.xlu0 %1863
        %v1865 = vsub.f32 %v1861, %v1864
        %v1866 = vmul.f32 %v1865, 1.442695
        %v1867 = vpow.pop %v1866
        %v1868 = vsel %vm1785, %v1867, 0.0
        %1869 = vadd.xlane.f32.xlu0 %v1868
        %v1870 = vpop.xlane.xlu0 %1869
        %v1871 = vrcp.pop %v1870
        %v1872 = vmul.f32 %v1867, %v1871
        %1873 = vrot.lane.b32.xlu0 %v1775, 64
        %v1874 = vpop.permute.xlu0 %1873
        %v1877 = vsel %vm1785, %v1872, 0
        %1879 = vmatprep.subr.mxu0 0.0
        %1880 = vmatpush1.msra.mxu0 %v1874
        %1881 = vmatprep.subr.mxu0 0.0
        %1882 = vmatpush1.msra.mxu0 0.0
        %1883 = vmatprep.subr.mxu0 0.0
        %1884 = vmatpush1.msra.mxu0 0.0
        %1885 = vmatprep.subr.mxu0 0.0
        %1886 = vmatpush1.msra.mxu0 0.0
        %1887 = vmatprep.subr.mxu0 0.0
        %1888 = vmatpush1.msra.mxu0 0.0
        %1889 = vmatprep.subr.mxu0 0.0
        %1890 = vmatpush1.msra.mxu0 0.0
        %1891 = vmatprep.subr.mxu0 0.0
        %1892 = vmatpush1.msra.mxu0 0.0
        %1893 = vmatprep.subr.mxu0 0.0
        %1894 = vmatpush1.msra.mxu0 0.0
        %1895 = vmatprep.subr.mxu0 0.0
        %1896 = vmatpush1.msra.mxu0 0.0
        %1897 = vmatprep.subr.mxu0 0.0
        %1898 = vmatpush1.msra.mxu0 0.0
        %1899 = vmatprep.subr.mxu0 0.0
        %1900 = vmatpush1.msra.mxu0 0.0
        %1901 = vmatprep.subr.mxu0 0.0
        %1902 = vmatpush1.msra.mxu0 0.0
        %1903 = vmatprep.subr.mxu0 0.0
        %1904 = vmatpush1.msra.mxu0 0.0
        %1905 = vmatprep.subr.mxu0 0.0
        %1906 = vmatpush1.msra.mxu0 0.0
        %1907 = vmatprep.subr.mxu0 0.0
        %1908 = vmatpush1.msra.mxu0 0.0
        %1909 = vmatprep.subr.mxu0 0.0
        %1910 = vmatpush1.msra.mxu0 0.0
        %1911 = vmatprep.subr.mxu0 0.0
        %1912 = vmatpush1.msra.mxu0 0.0
        %1913 = vmatprep.subr.mxu0 0.0
        %1914 = vmatpush1.msra.mxu0 0.0
        %1915 = vmatprep.subr.mxu0 0.0
        %1916 = vmatpush1.msra.mxu0 0.0
        %1917 = vmatprep.subr.mxu0 0.0
        %1918 = vmatpush1.msra.mxu0 0.0
        %1919 = vmatprep.subr.mxu0 0.0
        %1920 = vmatpush1.msra.mxu0 0.0
        %1921 = vmatprep.subr.mxu0 0.0
        %1922 = vmatpush1.msra.mxu0 0.0
        %1923 = vmatprep.subr.mxu0 0.0
        %1924 = vmatpush1.msra.mxu0 0.0
        %1925 = vmatprep.subr.mxu0 0.0
        %1926 = vmatpush1.msra.mxu0 0.0
        %1927 = vmatprep.subr.mxu0 0.0
        %1928 = vmatpush1.msra.mxu0 0.0
        %1929 = vmatprep.subr.mxu0 0.0
        %1930 = vmatpush1.msra.mxu0 0.0
        %1931 = vmatprep.subr.mxu0 0.0
        %1932 = vmatpush1.msra.mxu0 0.0
        %1933 = vmatprep.subr.mxu0 0.0
        %1934 = vmatpush1.msra.mxu0 0.0
        %1935 = vmatprep.subr.mxu0 0.0
        %1936 = vmatpush1.msra.mxu0 0.0
        %1937 = vmatprep.subr.mxu0 0.0
        %1938 = vmatpush1.msra.mxu0 0.0
        %1939 = vmatprep.subr.mxu0 0.0
        %1940 = vmatpush1.msra.mxu0 0.0
        %1941 = vmatprep.subr.mxu0 0.0
        %1942 = vmatpush1.msra.mxu0 0.0
        %1943 = vmatprep.mubr.f32.mxu0 0.0
        %1944 = vmatmul.mubr.f32.gmra.mrb[0].mxu0 %v1877
        %v1945 = vpop.f32.mrb[0].mxu0
        %v1946 = vadd.f32 0.0, %v1945
        %v1947 = vpop.f32.mrb[0].mxu0
        %1948 = vdwg.mxu0
        %1949 = vrot.lane.b32.xlu0 %v1775, 120
        %v1950 = vpop.permute.xlu0 %1949
        %1951 = vrot.lane.b32.xlu0 %v1775, 88
        %v1952 = vpop.permute.xlu0 %1951
        %v1953 = vsel %vm1785, %v1950, 0
        %v1955 = vsel %vm1785, %v1952, 0
        %1957 = vmatprep.subr.mxu0 0.0
        %1958 = vmatpush1.xpose.msra.mxu0 %v1955
        %1959 = vmatprep.subr.mxu0 0.0
        %1960 = vmatpush1.xpose.msra.mxu0 0.0
        %1961 = vmatprep.subr.mxu0 0.0
        %1962 = vmatpush1.xpose.msra.mxu0 0.0
        %1963 = vmatprep.subr.mxu0 0.0
        %1964 = vmatpush1.xpose.msra.mxu0 0.0
        %1965 = vmatprep.subr.mxu0 0.0
        %1966 = vmatpush1.xpose.msra.mxu0 0.0
        %1967 = vmatprep.subr.mxu0 0.0
        %1968 = vmatpush1.xpose.msra.mxu0 0.0
        %1969 = vmatprep.subr.mxu0 0.0
        %1970 = vmatpush1.xpose.msra.mxu0 0.0
        %1971 = vmatprep.subr.mxu0 0.0
        %1972 = vmatpush1.xpose.msra.mxu0 0.0
        %1973 = vmatprep.subr.mxu0 0.0
        %1974 = vmatpush1.xpose.msra.mxu0 0.0
        %1975 = vmatprep.subr.mxu0 0.0
        %1976 = vmatpush1.xpose.msra.mxu0 0.0
        %1977 = vmatprep.subr.mxu0 0.0
        %1978 = vmatpush1.xpose.msra.mxu0 0.0
        %1979 = vmatprep.subr.mxu0 0.0
        %1980 = vmatpush1.xpose.msra.mxu0 0.0
        %1981 = vmatprep.subr.mxu0 0.0
        %1982 = vmatpush1.xpose.msra.mxu0 0.0
        %1983 = vmatprep.subr.mxu0 0.0
        %1984 = vmatpush1.xpose.msra.mxu0 0.0
        %1985 = vmatprep.subr.mxu0 0.0
        %1986 = vmatpush1.xpose.msra.mxu0 0.0
        %1987 = vmatprep.subr.mxu0 0.0
        %1988 = vmatpush1.xpose.msra.mxu0 0.0
        %1989 = vmatprep.subr.mxu0 0.0
        %1990 = vmatpush1.xpose.msra.mxu0 0.0
        %1991 = vmatprep.subr.mxu0 0.0
        %1992 = vmatpush1.xpose.msra.mxu0 0.0
        %1993 = vmatprep.subr.mxu0 0.0
        %1994 = vmatpush1.xpose.msra.mxu0 0.0
        %1995 = vmatprep.subr.mxu0 0.0
        %1996 = vmatpush1.xpose.msra.mxu0 0.0
        %1997 = vmatprep.subr.mxu0 0.0
        %1998 = vmatpush1.xpose.msra.mxu0 0.0
        %1999 = vmatprep.subr.mxu0 0.0
        %2000 = vmatpush1.xpose.msra.mxu0 0.0
        %2001 = vmatprep.subr.mxu0 0.0
        %2002 = vmatpush1.xpose.msra.mxu0 0.0
        %2003 = vmatprep.subr.mxu0 0.0
        %2004 = vmatpush1.xpose.msra.mxu0 0.0
        %2005 = vmatprep.subr.mxu0 0.0
        %2006 = vmatpush1.xpose.msra.mxu0 0.0
        %2007 = vmatprep.subr.mxu0 0.0
        %2008 = vmatpush1.xpose.msra.mxu0 0.0
        %2009 = vmatprep.subr.mxu0 0.0
        %2010 = vmatpush1.xpose.msra.mxu0 0.0
        %2011 = vmatprep.subr.mxu0 0.0
        %2012 = vmatpush1.xpose.msra.mxu0 0.0
        %2013 = vmatprep.subr.mxu0 0.0
        %2014 = vmatpush1.xpose.msra.mxu0 0.0
        %2015 = vmatprep.subr.mxu0 0.0
        %2016 = vmatpush1.xpose.msra.mxu0 0.0
        %2017 = vmatprep.subr.mxu0 0.0
        %2018 = vmatpush1.xpose.msra.mxu0 0.0
        %2019 = vmatprep.subr.mxu0 0.0
        %2020 = vmatpush1.xpose.msra.mxu0 0.0
        %2021 = vmatprep.mubr.f32.mxu0 0.0
        %2022 = vmatmul.mubr.f32.gmra.mrb[0].mxu0 %v1953
        %v2023 = vpop.f32.mrb[0].mxu0
        %v2024 = vadd.f32 0.0, %v2023
        %v2025 = vpop.f32.mrb[0].mxu0
        %2026 = vdwg.mxu0
        %v2027 = vmul.f32 %v2024, 0.35355338
        %v2028 = vsel %vm1670, %v2027, -1e+09
        %v2029 = vsel %vm1785, %v2028, -inf
        %2030 = vmax.xlane.f32.xlu0 %v2029
        %v2031 = vpop.xlane.xlu0 %2030
        %v2032 = vsub.f32 %v2028, %v2031
        %v2033 = vmul.f32 %v2032, 1.442695
        %v2034 = vpow.pop %v2033
        %v2035 = vsel %vm1785, %v2034, 0.0
        %2036 = vadd.xlane.f32.xlu0 %v2035
        %v2037 = vpop.xlane.xlu0 %2036
        %v2038 = vrcp.pop %v2037
        %v2039 = vmul.f32 %v2034, %v2038
        %2040 = vrot.lane.b32.xlu0 %v1775, 56
        %v2041 = vpop.permute.xlu0 %2040
        %v2044 = vsel %vm1785, %v2039, 0
        %2046 = vmatprep.subr.mxu0 0.0
        %2047 = vmatpush1.msra.mxu0 %v2041
        %2048 = vmatprep.subr.mxu0 0.0
        %2049 = vmatpush1.msra.mxu0 0.0
        %2050 = vmatprep.subr.mxu0 0.0
        %2051 = vmatpush1.msra.mxu0 0.0
        %2052 = vmatprep.subr.mxu0 0.0
        %2053 = vmatpush1.msra.mxu0 0.0
        %2054 = vmatprep.subr.mxu0 0.0
        %2055 = vmatpush1.msra.mxu0 0.0
        %2056 = vmatprep.subr.mxu0 0.0
        %2057 = vmatpush1.msra.mxu0 0.0
        %2058 = vmatprep.subr.mxu0 0.0
        %2059 = vmatpush1.msra.mxu0 0.0
        %2060 = vmatprep.subr.mxu0 0.0
        %2061 = vmatpush1.msra.mxu0 0.0
        %2062 = vmatprep.subr.mxu0 0.0
        %2063 = vmatpush1.msra.mxu0 0.0
        %2064 = vmatprep.subr.mxu0 0.0
        %2065 = vmatpush1.msra.mxu0 0.0
        %2066 = vmatprep.subr.mxu0 0.0
        %2067 = vmatpush1.msra.mxu0 0.0
        %2068 = vmatprep.subr.mxu0 0.0
        %2069 = vmatpush1.msra.mxu0 0.0
        %2070 = vmatprep.subr.mxu0 0.0
        %2071 = vmatpush1.msra.mxu0 0.0
        %2072 = vmatprep.subr.mxu0 0.0
        %2073 = vmatpush1.msra.mxu0 0.0
        %2074 = vmatprep.subr.mxu0 0.0
        %2075 = vmatpush1.msra.mxu0 0.0
        %2076 = vmatprep.subr.mxu0 0.0
        %2077 = vmatpush1.msra.mxu0 0.0
        %2078 = vmatprep.subr.mxu0 0.0
        %2079 = vmatpush1.msra.mxu0 0.0
        %2080 = vmatprep.subr.mxu0 0.0
        %2081 = vmatpush1.msra.mxu0 0.0
        %2082 = vmatprep.subr.mxu0 0.0
        %2083 = vmatpush1.msra.mxu0 0.0
        %2084 = vmatprep.subr.mxu0 0.0
        %2085 = vmatpush1.msra.mxu0 0.0
        %2086 = vmatprep.subr.mxu0 0.0
        %2087 = vmatpush1.msra.mxu0 0.0
        %2088 = vmatprep.subr.mxu0 0.0
        %2089 = vmatpush1.msra.mxu0 0.0
        %2090 = vmatprep.subr.mxu0 0.0
        %2091 = vmatpush1.msra.mxu0 0.0
        %2092 = vmatprep.subr.mxu0 0.0
        %2093 = vmatpush1.msra.mxu0 0.0
        %2094 = vmatprep.subr.mxu0 0.0
        %2095 = vmatpush1.msra.mxu0 0.0
        %2096 = vmatprep.subr.mxu0 0.0
        %2097 = vmatpush1.msra.mxu0 0.0
        %2098 = vmatprep.subr.mxu0 0.0
        %2099 = vmatpush1.msra.mxu0 0.0
        %2100 = vmatprep.subr.mxu0 0.0
        %2101 = vmatpush1.msra.mxu0 0.0
        %2102 = vmatprep.subr.mxu0 0.0
        %2103 = vmatpush1.msra.mxu0 0.0
        %2104 = vmatprep.subr.mxu0 0.0
        %2105 = vmatpush1.msra.mxu0 0.0
        %2106 = vmatprep.subr.mxu0 0.0
        %2107 = vmatpush1.msra.mxu0 0.0
        %2108 = vmatprep.subr.mxu0 0.0
        %2109 = vmatpush1.msra.mxu0 0.0
        %2110 = vmatprep.mubr.f32.mxu0 0.0
        %2111 = vmatmul.mubr.f32.gmra.mrb[0].mxu0 %v2044
        %v2112 = vpop.f32.mrb[0].mxu0
        %v2113 = vadd.f32 0.0, %v2112
        %v2114 = vpop.f32.mrb[0].mxu0
        %2115 = vdwg.mxu0
        %v2117 = vsel %vm1785, %v2113, 0
        %2119 = vmatprep.subr.mxu0 0.0
        %2120 = vmatpush1.msra.mxu0 %v1779
        %2121 = vmatprep.subr.mxu0 0.0
        %2122 = vmatpush1.msra.mxu0 0.0
        %2123 = vmatprep.subr.mxu0 0.0
        %2124 = vmatpush1.msra.mxu0 0.0
        %2125 = vmatprep.subr.mxu0 0.0
        %2126 = vmatpush1.msra.mxu0 0.0
        %2127 = vmatprep.subr.mxu0 0.0
        %2128 = vmatpush1.msra.mxu0 0.0
        %2129 = vmatprep.subr.mxu0 0.0
        %2130 = vmatpush1.msra.mxu0 0.0
        %2131 = vmatprep.subr.mxu0 0.0
        %2132 = vmatpush1.msra.mxu0 0.0
        %2133 = vmatprep.subr.mxu0 0.0
        %2134 = vmatpush1.msra.mxu0 0.0
        %2135 = vmatprep.subr.mxu0 0.0
        %2136 = vmatpush1.msra.mxu0 0.0
        %2137 = vmatprep.subr.mxu0 0.0
        %2138 = vmatpush1.msra.mxu0 0.0
        %2139 = vmatprep.subr.mxu0 0.0
        %2140 = vmatpush1.msra.mxu0 0.0
        %2141 = vmatprep.subr.mxu0 0.0
        %2142 = vmatpush1.msra.mxu0 0.0
        %2143 = vmatprep.subr.mxu0 0.0
        %2144 = vmatpush1.msra.mxu0 0.0
        %2145 = vmatprep.subr.mxu0 0.0
        %2146 = vmatpush1.msra.mxu0 0.0
        %2147 = vmatprep.subr.mxu0 0.0
        %2148 = vmatpush1.msra.mxu0 0.0
        %2149 = vmatprep.subr.mxu0 0.0
        %2150 = vmatpush1.msra.mxu0 0.0
        %2151 = vmatprep.subr.mxu0 0.0
        %2152 = vmatpush1.msra.mxu0 0.0
        %2153 = vmatprep.subr.mxu0 0.0
        %2154 = vmatpush1.msra.mxu0 0.0
        %2155 = vmatprep.subr.mxu0 0.0
        %2156 = vmatpush1.msra.mxu0 0.0
        %2157 = vmatprep.subr.mxu0 0.0
        %2158 = vmatpush1.msra.mxu0 0.0
        %2159 = vmatprep.subr.mxu0 0.0
        %2160 = vmatpush1.msra.mxu0 0.0
        %2161 = vmatprep.subr.mxu0 0.0
        %2162 = vmatpush1.msra.mxu0 0.0
        %2163 = vmatprep.subr.mxu0 0.0
        %2164 = vmatpush1.msra.mxu0 0.0
        %2165 = vmatprep.subr.mxu0 0.0
        %2166 = vmatpush1.msra.mxu0 0.0
        %2167 = vmatprep.subr.mxu0 0.0
        %2168 = vmatpush1.msra.mxu0 0.0
        %2169 = vmatprep.subr.mxu0 0.0
        %2170 = vmatpush1.msra.mxu0 0.0
        %2171 = vmatprep.subr.mxu0 0.0
        %2172 = vmatpush1.msra.mxu0 0.0
        %2173 = vmatprep.subr.mxu0 0.0
        %2174 = vmatpush1.msra.mxu0 0.0
        %2175 = vmatprep.subr.mxu0 0.0
        %2176 = vmatpush1.msra.mxu0 0.0
        %2177 = vmatprep.subr.mxu0 0.0
        %2178 = vmatpush1.msra.mxu0 0.0
        %2179 = vmatprep.subr.mxu0 0.0
        %2180 = vmatpush1.msra.mxu0 0.0
        %2181 = vmatprep.subr.mxu0 0.0
        %2182 = vmatpush1.msra.mxu0 0.0
        %2183 = vmatprep.mubr.f32.mxu0 0.0
        %2184 = vmatmul.mubr.f32.gmra.mrb[0].mxu0 %v2117
        %v2185 = vpop.f32.mrb[0].mxu0
        %v2186 = vadd.f32 0.0, %v2185
        %v2187 = vpop.f32.mrb[0].mxu0
        %2188 = vdwg.mxu0
        %v2190 = vsel %vm1785, %v1946, 0
        %2192 = vmatprep.subr.mxu0 0.0
        %2193 = vmatpush1.msra.mxu0 %v1778
        %2194 = vmatprep.subr.mxu0 0.0
        %2195 = vmatpush1.msra.mxu0 0.0
        %2196 = vmatprep.subr.mxu0 0.0
        %2197 = vmatpush1.msra.mxu0 0.0
        %2198 = vmatprep.subr.mxu0 0.0
        %2199 = vmatpush1.msra.mxu0 0.0
        %2200 = vmatprep.subr.mxu0 0.0
        %2201 = vmatpush1.msra.mxu0 0.0
        %2202 = vmatprep.subr.mxu0 0.0
        %2203 = vmatpush1.msra.mxu0 0.0
        %2204 = vmatprep.subr.mxu0 0.0
        %2205 = vmatpush1.msra.mxu0 0.0
        %2206 = vmatprep.subr.mxu0 0.0
        %2207 = vmatpush1.msra.mxu0 0.0
        %2208 = vmatprep.subr.mxu0 0.0
        %2209 = vmatpush1.msra.mxu0 0.0
        %2210 = vmatprep.subr.mxu0 0.0
        %2211 = vmatpush1.msra.mxu0 0.0
        %2212 = vmatprep.subr.mxu0 0.0
        %2213 = vmatpush1.msra.mxu0 0.0
        %2214 = vmatprep.subr.mxu0 0.0
        %2215 = vmatpush1.msra.mxu0 0.0
        %2216 = vmatprep.subr.mxu0 0.0
        %2217 = vmatpush1.msra.mxu0 0.0
        %2218 = vmatprep.subr.mxu0 0.0
        %2219 = vmatpush1.msra.mxu0 0.0
        %2220 = vmatprep.subr.mxu0 0.0
        %2221 = vmatpush1.msra.mxu0 0.0
        %2222 = vmatprep.subr.mxu0 0.0
        %2223 = vmatpush1.msra.mxu0 0.0
        %2224 = vmatprep.subr.mxu0 0.0
        %2225 = vmatpush1.msra.mxu0 0.0
        %2226 = vmatprep.subr.mxu0 0.0
        %2227 = vmatpush1.msra.mxu0 0.0
        %2228 = vmatprep.subr.mxu0 0.0
        %2229 = vmatpush1.msra.mxu0 0.0
        %2230 = vmatprep.subr.mxu0 0.0
        %2231 = vmatpush1.msra.mxu0 0.0
        %2232 = vmatprep.subr.mxu0 0.0
        %2233 = vmatpush1.msra.mxu0 0.0
        %2234 = vmatprep.subr.mxu0 0.0
        %2235 = vmatpush1.msra.mxu0 0.0
        %2236 = vmatprep.subr.mxu0 0.0
        %2237 = vmatpush1.msra.mxu0 0.0
        %2238 = vmatprep.subr.mxu0 0.0
        %2239 = vmatpush1.msra.mxu0 0.0
        %2240 = vmatprep.subr.mxu0 0.0
        %2241 = vmatpush1.msra.mxu0 0.0
        %2242 = vmatprep.subr.mxu0 0.0
        %2243 = vmatpush1.msra.mxu0 0.0
        %2244 = vmatprep.subr.mxu0 0.0
        %2245 = vmatpush1.msra.mxu0 0.0
        %2246 = vmatprep.subr.mxu0 0.0
        %2247 = vmatpush1.msra.mxu0 0.0
        %2248 = vmatprep.subr.mxu0 0.0
        %2249 = vmatpush1.msra.mxu0 0.0
        %2250 = vmatprep.subr.mxu0 0.0
        %2251 = vmatpush1.msra.mxu0 0.0
        %2252 = vmatprep.subr.mxu0 0.0
        %2253 = vmatpush1.msra.mxu0 0.0
        %2254 = vmatprep.subr.mxu0 0.0
        %2255 = vmatpush1.msra.mxu0 0.0
        %2256 = vmatprep.mubr.f32.mxu0 0.0
        %2257 = vmatmul.mubr.f32.gmra.mrb[0].mxu0 %v2190
        %v2258 = vpop.f32.mrb[0].mxu0
        %v2259 = vadd.f32 %v2186, %v2258
        %v2260 = vpop.f32.mrb[0].mxu0
        %2261 = vdwg.mxu0
        %2262 = vrot.lane.b32.xlu0 %v1775, 112
        %v2263 = vpop.permute.xlu0 %2262
        %2264 = vrot.lane.b32.xlu0 %v1775, 80
        %v2265 = vpop.permute.xlu0 %2264
        %v2266 = vsel %vm1785, %v2263, 0
        %v2268 = vsel %vm1785, %v2265, 0
        %2270 = vmatprep.subr.mxu0 0.0
        %2271 = vmatpush1.xpose.msra.mxu0 %v2268
        %2272 = vmatprep.subr.mxu0 0.0
        %2273 = vmatpush1.xpose.msra.mxu0 0.0
        %2274 = vmatprep.subr.mxu0 0.0
        %2275 = vmatpush1.xpose.msra.mxu0 0.0
        %2276 = vmatprep.subr.mxu0 0.0
        %2277 = vmatpush1.xpose.msra.mxu0 0.0
        %2278 = vmatprep.subr.mxu0 0.0
        %2279 = vmatpush1.xpose.msra.mxu0 0.0
        %2280 = vmatprep.subr.mxu0 0.0
        %2281 = vmatpush1.xpose.msra.mxu0 0.0
        %2282 = vmatprep.subr.mxu0 0.0
        %2283 = vmatpush1.xpose.msra.mxu0 0.0
        %2284 = vmatprep.subr.mxu0 0.0
        %2285 = vmatpush1.xpose.msra.mxu0 0.0
        %2286 = vmatprep.subr.mxu0 0.0
        %2287 = vmatpush1.xpose.msra.mxu0 0.0
        %2288 = vmatprep.subr.mxu0 0.0
        %2289 = vmatpush1.xpose.msra.mxu0 0.0
        %2290 = vmatprep.subr.mxu0 0.0
        %2291 = vmatpush1.xpose.msra.mxu0 0.0
        %2292 = vmatprep.subr.mxu0 0.0
        %2293 = vmatpush1.xpose.msra.mxu0 0.0
        %2294 = vmatprep.subr.mxu0 0.0
        %2295 = vmatpush1.xpose.msra.mxu0 0.0
        %2296 = vmatprep.subr.mxu0 0.0
        %2297 = vmatpush1.xpose.msra.mxu0 0.0
        %2298 = vmatprep.subr.mxu0 0.0
        %2299 = vmatpush1.xpose.msra.mxu0 0.0
        %2300 = vmatprep.subr.mxu0 0.0
        %2301 = vmatpush1.xpose.msra.mxu0 0.0
        %2302 = vmatprep.subr.mxu0 0.0
        %2303 = vmatpush1.xpose.msra.mxu0 0.0
        %2304 = vmatprep.subr.mxu0 0.0
        %2305 = vmatpush1.xpose.msra.mxu0 0.0
        %2306 = vmatprep.subr.mxu0 0.0
        %2307 = vmatpush1.xpose.msra.mxu0 0.0
        %2308 = vmatprep.subr.mxu0 0.0
        %2309 = vmatpush1.xpose.msra.mxu0 0.0
        %2310 = vmatprep.subr.mxu0 0.0
        %2311 = vmatpush1.xpose.msra.mxu0 0.0
        %2312 = vmatprep.subr.mxu0 0.0
        %2313 = vmatpush1.xpose.msra.mxu0 0.0
        %2314 = vmatprep.subr.mxu0 0.0
        %2315 = vmatpush1.xpose.msra.mxu0 0.0
        %2316 = vmatprep.subr.mxu0 0.0
        %2317 = vmatpush1.xpose.msra.mxu0 0.0
        %2318 = vmatprep.subr.mxu0 0.0
        %2319 = vmatpush1.xpose.msra.mxu0 0.0
        %2320 = vmatprep.subr.mxu0 0.0
        %2321 = vmatpush1.xpose.msra.mxu0 0.0
        %2322 = vmatprep.subr.mxu0 0.0
        %2323 = vmatpush1.xpose.msra.mxu0 0.0
        %2324 = vmatprep.subr.mxu0 0.0
        %2325 = vmatpush1.xpose.msra.mxu0 0.0
        %2326 = vmatprep.subr.mxu0 0.0
        %2327 = vmatpush1.xpose.msra.mxu0 0.0
        %2328 = vmatprep.subr.mxu0 0.0
        %2329 = vmatpush1.xpose.msra.mxu0 0.0
        %2330 = vmatprep.subr.mxu0 0.0
        %2331 = vmatpush1.xpose.msra.mxu0 0.0
        %2332 = vmatprep.subr.mxu0 0.0
        %2333 = vmatpush1.xpose.msra.mxu0 0.0
        %2334 = vmatprep.mubr.f32.mxu0 0.0
        %2335 = vmatmul.mubr.f32.gmra.mrb[0].mxu0 %v2266
        %v2336 = vpop.f32.mrb[0].mxu0
        %v2337 = vadd.f32 0.0, %v2336
        %v2338 = vpop.f32.mrb[0].mxu0
        %2339 = vdwg.mxu0
        %v2340 = vmul.f32 %v2337, 0.35355338
        %v2341 = vsel %vm1670, %v2340, -1e+09
        %v2342 = vsel %vm1785, %v2341, -inf
        %2343 = vmax.xlane.f32.xlu0 %v2342
        %v2344 = vpop.xlane.xlu0 %2343
        %v2345 = vsub.f32 %v2341, %v2344
        %v2346 = vmul.f32 %v2345, 1.442695
        %v2347 = vpow.pop %v2346
        %v2348 = vsel %vm1785, %v2347, 0.0
        %2349 = vadd.xlane.f32.xlu0 %v2348
        %v2350 = vpop.xlane.xlu0 %2349
        %v2351 = vrcp.pop %v2350
        %v2352 = vmul.f32 %v2347, %v2351
        %2353 = vrot.lane.b32.xlu0 %v1775, 48
        %v2354 = vpop.permute.xlu0 %2353
        %v2357 = vsel %vm1785, %v2352, 0
        %2359 = vmatprep.subr.mxu0 0.0
        %2360 = vmatpush1.msra.mxu0 %v2354
        %2361 = vmatprep.subr.mxu0 0.0
        %2362 = vmatpush1.msra.mxu0 0.0
        %2363 = vmatprep.subr.mxu0 0.0
        %2364 = vmatpush1.msra.mxu0 0.0
        %2365 = vmatprep.subr.mxu0 0.0
        %2366 = vmatpush1.msra.mxu0 0.0
        %2367 = vmatprep.subr.mxu0 0.0
        %2368 = vmatpush1.msra.mxu0 0.0
        %2369 = vmatprep.subr.mxu0 0.0
        %2370 = vmatpush1.msra.mxu0 0.0
        %2371 = vmatprep.subr.mxu0 0.0
        %2372 = vmatpush1.msra.mxu0 0.0
        %2373 = vmatprep.subr.mxu0 0.0
        %2374 = vmatpush1.msra.mxu0 0.0
        %2375 = vmatprep.subr.mxu0 0.0
        %2376 = vmatpush1.msra.mxu0 0.0
        %2377 = vmatprep.subr.mxu0 0.0
        %2378 = vmatpush1.msra.mxu0 0.0
        %2379 = vmatprep.subr.mxu0 0.0
        %2380 = vmatpush1.msra.mxu0 0.0
        %2381 = vmatprep.subr.mxu0 0.0
        %2382 = vmatpush1.msra.mxu0 0.0
        %2383 = vmatprep.subr.mxu0 0.0
        %2384 = vmatpush1.msra.mxu0 0.0
        %2385 = vmatprep.subr.mxu0 0.0
        %2386 = vmatpush1.msra.mxu0 0.0
        %2387 = vmatprep.subr.mxu0 0.0
        %2388 = vmatpush1.msra.mxu0 0.0
        %2389 = vmatprep.subr.mxu0 0.0
        %2390 = vmatpush1.msra.mxu0 0.0
        %2391 = vmatprep.subr.mxu0 0.0
        %2392 = vmatpush1.msra.mxu0 0.0
        %2393 = vmatprep.subr.mxu0 0.0
        %2394 = vmatpush1.msra.mxu0 0.0
        %2395 = vmatprep.subr.mxu0 0.0
        %2396 = vmatpush1.msra.mxu0 0.0
        %2397 = vmatprep.subr.mxu0 0.0
        %2398 = vmatpush1.msra.mxu0 0.0
        %2399 = vmatprep.subr.mxu0 0.0
        %2400 = vmatpush1.msra.mxu0 0.0
        %2401 = vmatprep.subr.mxu0 0.0
        %2402 = vmatpush1.msra.mxu0 0.0
        %2403 = vmatprep.subr.mxu0 0.0
        %2404 = vmatpush1.msra.mxu0 0.0
        %2405 = vmatprep.subr.mxu0 0.0
        %2406 = vmatpush1.msra.mxu0 0.0
        %2407 = vmatprep.subr.mxu0 0.0
        %2408 = vmatpush1.msra.mxu0 0.0
        %2409 = vmatprep.subr.mxu0 0.0
        %2410 = vmatpush1.msra.mxu0 0.0
        %2411 = vmatprep.subr.mxu0 0.0
        %2412 = vmatpush1.msra.mxu0 0.0
        %2413 = vmatprep.subr.mxu0 0.0
        %2414 = vmatpush1.msra.mxu0 0.0
        %2415 = vmatprep.subr.mxu0 0.0
        %2416 = vmatpush1.msra.mxu0 0.0
        %2417 = vmatprep.subr.mxu0 0.0
        %2418 = vmatpush1.msra.mxu0 0.0
        %2419 = vmatprep.subr.mxu0 0.0
        %2420 = vmatpush1.msra.mxu0 0.0
        %2421 = vmatprep.subr.mxu0 0.0
        %2422 = vmatpush1.msra.mxu0 0.0
        %2423 = vmatprep.mubr.f32.mxu0 0.0
        %2424 = vmatmul.mubr.f32.gmra.mrb[0].mxu0 %v2357
        %v2425 = vpop.f32.mrb[0].mxu0
        %v2426 = vadd.f32 0.0, %v2425
        %v2427 = vpop.f32.mrb[0].mxu0
        %2428 = vdwg.mxu0
        %v2430 = vsel %vm1785, %v2426, 0
        %2432 = vmatprep.subr.mxu0 0.0
        %2433 = vmatpush1.msra.mxu0 %v1780
        %2434 = vmatprep.subr.mxu0 0.0
        %2435 = vmatpush1.msra.mxu0 0.0
        %2436 = vmatprep.subr.mxu0 0.0
        %2437 = vmatpush1.msra.mxu0 0.0
        %2438 = vmatprep.subr.mxu0 0.0
        %2439 = vmatpush1.msra.mxu0 0.0
        %2440 = vmatprep.subr.mxu0 0.0
        %2441 = vmatpush1.msra.mxu0 0.0
        %2442 = vmatprep.subr.mxu0 0.0
        %2443 = vmatpush1.msra.mxu0 0.0
        %2444 = vmatprep.subr.mxu0 0.0
        %2445 = vmatpush1.msra.mxu0 0.0
        %2446 = vmatprep.subr.mxu0 0.0
        %2447 = vmatpush1.msra.mxu0 0.0
        %2448 = vmatprep.subr.mxu0 0.0
        %2449 = vmatpush1.msra.mxu0 0.0
        %2450 = vmatprep.subr.mxu0 0.0
        %2451 = vmatpush1.msra.mxu0 0.0
        %2452 = vmatprep.subr.mxu0 0.0
        %2453 = vmatpush1.msra.mxu0 0.0
        %2454 = vmatprep.subr.mxu0 0.0
        %2455 = vmatpush1.msra.mxu0 0.0
        %2456 = vmatprep.subr.mxu0 0.0
        %2457 = vmatpush1.msra.mxu0 0.0
        %2458 = vmatprep.subr.mxu0 0.0
        %2459 = vmatpush1.msra.mxu0 0.0
        %2460 = vmatprep.subr.mxu0 0.0
        %2461 = vmatpush1.msra.mxu0 0.0
        %2462 = vmatprep.subr.mxu0 0.0
        %2463 = vmatpush1.msra.mxu0 0.0
        %2464 = vmatprep.subr.mxu0 0.0
        %2465 = vmatpush1.msra.mxu0 0.0
        %2466 = vmatprep.subr.mxu0 0.0
        %2467 = vmatpush1.msra.mxu0 0.0
        %2468 = vmatprep.subr.mxu0 0.0
        %2469 = vmatpush1.msra.mxu0 0.0
        %2470 = vmatprep.subr.mxu0 0.0
        %2471 = vmatpush1.msra.mxu0 0.0
        %2472 = vmatprep.subr.mxu0 0.0
        %2473 = vmatpush1.msra.mxu0 0.0
        %2474 = vmatprep.subr.mxu0 0.0
        %2475 = vmatpush1.msra.mxu0 0.0
        %2476 = vmatprep.subr.mxu0 0.0
        %2477 = vmatpush1.msra.mxu0 0.0
        %2478 = vmatprep.subr.mxu0 0.0
        %2479 = vmatpush1.msra.mxu0 0.0
        %2480 = vmatprep.subr.mxu0 0.0
        %2481 = vmatpush1.msra.mxu0 0.0
        %2482 = vmatprep.subr.mxu0 0.0
        %2483 = vmatpush1.msra.mxu0 0.0
        %2484 = vmatprep.subr.mxu0 0.0
        %2485 = vmatpush1.msra.mxu0 0.0
        %2486 = vmatprep.subr.mxu0 0.0
        %2487 = vmatpush1.msra.mxu0 0.0
        %2488 = vmatprep.subr.mxu0 0.0
        %2489 = vmatpush1.msra.mxu0 0.0
        %2490 = vmatprep.subr.mxu0 0.0
        %2491 = vmatpush1.msra.mxu0 0.0
        %2492 = vmatprep.subr.mxu0 0.0
        %2493 = vmatpush1.msra.mxu0 0.0
        %2494 = vmatprep.subr.mxu0 0.0
        %2495 = vmatpush1.msra.mxu0 0.0
        %2496 = vmatprep.mubr.f32.mxu0 0.0
        %2497 = vmatmul.mubr.f32.gmra.mrb[0].mxu0 %v2430
        %v2498 = vpop.f32.mrb[0].mxu0
        %v2499 = vadd.f32 0.0, %v2498
        %v2500 = vpop.f32.mrb[0].mxu0
        %2501 = vdwg.mxu0
        %v2502 = vadd.f32 %v2259, %v2499
        %2503 = vrot.lane.b32.xlu0 %v1775, 104
        %v2504 = vpop.permute.xlu0 %2503
        %2505 = vrot.lane.b32.xlu0 %v1775, 72
        %v2506 = vpop.permute.xlu0 %2505
        %v2507 = vsel %vm1785, %v2504, 0
        %v2509 = vsel %vm1785, %v2506, 0
        %2511 = vmatprep.subr.mxu0 0.0
        %2512 = vmatpush1.xpose.msra.mxu0 %v2509
        %2513 = vmatprep.subr.mxu0 0.0
        %2514 = vmatpush1.xpose.msra.mxu0 0.0
        %2515 = vmatprep.subr.mxu0 0.0
        %2516 = vmatpush1.xpose.msra.mxu0 0.0
        %2517 = vmatprep.subr.mxu0 0.0
        %2518 = vmatpush1.xpose.msra.mxu0 0.0
        %2519 = vmatprep.subr.mxu0 0.0
        %2520 = vmatpush1.xpose.msra.mxu0 0.0
        %2521 = vmatprep.subr.mxu0 0.0
        %2522 = vmatpush1.xpose.msra.mxu0 0.0
        %2523 = vmatprep.subr.mxu0 0.0
        %2524 = vmatpush1.xpose.msra.mxu0 0.0
        %2525 = vmatprep.subr.mxu0 0.0
        %2526 = vmatpush1.xpose.msra.mxu0 0.0
        %2527 = vmatprep.subr.mxu0 0.0
        %2528 = vmatpush1.xpose.msra.mxu0 0.0
        %2529 = vmatprep.subr.mxu0 0.0
        %2530 = vmatpush1.xpose.msra.mxu0 0.0
        %2531 = vmatprep.subr.mxu0 0.0
        %2532 = vmatpush1.xpose.msra.mxu0 0.0
        %2533 = vmatprep.subr.mxu0 0.0
        %2534 = vmatpush1.xpose.msra.mxu0 0.0
        %2535 = vmatprep.subr.mxu0 0.0
        %2536 = vmatpush1.xpose.msra.mxu0 0.0
        %2537 = vmatprep.subr.mxu0 0.0
        %2538 = vmatpush1.xpose.msra.mxu0 0.0
        %2539 = vmatprep.subr.mxu0 0.0
        %2540 = vmatpush1.xpose.msra.mxu0 0.0
        %2541 = vmatprep.subr.mxu0 0.0
        %2542 = vmatpush1.xpose.msra.mxu0 0.0
        %2543 = vmatprep.subr.mxu0 0.0
        %2544 = vmatpush1.xpose.msra.mxu0 0.0
        %2545 = vmatprep.subr.mxu0 0.0
        %2546 = vmatpush1.xpose.msra.mxu0 0.0
        %2547 = vmatprep.subr.mxu0 0.0
        %2548 = vmatpush1.xpose.msra.mxu0 0.0
        %2549 = vmatprep.subr.mxu0 0.0
        %2550 = vmatpush1.xpose.msra.mxu0 0.0
        %2551 = vmatprep.subr.mxu0 0.0
        %2552 = vmatpush1.xpose.msra.mxu0 0.0
        %2553 = vmatprep.subr.mxu0 0.0
        %2554 = vmatpush1.xpose.msra.mxu0 0.0
        %2555 = vmatprep.subr.mxu0 0.0
        %2556 = vmatpush1.xpose.msra.mxu0 0.0
        %2557 = vmatprep.subr.mxu0 0.0
        %2558 = vmatpush1.xpose.msra.mxu0 0.0
        %2559 = vmatprep.subr.mxu0 0.0
        %2560 = vmatpush1.xpose.msra.mxu0 0.0
        %2561 = vmatprep.subr.mxu0 0.0
        %2562 = vmatpush1.xpose.msra.mxu0 0.0
        %2563 = vmatprep.subr.mxu0 0.0
        %2564 = vmatpush1.xpose.msra.mxu0 0.0
        %2565 = vmatprep.subr.mxu0 0.0
        %2566 = vmatpush1.xpose.msra.mxu0 0.0
        %2567 = vmatprep.subr.mxu0 0.0
        %2568 = vmatpush1.xpose.msra.mxu0 0.0
        %2569 = vmatprep.subr.mxu0 0.0
        %2570 = vmatpush1.xpose.msra.mxu0 0.0
        %2571 = vmatprep.subr.mxu0 0.0
        %2572 = vmatpush1.xpose.msra.mxu0 0.0
        %2573 = vmatprep.subr.mxu0 0.0
        %2574 = vmatpush1.xpose.msra.mxu0 0.0
        %2575 = vmatprep.mubr.f32.mxu0 0.0
        %2576 = vmatmul.mubr.f32.gmra.mrb[0].mxu0 %v2507
        %v2577 = vpop.f32.mrb[0].mxu0
        %v2578 = vadd.f32 0.0, %v2577
        %v2579 = vpop.f32.mrb[0].mxu0
        %2580 = vdwg.mxu0
        %v2581 = vmul.f32 %v2578, 0.35355338
        %v2582 = vsel %vm1670, %v2581, -1e+09
        %v2583 = vsel %vm1785, %v2582, -inf
        %2584 = vmax.xlane.f32.xlu0 %v2583
        %v2585 = vpop.xlane.xlu0 %2584
        %v2586 = vsub.f32 %v2582, %v2585
        %v2587 = vmul.f32 %v2586, 1.442695
        %v2588 = vpow.pop %v2587
        %v2589 = vsel %vm1785, %v2588, 0.0
        %2590 = vadd.xlane.f32.xlu0 %v2589
        %v2591 = vpop.xlane.xlu0 %2590
        %v2592 = vrcp.pop %v2591
        %v2593 = vmul.f32 %v2588, %v2592
        %2594 = vrot.lane.b32.xlu0 %v1775, 40
        %v2595 = vpop.permute.xlu0 %2594
        %v2598 = vsel %vm1785, %v2593, 0
        %2600 = vmatprep.subr.mxu0 0.0
        %2601 = vmatpush1.msra.mxu0 %v2595
        %2602 = vmatprep.subr.mxu0 0.0
        %2603 = vmatpush1.msra.mxu0 0.0
        %2604 = vmatprep.subr.mxu0 0.0
        %2605 = vmatpush1.msra.mxu0 0.0
        %2606 = vmatprep.subr.mxu0 0.0
        %2607 = vmatpush1.msra.mxu0 0.0
        %2608 = vmatprep.subr.mxu0 0.0
        %2609 = vmatpush1.msra.mxu0 0.0
        %2610 = vmatprep.subr.mxu0 0.0
        %2611 = vmatpush1.msra.mxu0 0.0
        %2612 = vmatprep.subr.mxu0 0.0
        %2613 = vmatpush1.msra.mxu0 0.0
        %2614 = vmatprep.subr.mxu0 0.0
        %2615 = vmatpush1.msra.mxu0 0.0
        %2616 = vmatprep.subr.mxu0 0.0
        %2617 = vmatpush1.msra.mxu0 0.0
        %2618 = vmatprep.subr.mxu0 0.0
        %2619 = vmatpush1.msra.mxu0 0.0
        %2620 = vmatprep.subr.mxu0 0.0
        %2621 = vmatpush1.msra.mxu0 0.0
        %2622 = vmatprep.subr.mxu0 0.0
        %2623 = vmatpush1.msra.mxu0 0.0
        %2624 = vmatprep.subr.mxu0 0.0
        %2625 = vmatpush1.msra.mxu0 0.0
        %2626 = vmatprep.subr.mxu0 0.0
        %2627 = vmatpush1.msra.mxu0 0.0
        %2628 = vmatprep.subr.mxu0 0.0
        %2629 = vmatpush1.msra.mxu0 0.0
        %2630 = vmatprep.subr.mxu0 0.0
        %2631 = vmatpush1.msra.mxu0 0.0
        %2632 = vmatprep.subr.mxu0 0.0
        %2633 = vmatpush1.msra.mxu0 0.0
        %2634 = vmatprep.subr.mxu0 0.0
        %2635 = vmatpush1.msra.mxu0 0.0
        %2636 = vmatprep.subr.mxu0 0.0
        %2637 = vmatpush1.msra.mxu0 0.0
        %2638 = vmatprep.subr.mxu0 0.0
        %2639 = vmatpush1.msra.mxu0 0.0
        %2640 = vmatprep.subr.mxu0 0.0
        %2641 = vmatpush1.msra.mxu0 0.0
        %2642 = vmatprep.subr.mxu0 0.0
        %2643 = vmatpush1.msra.mxu0 0.0
        %2644 = vmatprep.subr.mxu0 0.0
        %2645 = vmatpush1.msra.mxu0 0.0
        %2646 = vmatprep.subr.mxu0 0.0
        %2647 = vmatpush1.msra.mxu0 0.0
        %2648 = vmatprep.subr.mxu0 0.0
        %2649 = vmatpush1.msra.mxu0 0.0
        %2650 = vmatprep.subr.mxu0 0.0
        %2651 = vmatpush1.msra.mxu0 0.0
        %2652 = vmatprep.subr.mxu0 0.0
        %2653 = vmatpush1.msra.mxu0 0.0
        %2654 = vmatprep.subr.mxu0 0.0
        %2655 = vmatpush1.msra.mxu0 0.0
        %2656 = vmatprep.subr.mxu0 0.0
        %2657 = vmatpush1.msra.mxu0 0.0
        %2658 = vmatprep.subr.mxu0 0.0
        %2659 = vmatpush1.msra.mxu0 0.0
        %2660 = vmatprep.subr.mxu0 0.0
        %2661 = vmatpush1.msra.mxu0 0.0
        %2662 = vmatprep.subr.mxu0 0.0
        %2663 = vmatpush1.msra.mxu0 0.0
        %2664 = vmatprep.mubr.f32.mxu0 0.0
        %2665 = vmatmul.mubr.f32.gmra.mrb[0].mxu0 %v2598
        %v2666 = vpop.f32.mrb[0].mxu0
        %v2667 = vadd.f32 0.0, %v2666
        %v2668 = vpop.f32.mrb[0].mxu0
        %2669 = vdwg.mxu0
        %v2671 = vsel %vm1785, %v2667, 0
        %2673 = vmatprep.subr.mxu0 0.0
        %2674 = vmatpush1.msra.mxu0 %v1781
        %2675 = vmatprep.subr.mxu0 0.0
        %2676 = vmatpush1.msra.mxu0 0.0
        %2677 = vmatprep.subr.mxu0 0.0
        %2678 = vmatpush1.msra.mxu0 0.0
        %2679 = vmatprep.subr.mxu0 0.0
        %2680 = vmatpush1.msra.mxu0 0.0
        %2681 = vmatprep.subr.mxu0 0.0
        %2682 = vmatpush1.msra.mxu0 0.0
        %2683 = vmatprep.subr.mxu0 0.0
        %2684 = vmatpush1.msra.mxu0 0.0
        %2685 = vmatprep.subr.mxu0 0.0
        %2686 = vmatpush1.msra.mxu0 0.0
        %2687 = vmatprep.subr.mxu0 0.0
        %2688 = vmatpush1.msra.mxu0 0.0
        %2689 = vmatprep.subr.mxu0 0.0
        %2690 = vmatpush1.msra.mxu0 0.0
        %2691 = vmatprep.subr.mxu0 0.0
        %2692 = vmatpush1.msra.mxu0 0.0
        %2693 = vmatprep.subr.mxu0 0.0
        %2694 = vmatpush1.msra.mxu0 0.0
        %2695 = vmatprep.subr.mxu0 0.0
        %2696 = vmatpush1.msra.mxu0 0.0
        %2697 = vmatprep.subr.mxu0 0.0
        %2698 = vmatpush1.msra.mxu0 0.0
        %2699 = vmatprep.subr.mxu0 0.0
        %2700 = vmatpush1.msra.mxu0 0.0
        %2701 = vmatprep.subr.mxu0 0.0
        %2702 = vmatpush1.msra.mxu0 0.0
        %2703 = vmatprep.subr.mxu0 0.0
        %2704 = vmatpush1.msra.mxu0 0.0
        %2705 = vmatprep.subr.mxu0 0.0
        %2706 = vmatpush1.msra.mxu0 0.0
        %2707 = vmatprep.subr.mxu0 0.0
        %2708 = vmatpush1.msra.mxu0 0.0
        %2709 = vmatprep.subr.mxu0 0.0
        %2710 = vmatpush1.msra.mxu0 0.0
        %2711 = vmatprep.subr.mxu0 0.0
        %2712 = vmatpush1.msra.mxu0 0.0
        %2713 = vmatprep.subr.mxu0 0.0
        %2714 = vmatpush1.msra.mxu0 0.0
        %2715 = vmatprep.subr.mxu0 0.0
        %2716 = vmatpush1.msra.mxu0 0.0
        %2717 = vmatprep.subr.mxu0 0.0
        %2718 = vmatpush1.msra.mxu0 0.0
        %2719 = vmatprep.subr.mxu0 0.0
        %2720 = vmatpush1.msra.mxu0 0.0
        %2721 = vmatprep.subr.mxu0 0.0
        %2722 = vmatpush1.msra.mxu0 0.0
        %2723 = vmatprep.subr.mxu0 0.0
        %2724 = vmatpush1.msra.mxu0 0.0
        %2725 = vmatprep.subr.mxu0 0.0
        %2726 = vmatpush1.msra.mxu0 0.0
        %2727 = vmatprep.subr.mxu0 0.0
        %2728 = vmatpush1.msra.mxu0 0.0
        %2729 = vmatprep.subr.mxu0 0.0
        %2730 = vmatpush1.msra.mxu0 0.0
        %2731 = vmatprep.subr.mxu0 0.0
        %2732 = vmatpush1.msra.mxu0 0.0
        %2733 = vmatprep.subr.mxu0 0.0
        %2734 = vmatpush1.msra.mxu0 0.0
        %2735 = vmatprep.subr.mxu0 0.0
        %2736 = vmatpush1.msra.mxu0 0.0
        %2737 = vmatprep.mubr.f32.mxu0 0.0
        %2738 = vmatmul.mubr.f32.gmra.mrb[0].mxu0 %v2671
        %v2739 = vpop.f32.mrb[0].mxu0
        %v2740 = vadd.f32 0.0, %v2739
        %v2741 = vpop.f32.mrb[0].mxu0
        %2742 = vdwg.mxu0
        %v2743 = vadd.f32 %v2502, %v2740
        %v2744 = vld [vmem:[%s45] sm:$0x1]
        %v2745 = vlaneseq
        %v2746 = vshrl.u32 %v2745, 7
        %v2747 = vsub.s32 0, %v2746
        %v2748 = vrot.slane %v2744, %v2747
        %v2749 = vadd.f32 %v2743, %v2748
        %v2750 = vadd.f32 %v1695, %v2749
        %v2751 = vld [vmem:[%s35] sm:$0x1]
        %v2752 = vld [vmem:[%s37] sm:$0x1]
        %v2753 = vsel %vm1195, %v2750, 0.0
        %2754 = vadd.xlane.f32.xlu0 %v2753
        %v2755 = vpop.xlane.xlu0 %2754
        %v2756 = vmul.f32 %v2755, %v1199
        %v2757 = vsub.f32 %v2750, %v2756
        %v2758 = vmul.f32 %v2757, %v2757
        %v2759 = vsel %vm1195, %v2758, 0.0
        %2760 = vadd.xlane.f32.xlu0 %v2759
        %v2761 = vpop.xlane.xlu0 %2760
        %v2762 = vmul.f32 %v2761, %v1199
        %v2763 = vadd.f32 %v2762, 1e-06
        %v2764 = vrsqrt.pop %v2763
        %v2765 = vmul.f32 %v2757, %v2764
        %v2766 = vlaneseq
        %v2767 = vshrl.u32 %v2766, 7
        %v2768 = vsub.s32 0, %v2767
        %v2769 = vrot.slane %v2751, %v2768
        %v2770 = vmul.f32 %v2765, %v2769
        %v2771 = vlaneseq
        %v2772 = vshrl.u32 %v2771, 7
        %v2773 = vsub.s32 0, %v2772
        %v2774 = vrot.slane %v2752, %v2773
        %v2775 = vadd.f32 %v2770, %v2774
        %v2776 = vld [vmem:[%s47] sm:$0xff]
        %v2777 = vld [vmem:[%s47 + $0x8] sm:$0xff]
        %v2778 = vld [vmem:[%s47 + $0x10] sm:$0xff]
        %v2779 = vld [vmem:[%s47 + $0x18] sm:$0xff]
        %v2780 = vld [vmem:[%s49] sm:$0x1]
        %v2782 = vrot.slane %v1665, 3
        %v2783 = vsel %vm1195, %v2782, 0
        %2785 = vmatprep.subr.mxu0 0.0
        %2786 = vmatpush1.msra.mxu0 %v2776
        %2787 = vmatprep.subr.mxu0 0.0
        %2788 = vmatpush1.msra.mxu0 %v2777
        %2789 = vmatprep.subr.mxu0 0.0
        %2790 = vmatpush1.msra.mxu0 %v2778
        %2791 = vmatprep.subr.mxu0 0.0
        %2792 = vmatpush1.msra.mxu0 %v2779
        %2793 = vmatprep.subr.mxu0 0.0
        %2794 = vmatpush1.msra.mxu0 0.0
        %2795 = vmatprep.subr.mxu0 0.0
        %2796 = vmatpush1.msra.mxu0 0.0
        %2797 = vmatprep.subr.mxu0 0.0
        %2798 = vmatpush1.msra.mxu0 0.0
        %2799 = vmatprep.subr.mxu0 0.0
        %2800 = vmatpush1.msra.mxu0 0.0
        %2801 = vmatprep.subr.mxu0 0.0
        %2802 = vmatpush1.msra.mxu0 0.0
        %2803 = vmatprep.subr.mxu0 0.0
        %2804 = vmatpush1.msra.mxu0 0.0
        %2805 = vmatprep.subr.mxu0 0.0
        %2806 = vmatpush1.msra.mxu0 0.0
        %2807 = vmatprep.subr.mxu0 0.0
        %2808 = vmatpush1.msra.mxu0 0.0
        %2809 = vmatprep.subr.mxu0 0.0
        %2810 = vmatpush1.msra.mxu0 0.0
        %2811 = vmatprep.subr.mxu0 0.0
        %2812 = vmatpush1.msra.mxu0 0.0
        %2813 = vmatprep.subr.mxu0 0.0
        %2814 = vmatpush1.msra.mxu0 0.0
        %2815 = vmatprep.subr.mxu0 0.0
        %2816 = vmatpush1.msra.mxu0 0.0
        %2817 = vmatprep.subr.mxu0 0.0
        %2818 = vmatpush1.msra.mxu0 0.0
        %2819 = vmatprep.subr.mxu0 0.0
        %2820 = vmatpush1.msra.mxu0 0.0
        %2821 = vmatprep.subr.mxu0 0.0
        %2822 = vmatpush1.msra.mxu0 0.0
        %2823 = vmatprep.subr.mxu0 0.0
        %2824 = vmatpush1.msra.mxu0 0.0
        %2825 = vmatprep.subr.mxu0 0.0
        %2826 = vmatpush1.msra.mxu0 0.0
        %2827 = vmatprep.subr.mxu0 0.0
        %2828 = vmatpush1.msra.mxu0 0.0
        %2829 = vmatprep.subr.mxu0 0.0
        %2830 = vmatpush1.msra.mxu0 0.0
        %2831 = vmatprep.subr.mxu0 0.0
        %2832 = vmatpush1.msra.mxu0 0.0
        %2833 = vmatprep.subr.mxu0 0.0
        %2834 = vmatpush1.msra.mxu0 0.0
        %2835 = vmatprep.subr.mxu0 0.0
        %2836 = vmatpush1.msra.mxu0 0.0
        %2837 = vmatprep.subr.mxu0 0.0
        %2838 = vmatpush1.msra.mxu0 0.0
        %2839 = vmatprep.subr.mxu0 0.0
        %2840 = vmatpush1.msra.mxu0 0.0
        %2841 = vmatprep.subr.mxu0 0.0
        %2842 = vmatpush1.msra.mxu0 0.0
        %2843 = vmatprep.subr.mxu0 0.0
        %2844 = vmatpush1.msra.mxu0 0.0
        %2845 = vmatprep.subr.mxu0 0.0
        %2846 = vmatpush1.msra.mxu0 0.0
        %2847 = vmatprep.subr.mxu0 0.0
        %2848 = vmatpush1.msra.mxu0 0.0
        %2849 = vmatprep.mubr.f32.mxu0 0.0
        %2850 = vmatmul.mubr.f32.gmra.mrb[0].mxu0 %v2783
        %v2851 = vpop.f32.mrb[0].mxu0
        %v2852 = vadd.f32 %v2780, %v2851
        %v2853 = vpop.f32.mrb[0].mxu0
        %2854 = vdwg.mxu0
        %v2855 = vld [vmem:[%s51] sm:$0xff]
        %v2856 = vld [vmem:[%s51 + $0x8] sm:$0xff]
        %v2857 = vld [vmem:[%s51 + $0x10] sm:$0xff]
        %v2858 = vld [vmem:[%s51 + $0x18] sm:$0xff]
        %v2859 = vld [vmem:[%s53] sm:$0x1]
        %v2861 = vsel %vm1195, %v2852, 0
        %2863 = vmatprep.subr.mxu0 0.0
        %2864 = vmatpush1.msra.mxu0 %v2855
        %2865 = vmatprep.subr.mxu0 0.0
        %2866 = vmatpush1.msra.mxu0 %v2856
        %2867 = vmatprep.subr.mxu0 0.0
        %2868 = vmatpush1.msra.mxu0 %v2857
        %2869 = vmatprep.subr.mxu0 0.0
        %2870 = vmatpush1.msra.mxu0 %v2858
        %2871 = vmatprep.subr.mxu0 0.0
        %2872 = vmatpush1.msra.mxu0 0.0
        %2873 = vmatprep.subr.mxu0 0.0
        %2874 = vmatpush1.msra.mxu0 0.0
        %2875 = vmatprep.subr.mxu0 0.0
        %2876 = vmatpush1.msra.mxu0 0.0
        %2877 = vmatprep.subr.mxu0 0.0
        %2878 = vmatpush1.msra.mxu0 0.0
        %2879 = vmatprep.subr.mxu0 0.0
        %2880 = vmatpush1.msra.mxu0 0.0
        %2881 = vmatprep.subr.mxu0 0.0
        %2882 = vmatpush1.msra.mxu0 0.0
        %2883 = vmatprep.subr.mxu0 0.0
        %2884 = vmatpush1.msra.mxu0 0.0
        %2885 = vmatprep.subr.mxu0 0.0
        %2886 = vmatpush1.msra.mxu0 0.0
        %2887 = vmatprep.subr.mxu0 0.0
        %2888 = vmatpush1.msra.mxu0 0.0
        %2889 = vmatprep.subr.mxu0 0.0
        %2890 = vmatpush1.msra.mxu0 0.0
        %2891 = vmatprep.subr.mxu0 0.0
        %2892 = vmatpush1.msra.mxu0 0.0
        %2893 = vmatprep.subr.mxu0 0.0
        %2894 = vmatpush1.msra.mxu0 0.0
        %2895 = vmatprep.subr.mxu0 0.0
        %2896 = vmatpush1.msra.mxu0 0.0
        %2897 = vmatprep.subr.mxu0 0.0
        %2898 = vmatpush1.msra.mxu0 0.0
        %2899 = vmatprep.subr.mxu0 0.0
        %2900 = vmatpush1.msra.mxu0 0.0
        %2901 = vmatprep.subr.mxu0 0.0
        %2902 = vmatpush1.msra.mxu0 0.0
        %2903 = vmatprep.subr.mxu0 0.0
        %2904 = vmatpush1.msra.mxu0 0.0
        %2905 = vmatprep.subr.mxu0 0.0
        %2906 = vmatpush1.msra.mxu0 0.0
        %2907 = vmatprep.subr.mxu0 0.0
        %2908 = vmatpush1.msra.mxu0 0.0
        %2909 = vmatprep.subr.mxu0 0.0
        %2910 = vmatpush1.msra.mxu0 0.0
        %2911 = vmatprep.subr.mxu0 0.0
        %2912 = vmatpush1.msra.mxu0 0.0
        %2913 = vmatprep.subr.mxu0 0.0
        %2914 = vmatpush1.msra.mxu0 0.0
        %2915 = vmatprep.subr.mxu0 0.0
        %2916 = vmatpush1.msra.mxu0 0.0
        %2917 = vmatprep.subr.mxu0 0.0
        %2918 = vmatpush1.msra.mxu0 0.0
        %2919 = vmatprep.subr.mxu0 0.0
        %2920 = vmatpush1.msra.mxu0 0.0
        %2921 = vmatprep.subr.mxu0 0.0
        %2922 = vmatpush1.msra.mxu0 0.0
        %2923 = vmatprep.subr.mxu0 0.0
        %2924 = vmatpush1.msra.mxu0 0.0
        %2925 = vmatprep.subr.mxu0 0.0
        %2926 = vmatpush1.msra.mxu0 0.0
        %2927 = vmatprep.mubr.f32.mxu0 0.0
        %2928 = vmatmul.mubr.f32.gmra.mrb[0].mxu0 %v2861
        %v2929 = vpop.f32.mrb[0].mxu0
        %v2930 = vadd.f32 %v2859, %v2929
        %v2931 = vpop.f32.mrb[0].mxu0
        %2932 = vdwg.mxu0
        %v2933 = vlaneseq
        %v2934 = vshrl.u32 %v2933, 7
        %v2935 = vsub.s32 0, %v2934
        %v2936 = vrot.slane %v2930, %v2935
        %v2937 = vadd.f32 %v2936, %v2775
        %v2938 = vld [vmem:[%s55] sm:$0x1]
        %v2939 = vld [vmem:[%s57] sm:$0x1]
        %v2940 = vsel %vm1195, %v2937, 0.0
        %2941 = vadd.xlane.f32.xlu0 %v2940
        %v2942 = vpop.xlane.xlu0 %2941
        %v2943 = vmul.f32 %v2942, %v1199
        %v2944 = vsub.f32 %v2937, %v2943
        %v2945 = vmul.f32 %v2944, %v2944
        %v2946 = vsel %vm1195, %v2945, 0.0
        %2947 = vadd.xlane.f32.xlu0 %v2946
        %v2948 = vpop.xlane.xlu0 %2947
        %v2949 = vmul.f32 %v2948, %v1199
        %v2950 = vadd.f32 %v2949, 1e-06
        %v2951 = vrsqrt.pop %v2950
        %v2952 = vmul.f32 %v2944, %v2951
        %v2953 = vlaneseq
        %v2954 = vshrl.u32 %v2953, 7
        %v2955 = vsub.s32 0, %v2954
        %v2956 = vrot.slane %v2938, %v2955
        %v2957 = vmul.f32 %v2952, %v2956
        %v2958 = vlaneseq
        %v2959 = vshrl.u32 %v2958, 7
        %v2960 = vsub.s32 0, %v2959
        %v2961 = vrot.slane %v2939, %v2960
        %v2962 = vadd.f32 %v2957, %v2961
        %v2963 = vld [vmem:[%s59] sm:$0xff]
        %v2964 = vld [vmem:[%s59 + $0x8] sm:$0xff]
        %v2965 = vld [vmem:[%s59 + $0x10] sm:$0xff]
        %v2966 = vld [vmem:[%s59 + $0x18] sm:$0xff]
        %v2967 = vld [vmem:[%s61] sm:$0x1]
        %v2968 = vlaneseq
        %v2969 = vshrl.u32 %v2968, 7
        %v2970 = vsub.s32 0, %v2969
        %v2971 = vrot.slane %v2967, %v2970
        %v2973 = vsel %vm1195, %v2962, 0
        %2975 = vmatprep.subr.mxu0 0.0
        %2976 = vmatpush1.msra.mxu0 %v2963
        %2977 = vmatprep.subr.mxu0 0.0
        %2978 = vmatpush1.msra.mxu0 %v2964
        %2979 = vmatprep.subr.mxu0 0.0
        %2980 = vmatpush1.msra.mxu0 %v2965
        %2981 = vmatprep.subr.mxu0 0.0
        %2982 = vmatpush1.msra.mxu0 %v2966
        %2983 = vmatprep.subr.mxu0 0.0
        %2984 = vmatpush1.msra.mxu0 0.0
        %2985 = vmatprep.subr.mxu0 0.0
        %2986 = vmatpush1.msra.mxu0 0.0
        %2987 = vmatprep.subr.mxu0 0.0
        %2988 = vmatpush1.msra.mxu0 0.0
        %2989 = vmatprep.subr.mxu0 0.0
        %2990 = vmatpush1.msra.mxu0 0.0
        %2991 = vmatprep.subr.mxu0 0.0
        %2992 = vmatpush1.msra.mxu0 0.0
        %2993 = vmatprep.subr.mxu0 0.0
        %2994 = vmatpush1.msra.mxu0 0.0
        %2995 = vmatprep.subr.mxu0 0.0
        %2996 = vmatpush1.msra.mxu0 0.0
        %2997 = vmatprep.subr.mxu0 0.0
        %2998 = vmatpush1.msra.mxu0 0.0
        %2999 = vmatprep.subr.mxu0 0.0
        %3000 = vmatpush1.msra.mxu0 0.0
        %3001 = vmatprep.subr.mxu0 0.0
        %3002 = vmatpush1.msra.mxu0 0.0
        %3003 = vmatprep.subr.mxu0 0.0
        %3004 = vmatpush1.msra.mxu0 0.0
        %3005 = vmatprep.subr.mxu0 0.0
        %3006 = vmatpush1.msra.mxu0 0.0
        %3007 = vmatprep.subr.mxu0 0.0
        %3008 = vmatpush1.msra.mxu0 0.0
        %3009 = vmatprep.subr.mxu0 0.0
        %3010 = vmatpush1.msra.mxu0 0.0
        %3011 = vmatprep.subr.mxu0 0.0
        %3012 = vmatpush1.msra.mxu0 0.0
        %3013 = vmatprep.subr.mxu0 0.0
        %3014 = vmatpush1.msra.mxu0 0.0
        %3015 = vmatprep.subr.mxu0 0.0
        %3016 = vmatpush1.msra.mxu0 0.0
        %3017 = vmatprep.subr.mxu0 0.0
        %3018 = vmatpush1.msra.mxu0 0.0
        %3019 = vmatprep.subr.mxu0 0.0
        %3020 = vmatpush1.msra.mxu0 0.0
        %3021 = vmatprep.subr.mxu0 0.0
        %3022 = vmatpush1.msra.mxu0 0.0
        %3023 = vmatprep.subr.mxu0 0.0
        %3024 = vmatpush1.msra.mxu0 0.0
        %3025 = vmatprep.subr.mxu0 0.0
        %3026 = vmatpush1.msra.mxu0 0.0
        %3027 = vmatprep.subr.mxu0 0.0
        %3028 = vmatpush1.msra.mxu0 0.0
        %3029 = vmatprep.subr.mxu0 0.0
        %3030 = vmatpush1.msra.mxu0 0.0
        %3031 = vmatprep.subr.mxu0 0.0
        %3032 = vmatpush1.msra.mxu0 0.0
        %3033 = vmatprep.subr.mxu0 0.0
        %3034 = vmatpush1.msra.mxu0 0.0
        %3035 = vmatprep.subr.mxu0 0.0
        %3036 = vmatpush1.msra.mxu0 0.0
        %3037 = vmatprep.subr.mxu0 0.0
        %3038 = vmatpush1.msra.mxu0 0.0
        %3039 = vmatprep.mubr.f32.mxu0 0.0
        %3040 = vmatmul.mubr.f32.gmra.mrb[0].mxu0 %v2973
        %v3041 = vpop.f32.mrb[0].mxu0
        %v3042 = vadd.f32 %v2971, %v3041
        %v3043 = vpop.f32.mrb[0].mxu0
        %3044 = vdwg.mxu0
        %v3045 = vmax.f32 %v3042, 0.0
        %v3046 = vld [vmem:[%s63] sm:$0xff]
        %v3047 = vld [vmem:[%s63 + $0x8] sm:$0xff]
        %v3048 = vld [vmem:[%s63 + $0x10] sm:$0xff]
        %v3049 = vld [vmem:[%s63 + $0x18] sm:$0xff]
        %v3050 = vld [vmem:[%s63 + $0x20] sm:$0xff]
        %v3051 = vld [vmem:[%s63 + $0x28] sm:$0xff]
        %v3052 = vld [vmem:[%s63 + $0x30] sm:$0xff]
        %v3053 = vld [vmem:[%s63 + $0x38] sm:$0xff]
        %v3054 = vld [vmem:[%s63 + $0x40] sm:$0xff]
        %v3055 = vld [vmem:[%s63 + $0x48] sm:$0xff]
        %v3056 = vld [vmem:[%s63 + $0x50] sm:$0xff]
        %v3057 = vld [vmem:[%s63 + $0x58] sm:$0xff]
        %v3058 = vld [vmem:[%s63 + $0x60] sm:$0xff]
        %v3059 = vld [vmem:[%s63 + $0x68] sm:$0xff]
        %v3060 = vld [vmem:[%s63 + $0x70] sm:$0xff]
        %v3061 = vld [vmem:[%s63 + $0x78] sm:$0xff]
        %v3062 = vld [vmem:[%s65] sm:$0x1]
        %v3063 = vlaneseq
        %v3064 = vshrl.u32 %v3063, 7
        %v3065 = vsub.s32 0, %v3064
        %v3066 = vrot.slane %v3062, %v3065
        %3067 = vmatprep.subr.mxu0 0.0
        %3068 = vmatpush1.msra.mxu0 %v3046
        %3069 = vmatprep.subr.mxu0 0.0
        %3070 = vmatpush1.msra.mxu0 %v3047
        %3071 = vmatprep.subr.mxu0 0.0
        %3072 = vmatpush1.msra.mxu0 %v3048
        %3073 = vmatprep.subr.mxu0 0.0
        %3074 = vmatpush1.msra.mxu0 %v3049
        %3075 = vmatprep.subr.mxu0 0.0
        %3076 = vmatpush1.msra.mxu0 %v3050
        %3077 = vmatprep.subr.mxu0 0.0
        %3078 = vmatpush1.msra.mxu0 %v3051
        %3079 = vmatprep.subr.mxu0 0.0
        %3080 = vmatpush1.msra.mxu0 %v3052
        %3081 = vmatprep.subr.mxu0 0.0
        %3082 = vmatpush1.msra.mxu0 %v3053
        %3083 = vmatprep.subr.mxu0 0.0
        %3084 = vmatpush1.msra.mxu0 %v3054
        %3085 = vmatprep.subr.mxu0 0.0
        %3086 = vmatpush1.msra.mxu0 %v3055
        %3087 = vmatprep.subr.mxu0 0.0
        %3088 = vmatpush1.msra.mxu0 %v3056
        %3089 = vmatprep.subr.mxu0 0.0
        %3090 = vmatpush1.msra.mxu0 %v3057
        %3091 = vmatprep.subr.mxu0 0.0
        %3092 = vmatpush1.msra.mxu0 %v3058
        %3093 = vmatprep.subr.mxu0 0.0
        %3094 = vmatpush1.msra.mxu0 %v3059
        %3095 = vmatprep.subr.mxu0 0.0
        %3096 = vmatpush1.msra.mxu0 %v3060
        %3097 = vmatprep.subr.mxu0 0.0
        %3098 = vmatpush1.msra.mxu0 %v3061
        %3099 = vmatprep.subr.mxu0 0.0
        %3100 = vmatpush1.msra.mxu0 0.0
        %3101 = vmatprep.subr.mxu0 0.0
        %3102 = vmatpush1.msra.mxu0 0.0
        %3103 = vmatprep.subr.mxu0 0.0
        %3104 = vmatpush1.msra.mxu0 0.0
        %3105 = vmatprep.subr.mxu0 0.0
        %3106 = vmatpush1.msra.mxu0 0.0
        %3107 = vmatprep.subr.mxu0 0.0
        %3108 = vmatpush1.msra.mxu0 0.0
        %3109 = vmatprep.subr.mxu0 0.0
        %3110 = vmatpush1.msra.mxu0 0.0
        %3111 = vmatprep.subr.mxu0 0.0
        %3112 = vmatpush1.msra.mxu0 0.0
        %3113 = vmatprep.subr.mxu0 0.0
        %3114 = vmatpush1.msra.mxu0 0.0
        %3115 = vmatprep.subr.mxu0 0.0
        %3116 = vmatpush1.msra.mxu0 0.0
        %3117 = vmatprep.subr.mxu0 0.0
        %3118 = vmatpush1.msra.mxu0 0.0
        %3119 = vmatprep.subr.mxu0 0.0
        %3120 = vmatpush1.msra.mxu0 0.0
        %3121 = vmatprep.subr.mxu0 0.0
        %3122 = vmatpush1.msra.mxu0 0.0
        %3123 = vmatprep.subr.mxu0 0.0
        %3124 = vmatpush1.msra.mxu0 0.0
        %3125 = vmatprep.subr.mxu0 0.0
        %3126 = vmatpush1.msra.mxu0 0.0
        %3127 = vmatprep.subr.mxu0 0.0
        %3128 = vmatpush1.msra.mxu0 0.0
        %3129 = vmatprep.subr.mxu0 0.0
        %3130 = vmatpush1.msra.mxu0 0.0
        %3131 = vmatprep.mubr.f32.mxu0 0.0
        %3132 = vmatmul.mubr.f32.gmra.mrb[0].mxu0 %v3045
        %v3133 = vpop.f32.mrb[0].mxu0
        %v3134 = vadd.f32 %v3066, %v3133
        %v3135 = vpop.f32.mrb[0].mxu0
        %3136 = vdwg.mxu0
        %v3137 = vadd.f32 %v3134, %v2937
        %v3138 = vld [vmem:[%s31 + $0x1] sm:$0x1]
        %v3139 = vld [vmem:[%s33 + $0x1] sm:$0x1]
        %v3140 = vsel %vm1195, %v3137, 0.0
        %3141 = vadd.xlane.f32.xlu0 %v3140
        %v3142 = vpop.xlane.xlu0 %3141
        %v3143 = vmul.f32 %v3142, %v1199
        %v3144 = vsub.f32 %v3137, %v3143
        %v3145 = vmul.f32 %v3144, %v3144
        %v3146 = vsel %vm1195, %v3145, 0.0
        %3147 = vadd.xlane.f32.xlu0 %v3146
        %v3148 = vpop.xlane.xlu0 %3147
        %v3149 = vmul.f32 %v3148, %v1199
        %v3150 = vadd.f32 %v3149, 1e-06
        %v3151 = vrsqrt.pop %v3150
        %v3152 = vmul.f32 %v3144, %v3151
        %v3153 = vlaneseq
        %v3154 = vshrl.u32 %v3153, 7
        %v3155 = vsub.s32 0, %v3154
        %v3156 = vrot.slane %v3138, %v3155
        %v3157 = vmul.f32 %v3152, %v3156
        %v3158 = vlaneseq
        %v3159 = vshrl.u32 %v3158, 7
        %v3160 = vsub.s32 0, %v3159
        %v3161 = vrot.slane %v3139, %v3160
        %v3162 = vadd.f32 %v3157, %v3161
        %s3163 = scalar_lea.vmem %s39, 32
        %v3164 = vld [vmem:[%s3163] sm:$0xff]
        %v3165 = vld [vmem:[%s3163 + $0x8] sm:$0xff]
        %v3166 = vld [vmem:[%s3163 + $0x10] sm:$0xff]
        %v3167 = vld [vmem:[%s3163 + $0x18] sm:$0xff]
        %v3168 = vld [vmem:[%s41 + $0x1] sm:$0x1]
        %v3169 = vlaneseq
        %v3170 = vshrl.u32 %v3169, 7
        %v3171 = vsub.s32 0, %v3170
        %v3172 = vrot.slane %v3168, %v3171
        %v3174 = vsel %vm1195, %v3162, 0
        %3176 = vmatprep.subr.mxu0 0.0
        %3177 = vmatpush1.msra.mxu0 %v3164
        %3178 = vmatprep.subr.mxu0 0.0
        %3179 = vmatpush1.msra.mxu0 %v3165
        %3180 = vmatprep.subr.mxu0 0.0
        %3181 = vmatpush1.msra.mxu0 %v3166
        %3182 = vmatprep.subr.mxu0 0.0
        %3183 = vmatpush1.msra.mxu0 %v3167
        %3184 = vmatprep.subr.mxu0 0.0
        %3185 = vmatpush1.msra.mxu0 0.0
        %3186 = vmatprep.subr.mxu0 0.0
        %3187 = vmatpush1.msra.mxu0 0.0
        %3188 = vmatprep.subr.mxu0 0.0
        %3189 = vmatpush1.msra.mxu0 0.0
        %3190 = vmatprep.subr.mxu0 0.0
        %3191 = vmatpush1.msra.mxu0 0.0
        %3192 = vmatprep.subr.mxu0 0.0
        %3193 = vmatpush1.msra.mxu0 0.0
        %3194 = vmatprep.subr.mxu0 0.0
        %3195 = vmatpush1.msra.mxu0 0.0
        %3196 = vmatprep.subr.mxu0 0.0
        %3197 = vmatpush1.msra.mxu0 0.0
        %3198 = vmatprep.subr.mxu0 0.0
        %3199 = vmatpush1.msra.mxu0 0.0
        %3200 = vmatprep.subr.mxu0 0.0
        %3201 = vmatpush1.msra.mxu0 0.0
        %3202 = vmatprep.subr.mxu0 0.0
        %3203 = vmatpush1.msra.mxu0 0.0
        %3204 = vmatprep.subr.mxu0 0.0
        %3205 = vmatpush1.msra.mxu0 0.0
        %3206 = vmatprep.subr.mxu0 0.0
        %3207 = vmatpush1.msra.mxu0 0.0
        %3208 = vmatprep.subr.mxu0 0.0
        %3209 = vmatpush1.msra.mxu0 0.0
        %3210 = vmatprep.subr.mxu0 0.0
        %3211 = vmatpush1.msra.mxu0 0.0
        %3212 = vmatprep.subr.mxu0 0.0
        %3213 = vmatpush1.msra.mxu0 0.0
        %3214 = vmatprep.subr.mxu0 0.0
        %3215 = vmatpush1.msra.mxu0 0.0
        %3216 = vmatprep.subr.mxu0 0.0
        %3217 = vmatpush1.msra.mxu0 0.0
        %3218 = vmatprep.subr.mxu0 0.0
        %3219 = vmatpush1.msra.mxu0 0.0
        %3220 = vmatprep.subr.mxu0 0.0
        %3221 = vmatpush1.msra.mxu0 0.0
        %3222 = vmatprep.subr.mxu0 0.0
        %3223 = vmatpush1.msra.mxu0 0.0
        %3224 = vmatprep.subr.mxu0 0.0
        %3225 = vmatpush1.msra.mxu0 0.0
        %3226 = vmatprep.subr.mxu0 0.0
        %3227 = vmatpush1.msra.mxu0 0.0
        %3228 = vmatprep.subr.mxu0 0.0
        %3229 = vmatpush1.msra.mxu0 0.0
        %3230 = vmatprep.subr.mxu0 0.0
        %3231 = vmatpush1.msra.mxu0 0.0
        %3232 = vmatprep.subr.mxu0 0.0
        %3233 = vmatpush1.msra.mxu0 0.0
        %3234 = vmatprep.subr.mxu0 0.0
        %3235 = vmatpush1.msra.mxu0 0.0
        %3236 = vmatprep.subr.mxu0 0.0
        %3237 = vmatpush1.msra.mxu0 0.0
        %3238 = vmatprep.subr.mxu0 0.0
        %3239 = vmatpush1.msra.mxu0 0.0
        %3240 = vmatprep.mubr.f32.mxu0 0.0
        %3241 = vmatmul.mubr.f32.gmra.mrb[0].mxu0 %v3174
        %v3242 = vpop.f32.mrb[0].mxu0
        %v3243 = vadd.f32 %v3172, %v3242
        %v3244 = vpop.f32.mrb[0].mxu0
        %3245 = vdwg.mxu0
        %s3246 = scalar_lea.vmem %s43, 32
        %v3247 = vld [vmem:[%s3246] sm:$0xff]
        %v3248 = vld [vmem:[%s3246 + $0x8] sm:$0xff]
        %v3249 = vld [vmem:[%s3246 + $0x10] sm:$0xff]
        %v3250 = vld [vmem:[%s3246 + $0x18] sm:$0xff]
        %3252 = vrot.lane.b32.xlu0 %v3243, 96
        %v3253 = vpop.permute.xlu0 %3252
        %v3254 = vsel %vm1785, %v3243, 0
        %v3256 = vsel %vm1785, %v3253, 0
        %3258 = vmatprep.subr.mxu0 0.0
        %3259 = vmatpush1.xpose.msra.mxu0 %v3256
        %3260 = vmatprep.subr.mxu0 0.0
        %3261 = vmatpush1.xpose.msra.mxu0 0.0
        %3262 = vmatprep.subr.mxu0 0.0
        %3263 = vmatpush1.xpose.msra.mxu0 0.0
        %3264 = vmatprep.subr.mxu0 0.0
        %3265 = vmatpush1.xpose.msra.mxu0 0.0
        %3266 = vmatprep.subr.mxu0 0.0
        %3267 = vmatpush1.xpose.msra.mxu0 0.0
        %3268 = vmatprep.subr.mxu0 0.0
        %3269 = vmatpush1.xpose.msra.mxu0 0.0
        %3270 = vmatprep.subr.mxu0 0.0
        %3271 = vmatpush1.xpose.msra.mxu0 0.0
        %3272 = vmatprep.subr.mxu0 0.0
        %3273 = vmatpush1.xpose.msra.mxu0 0.0
        %3274 = vmatprep.subr.mxu0 0.0
        %3275 = vmatpush1.xpose.msra.mxu0 0.0
        %3276 = vmatprep.subr.mxu0 0.0
        %3277 = vmatpush1.xpose.msra.mxu0 0.0
        %3278 = vmatprep.subr.mxu0 0.0
        %3279 = vmatpush1.xpose.msra.mxu0 0.0
        %3280 = vmatprep.subr.mxu0 0.0
        %3281 = vmatpush1.xpose.msra.mxu0 0.0
        %3282 = vmatprep.subr.mxu0 0.0
        %3283 = vmatpush1.xpose.msra.mxu0 0.0
        %3284 = vmatprep.subr.mxu0 0.0
        %3285 = vmatpush1.xpose.msra.mxu0 0.0
        %3286 = vmatprep.subr.mxu0 0.0
        %3287 = vmatpush1.xpose.msra.mxu0 0.0
        %3288 = vmatprep.subr.mxu0 0.0
        %3289 = vmatpush1.xpose.msra.mxu0 0.0
        %3290 = vmatprep.subr.mxu0 0.0
        %3291 = vmatpush1.xpose.msra.mxu0 0.0
        %3292 = vmatprep.subr.mxu0 0.0
        %3293 = vmatpush1.xpose.msra.mxu0 0.0
        %3294 = vmatprep.subr.mxu0 0.0
        %3295 = vmatpush1.xpose.msra.mxu0 0.0
        %3296 = vmatprep.subr.mxu0 0.0
        %3297 = vmatpush1.xpose.msra.mxu0 0.0
        %3298 = vmatprep.subr.mxu0 0.0
        %3299 = vmatpush1.xpose.msra.mxu0 0.0
        %3300 = vmatprep.subr.mxu0 0.0
        %3301 = vmatpush1.xpose.msra.mxu0 0.0
        %3302 = vmatprep.subr.mxu0 0.0
        %3303 = vmatpush1.xpose.msra.mxu0 0.0
        %3304 = vmatprep.subr.mxu0 0.0
        %3305 = vmatpush1.xpose.msra.mxu0 0.0
        %3306 = vmatprep.subr.mxu0 0.0
        %3307 = vmatpush1.xpose.msra.mxu0 0.0
        %3308 = vmatprep.subr.mxu0 0.0
        %3309 = vmatpush1.xpose.msra.mxu0 0.0
        %3310 = vmatprep.subr.mxu0 0.0
        %3311 = vmatpush1.xpose.msra.mxu0 0.0
        %3312 = vmatprep.subr.mxu0 0.0
        %3313 = vmatpush1.xpose.msra.mxu0 0.0
        %3314 = vmatprep.subr.mxu0 0.0
        %3315 = vmatpush1.xpose.msra.mxu0 0.0
        %3316 = vmatprep.subr.mxu0 0.0
        %3317 = vmatpush1.xpose.msra.mxu0 0.0
        %3318 = vmatprep.subr.mxu0 0.0
        %3319 = vmatpush1.xpose.msra.mxu0 0.0
        %3320 = vmatprep.subr.mxu0 0.0
        %3321 = vmatpush1.xpose.msra.mxu0 0.0
        %3322 = vmatprep.mubr.f32.mxu0 0.0
        %3323 = vmatmul.mubr.f32.gmra.mrb[0].mxu0 %v3254
        %v3324 = vpop.f32.mrb[0].mxu0
        %v3325 = vadd.f32 0.0, %v3324
        %v3326 = vpop.f32.mrb[0].mxu0
        %3327 = vdwg.mxu0
        %v3328 = vmul.f32 %v3325, 0.35355338
        %v3329 = vsel %vm1670, %v3328, -1e+09
        %v3330 = vsel %vm1785, %v3329, -inf
        %3331 = vmax.xlane.f32.xlu0 %v3330
        %v3332 = vpop.xlane.xlu0 %3331
        %v3333 = vsub.f32 %v3329, %v3332
        %v3334 = vmul.f32 %v3333, 1.442695
        %v3335 = vpow.pop %v3334
        %v3336 = vsel %vm1785, %v3335, 0.0
        %3337 = vadd.xlane.f32.xlu0 %v3336
        %v3338 = vpop.xlane.xlu0 %3337
        %v3339 = vrcp.pop %v3338
        %v3340 = vmul.f32 %v3335, %v3339
        %3341 = vrot.lane.b32.xlu0 %v3243, 64
        %v3342 = vpop.permute.xlu0 %3341
        %v3345 = vsel %vm1785, %v3340, 0
        %3347 = vmatprep.subr.mxu0 0.0
        %3348 = vmatpush1.msra.mxu0 %v3342
        %3349 = vmatprep.subr.mxu0 0.0
        %3350 = vmatpush1.msra.mxu0 0.0
        %3351 = vmatprep.subr.mxu0 0.0
        %3352 = vmatpush1.msra.mxu0 0.0
        %3353 = vmatprep.subr.mxu0 0.0
        %3354 = vmatpush1.msra.mxu0 0.0
        %3355 = vmatprep.subr.mxu0 0.0
        %3356 = vmatpush1.msra.mxu0 0.0
        %3357 = vmatprep.subr.mxu0 0.0
        %3358 = vmatpush1.msra.mxu0 0.0
        %3359 = vmatprep.subr.mxu0 0.0
        %3360 = vmatpush1.msra.mxu0 0.0
        %3361 = vmatprep.subr.mxu0 0.0
        %3362 = vmatpush1.msra.mxu0 0.0
        %3363 = vmatprep.subr.mxu0 0.0
        %3364 = vmatpush1.msra.mxu0 0.0
        %3365 = vmatprep.subr.mxu0 0.0
        %3366 = vmatpush1.msra.mxu0 0.0
        %3367 = vmatprep.subr.mxu0 0.0
        %3368 = vmatpush1.msra.mxu0 0.0
        %3369 = vmatprep.subr.mxu0 0.0
        %3370 = vmatpush1.msra.mxu0 0.0
        %3371 = vmatprep.subr.mxu0 0.0
        %3372 = vmatpush1.msra.mxu0 0.0
        %3373 = vmatprep.subr.mxu0 0.0
        %3374 = vmatpush1.msra.mxu0 0.0
        %3375 = vmatprep.subr.mxu0 0.0
        %3376 = vmatpush1.msra.mxu0 0.0
        %3377 = vmatprep.subr.mxu0 0.0
        %3378 = vmatpush1.msra.mxu0 0.0
        %3379 = vmatprep.subr.mxu0 0.0
        %3380 = vmatpush1.msra.mxu0 0.0
        %3381 = vmatprep.subr.mxu0 0.0
        %3382 = vmatpush1.msra.mxu0 0.0
        %3383 = vmatprep.subr.mxu0 0.0
        %3384 = vmatpush1.msra.mxu0 0.0
        %3385 = vmatprep.subr.mxu0 0.0
        %3386 = vmatpush1.msra.mxu0 0.0
        %3387 = vmatprep.subr.mxu0 0.0
        %3388 = vmatpush1.msra.mxu0 0.0
        %3389 = vmatprep.subr.mxu0 0.0
        %3390 = vmatpush1.msra.mxu0 0.0
        %3391 = vmatprep.subr.mxu0 0.0
        %3392 = vmatpush1.msra.mxu0 0.0
        %3393 = vmatprep.subr.mxu0 0.0
        %3394 = vmatpush1.msra.mxu0 0.0
        %3395 = vmatprep.subr.mxu0 0.0
        %3396 = vmatpush1.msra.mxu0 0.0
        %3397 = vmatprep.subr.mxu0 0.0
        %3398 = vmatpush1.msra.mxu0 0.0
        %3399 = vmatprep.subr.mxu0 0.0
        %3400 = vmatpush1.msra.mxu0 0.0
        %3401 = vmatprep.subr.mxu0 0.0
        %3402 = vmatpush1.msra.mxu0 0.0
        %3403 = vmatprep.subr.mxu0 0.0
        %3404 = vmatpush1.msra.mxu0 0.0
        %3405 = vmatprep.subr.mxu0 0.0
        %3406 = vmatpush1.msra.mxu0 0.0
        %3407 = vmatprep.subr.mxu0 0.0
        %3408 = vmatpush1.msra.mxu0 0.0
        %3409 = vmatprep.subr.mxu0 0.0
        %3410 = vmatpush1.msra.mxu0 0.0
        %3411 = vmatprep.mubr.f32.mxu0 0.0
        %3412 = vmatmul.mubr.f32.gmra.mrb[0].mxu0 %v3345
        %v3413 = vpop.f32.mrb[0].mxu0
        %v3414 = vadd.f32 0.0, %v3413
        %v3415 = vpop.f32.mrb[0].mxu0
        %3416 = vdwg.mxu0
        %3417 = vrot.lane.b32.xlu0 %v3243, 120
        %v3418 = vpop.permute.xlu0 %3417
        %3419 = vrot.lane.b32.xlu0 %v3243, 88
        %v3420 = vpop.permute.xlu0 %3419
        %v3421 = vsel %vm1785, %v3418, 0
        %v3423 = vsel %vm1785, %v3420, 0
        %3425 = vmatprep.subr.mxu0 0.0
        %3426 = vmatpush1.xpose.msra.mxu0 %v3423
        %3427 = vmatprep.subr.mxu0 0.0
        %3428 = vmatpush1.xpose.msra.mxu0 0.0
        %3429 = vmatprep.subr.mxu0 0.0
        %3430 = vmatpush1.xpose.msra.mxu0 0.0
        %3431 = vmatprep.subr.mxu0 0.0
        %3432 = vmatpush1.xpose.msra.mxu0 0.0
        %3433 = vmatprep.subr.mxu0 0.0
        %3434 = vmatpush1.xpose.msra.mxu0 0.0
        %3435 = vmatprep.subr.mxu0 0.0
        %3436 = vmatpush1.xpose.msra.mxu0 0.0
        %3437 = vmatprep.subr.mxu0 0.0
        %3438 = vmatpush1.xpose.msra.mxu0 0.0
        %3439 = vmatprep.subr.mxu0 0.0
        %3440 = vmatpush1.xpose.msra.mxu0 0.0
        %3441 = vmatprep.subr.mxu0 0.0
        %3442 = vmatpush1.xpose.msra.mxu0 0.0
        %3443 = vmatprep.subr.mxu0 0.0
        %3444 = vmatpush1.xpose.msra.mxu0 0.0
        %3445 = vmatprep.subr.mxu0 0.0
        %3446 = vmatpush1.xpose.msra.mxu0 0.0
        %3447 = vmatprep.subr.mxu0 0.0
        %3448 = vmatpush1.xpose.msra.mxu0 0.0
        %3449 = vmatprep.subr.mxu0 0.0
        %3450 = vmatpush1.xpose.msra.mxu0 0.0
        %3451 = vmatprep.subr.mxu0 0.0
        %3452 = vmatpush1.xpose.msra.mxu0 0.0
        %3453 = vmatprep.subr.mxu0 0.0
        %3454 = vmatpush1.xpose.msra.mxu0 0.0
        %3455 = vmatprep.subr.mxu0 0.0
        %3456 = vmatpush1.xpose.msra.mxu0 0.0
        %3457 = vmatprep.subr.mxu0 0.0
        %3458 = vmatpush1.xpose.msra.mxu0 0.0
        %3459 = vmatprep.subr.mxu0 0.0
        %3460 = vmatpush1.xpose.msra.mxu0 0.0
        %3461 = vmatprep.subr.mxu0 0.0
        %3462 = vmatpush1.xpose.msra.mxu0 0.0
        %3463 = vmatprep.subr.mxu0 0.0
        %3464 = vmatpush1.xpose.msra.mxu0 0.0
        %3465 = vmatprep.subr.mxu0 0.0
        %3466 = vmatpush1.xpose.msra.mxu0 0.0
        %3467 = vmatprep.subr.mxu0 0.0
        %3468 = vmatpush1.xpose.msra.mxu0 0.0
        %3469 = vmatprep.subr.mxu0 0.0
        %3470 = vmatpush1.xpose.msra.mxu0 0.0
        %3471 = vmatprep.subr.mxu0 0.0
        %3472 = vmatpush1.xpose.msra.mxu0 0.0
        %3473 = vmatprep.subr.mxu0 0.0
        %3474 = vmatpush1.xpose.msra.mxu0 0.0
        %3475 = vmatprep.subr.mxu0 0.0
        %3476 = vmatpush1.xpose.msra.mxu0 0.0
        %3477 = vmatprep.subr.mxu0 0.0
        %3478 = vmatpush1.xpose.msra.mxu0 0.0
        %3479 = vmatprep.subr.mxu0 0.0
        %3480 = vmatpush1.xpose.msra.mxu0 0.0
        %3481 = vmatprep.subr.mxu0 0.0
        %3482 = vmatpush1.xpose.msra.mxu0 0.0
        %3483 = vmatprep.subr.mxu0 0.0
        %3484 = vmatpush1.xpose.msra.mxu0 0.0
        %3485 = vmatprep.subr.mxu0 0.0
        %3486 = vmatpush1.xpose.msra.mxu0 0.0
        %3487 = vmatprep.subr.mxu0 0.0
        %3488 = vmatpush1.xpose.msra.mxu0 0.0
        %3489 = vmatprep.mubr.f32.mxu0 0.0
        %3490 = vmatmul.mubr.f32.gmra.mrb[0].mxu0 %v3421
        %v3491 = vpop.f32.mrb[0].mxu0
        %v3492 = vadd.f32 0.0, %v3491
        %v3493 = vpop.f32.mrb[0].mxu0
        %3494 = vdwg.mxu0
        %v3495 = vmul.f32 %v3492, 0.35355338
        %v3496 = vsel %vm1670, %v3495, -1e+09
        %v3497 = vsel %vm1785, %v3496, -inf
        %3498 = vmax.xlane.f32.xlu0 %v3497
        %v3499 = vpop.xlane.xlu0 %3498
        %v3500 = vsub.f32 %v3496, %v3499
        %v3501 = vmul.f32 %v3500, 1.442695
        %v3502 = vpow.pop %v3501
        %v3503 = vsel %vm1785, %v3502, 0.0
        %3504 = vadd.xlane.f32.xlu0 %v3503
        %v3505 = vpop.xlane.xlu0 %3504
        %v3506 = vrcp.pop %v3505
        %v3507 = vmul.f32 %v3502, %v3506
        %3508 = vrot.lane.b32.xlu0 %v3243, 56
        %v3509 = vpop.permute.xlu0 %3508
        %v3512 = vsel %vm1785, %v3507, 0
        %3514 = vmatprep.subr.mxu0 0.0
        %3515 = vmatpush1.msra.mxu0 %v3509
        %3516 = vmatprep.subr.mxu0 0.0
        %3517 = vmatpush1.msra.mxu0 0.0
        %3518 = vmatprep.subr.mxu0 0.0
        %3519 = vmatpush1.msra.mxu0 0.0
        %3520 = vmatprep.subr.mxu0 0.0
        %3521 = vmatpush1.msra.mxu0 0.0
        %3522 = vmatprep.subr.mxu0 0.0
        %3523 = vmatpush1.msra.mxu0 0.0
        %3524 = vmatprep.subr.mxu0 0.0
        %3525 = vmatpush1.msra.mxu0 0.0
        %3526 = vmatprep.subr.mxu0 0.0
        %3527 = vmatpush1.msra.mxu0 0.0
        %3528 = vmatprep.subr.mxu0 0.0
        %3529 = vmatpush1.msra.mxu0 0.0
        %3530 = vmatprep.subr.mxu0 0.0
        %3531 = vmatpush1.msra.mxu0 0.0
        %3532 = vmatprep.subr.mxu0 0.0
        %3533 = vmatpush1.msra.mxu0 0.0
        %3534 = vmatprep.subr.mxu0 0.0
        %3535 = vmatpush1.msra.mxu0 0.0
        %3536 = vmatprep.subr.mxu0 0.0
        %3537 = vmatpush1.msra.mxu0 0.0
        %3538 = vmatprep.subr.mxu0 0.0
        %3539 = vmatpush1.msra.mxu0 0.0
        %3540 = vmatprep.subr.mxu0 0.0
        %3541 = vmatpush1.msra.mxu0 0.0
        %3542 = vmatprep.subr.mxu0 0.0
        %3543 = vmatpush1.msra.mxu0 0.0
        %3544 = vmatprep.subr.mxu0 0.0
        %3545 = vmatpush1.msra.mxu0 0.0
        %3546 = vmatprep.subr.mxu0 0.0
        %3547 = vmatpush1.msra.mxu0 0.0
        %3548 = vmatprep.subr.mxu0 0.0
        %3549 = vmatpush1.msra.mxu0 0.0
        %3550 = vmatprep.subr.mxu0 0.0
        %3551 = vmatpush1.msra.mxu0 0.0
        %3552 = vmatprep.subr.mxu0 0.0
        %3553 = vmatpush1.msra.mxu0 0.0
        %3554 = vmatprep.subr.mxu0 0.0
        %3555 = vmatpush1.msra.mxu0 0.0
        %3556 = vmatprep.subr.mxu0 0.0
        %3557 = vmatpush1.msra.mxu0 0.0
        %3558 = vmatprep.subr.mxu0 0.0
        %3559 = vmatpush1.msra.mxu0 0.0
        %3560 = vmatprep.subr.mxu0 0.0
        %3561 = vmatpush1.msra.mxu0 0.0
        %3562 = vmatprep.subr.mxu0 0.0
        %3563 = vmatpush1.msra.mxu0 0.0
        %3564 = vmatprep.subr.mxu0 0.0
        %3565 = vmatpush1.msra.mxu0 0.0
        %3566 = vmatprep.subr.mxu0 0.0
        %3567 = vmatpush1.msra.mxu0 0.0
        %3568 = vmatprep.subr.mxu0 0.0
        %3569 = vmatpush1.msra.mxu0 0.0
        %3570 = vmatprep.subr.mxu0 0.0
        %3571 = vmatpush1.msra.mxu0 0.0
        %3572 = vmatprep.subr.mxu0 0.0
        %3573 = vmatpush1.msra.mxu0 0.0
        %3574 = vmatprep.subr.mxu0 0.0
        %3575 = vmatpush1.msra.mxu0 0.0
        %3576 = vmatprep.subr.mxu0 0.0
        %3577 = vmatpush1.msra.mxu0 0.0
        %3578 = vmatprep.mubr.f32.mxu0 0.0
        %3579 = vmatmul.mubr.f32.gmra.mrb[0].mxu0 %v3512
        %v3580 = vpop.f32.mrb[0].mxu0
        %v3581 = vadd.f32 0.0, %v3580
        %v3582 = vpop.f32.mrb[0].mxu0
        %3583 = vdwg.mxu0
        %v3585 = vsel %vm1785, %v3581, 0
        %3587 = vmatprep.subr.mxu0 0.0
        %3588 = vmatpush1.msra.mxu0 %v3248
        %3589 = vmatprep.subr.mxu0 0.0
        %3590 = vmatpush1.msra.mxu0 0.0
        %3591 = vmatprep.subr.mxu0 0.0
        %3592 = vmatpush1.msra.mxu0 0.0
        %3593 = vmatprep.subr.mxu0 0.0
        %3594 = vmatpush1.msra.mxu0 0.0
        %3595 = vmatprep.subr.mxu0 0.0
        %3596 = vmatpush1.msra.mxu0 0.0
        %3597 = vmatprep.subr.mxu0 0.0
        %3598 = vmatpush1.msra.mxu0 0.0
        %3599 = vmatprep.subr.mxu0 0.0
        %3600 = vmatpush1.msra.mxu0 0.0
        %3601 = vmatprep.subr.mxu0 0.0
        %3602 = vmatpush1.msra.mxu0 0.0
        %3603 = vmatprep.subr.mxu0 0.0
        %3604 = vmatpush1.msra.mxu0 0.0
        %3605 = vmatprep.subr.mxu0 0.0
        %3606 = vmatpush1.msra.mxu0 0.0
        %3607 = vmatprep.subr.mxu0 0.0
        %3608 = vmatpush1.msra.mxu0 0.0
        %3609 = vmatprep.subr.mxu0 0.0
        %3610 = vmatpush1.msra.mxu0 0.0
        %3611 = vmatprep.subr.mxu0 0.0
        %3612 = vmatpush1.msra.mxu0 0.0
        %3613 = vmatprep.subr.mxu0 0.0
        %3614 = vmatpush1.msra.mxu0 0.0
        %3615 = vmatprep.subr.mxu0 0.0
        %3616 = vmatpush1.msra.mxu0 0.0
        %3617 = vmatprep.subr.mxu0 0.0
        %3618 = vmatpush1.msra.mxu0 0.0
        %3619 = vmatprep.subr.mxu0 0.0
        %3620 = vmatpush1.msra.mxu0 0.0
        %3621 = vmatprep.subr.mxu0 0.0
        %3622 = vmatpush1.msra.mxu0 0.0
        %3623 = vmatprep.subr.mxu0 0.0
        %3624 = vmatpush1.msra.mxu0 0.0
        %3625 = vmatprep.subr.mxu0 0.0
        %3626 = vmatpush1.msra.mxu0 0.0
        %3627 = vmatprep.subr.mxu0 0.0
        %3628 = vmatpush1.msra.mxu0 0.0
        %3629 = vmatprep.subr.mxu0 0.0
        %3630 = vmatpush1.msra.mxu0 0.0
        %3631 = vmatprep.subr.mxu0 0.0
        %3632 = vmatpush1.msra.mxu0 0.0
        %3633 = vmatprep.subr.mxu0 0.0
        %3634 = vmatpush1.msra.mxu0 0.0
        %3635 = vmatprep.subr.mxu0 0.0
        %3636 = vmatpush1.msra.mxu0 0.0
        %3637 = vmatprep.subr.mxu0 0.0
        %3638 = vmatpush1.msra.mxu0 0.0
        %3639 = vmatprep.subr.mxu0 0.0
        %3640 = vmatpush1.msra.mxu0 0.0
        %3641 = vmatprep.subr.mxu0 0.0
        %3642 = vmatpush1.msra.mxu0 0.0
        %3643 = vmatprep.subr.mxu0 0.0
        %3644 = vmatpush1.msra.mxu0 0.0
        %3645 = vmatprep.subr.mxu0 0.0
        %3646 = vmatpush1.msra.mxu0 0.0
        %3647 = vmatprep.subr.mxu0 0.0
        %3648 = vmatpush1.msra.mxu0 0.0
        %3649 = vmatprep.subr.mxu0 0.0
        %3650 = vmatpush1.msra.mxu0 0.0
        %3651 = vmatprep.mubr.f32.mxu0 0.0
        %3652 = vmatmul.mubr.f32.gmra.mrb[0].mxu0 %v3585
        %v3653 = vpop.f32.mrb[0].mxu0
        %v3654 = vadd.f32 0.0, %v3653
        %v3655 = vpop.f32.mrb[0].mxu0
        %3656 = vdwg.mxu0
        %v3658 = vsel %vm1785, %v3414, 0
        %3660 = vmatprep.subr.mxu0 0.0
        %3661 = vmatpush1.msra.mxu0 %v3247
        %3662 = vmatprep.subr.mxu0 0.0
        %3663 = vmatpush1.msra.mxu0 0.0
        %3664 = vmatprep.subr.mxu0 0.0
        %3665 = vmatpush1.msra.mxu0 0.0
        %3666 = vmatprep.subr.mxu0 0.0
        %3667 = vmatpush1.msra.mxu0 0.0
        %3668 = vmatprep.subr.mxu0 0.0
        %3669 = vmatpush1.msra.mxu0 0.0
        %3670 = vmatprep.subr.mxu0 0.0
        %3671 = vmatpush1.msra.mxu0 0.0
        %3672 = vmatprep.subr.mxu0 0.0
        %3673 = vmatpush1.msra.mxu0 0.0
        %3674 = vmatprep.subr.mxu0 0.0
        %3675 = vmatpush1.msra.mxu0 0.0
        %3676 = vmatprep.subr.mxu0 0.0
        %3677 = vmatpush1.msra.mxu0 0.0
        %3678 = vmatprep.subr.mxu0 0.0
        %3679 = vmatpush1.msra.mxu0 0.0
        %3680 = vmatprep.subr.mxu0 0.0
        %3681 = vmatpush1.msra.mxu0 0.0
        %3682 = vmatprep.subr.mxu0 0.0
        %3683 = vmatpush1.msra.mxu0 0.0
        %3684 = vmatprep.subr.mxu0 0.0
        %3685 = vmatpush1.msra.mxu0 0.0
        %3686 = vmatprep.subr.mxu0 0.0
        %3687 = vmatpush1.msra.mxu0 0.0
        %3688 = vmatprep.subr.mxu0 0.0
        %3689 = vmatpush1.msra.mxu0 0.0
        %3690 = vmatprep.subr.mxu0 0.0
        %3691 = vmatpush1.msra.mxu0 0.0
        %3692 = vmatprep.subr.mxu0 0.0
        %3693 = vmatpush1.msra.mxu0 0.0
        %3694 = vmatprep.subr.mxu0 0.0
        %3695 = vmatpush1.msra.mxu0 0.0
        %3696 = vmatprep.subr.mxu0 0.0
        %3697 = vmatpush1.msra.mxu0 0.0
        %3698 = vmatprep.subr.mxu0 0.0
        %3699 = vmatpush1.msra.mxu0 0.0
        %3700 = vmatprep.subr.mxu0 0.0
        %3701 = vmatpush1.msra.mxu0 0.0
        %3702 = vmatprep.subr.mxu0 0.0
        %3703 = vmatpush1.msra.mxu0 0.0
        %3704 = vmatprep.subr.mxu0 0.0
        %3705 = vmatpush1.msra.mxu0 0.0
        %3706 = vmatprep.subr.mxu0 0.0
        %3707 = vmatpush1.msra.mxu0 0.0
        %3708 = vmatprep.subr.mxu0 0.0
        %3709 = vmatpush1.msra.mxu0 0.0
        %3710 = vmatprep.subr.mxu0 0.0
        %3711 = vmatpush1.msra.mxu0 0.0
        %3712 = vmatprep.subr.mxu0 0.0
        %3713 = vmatpush1.msra.mxu0 0.0
        %3714 = vmatprep.subr.mxu0 0.0
        %3715 = vmatpush1.msra.mxu0 0.0
        %3716 = vmatprep.subr.mxu0 0.0
        %3717 = vmatpush1.msra.mxu0 0.0
        %3718 = vmatprep.subr.mxu0 0.0
        %3719 = vmatpush1.msra.mxu0 0.0
        %3720 = vmatprep.subr.mxu0 0.0
        %3721 = vmatpush1.msra.mxu0 0.0
        %3722 = vmatprep.subr.mxu0 0.0
        %3723 = vmatpush1.msra.mxu0 0.0
        %3724 = vmatprep.mubr.f32.mxu0 0.0
        %3725 = vmatmul.mubr.f32.gmra.mrb[0].mxu0 %v3658
        %v3726 = vpop.f32.mrb[0].mxu0
        %v3727 = vadd.f32 %v3654, %v3726
        %v3728 = vpop.f32.mrb[0].mxu0
        %3729 = vdwg.mxu0
        %3730 = vrot.lane.b32.xlu0 %v3243, 112
        %v3731 = vpop.permute.xlu0 %3730
        %3732 = vrot.lane.b32.xlu0 %v3243, 80
        %v3733 = vpop.permute.xlu0 %3732
        %v3734 = vsel %vm1785, %v3731, 0
        %v3736 = vsel %vm1785, %v3733, 0
        %3738 = vmatprep.subr.mxu0 0.0
        %3739 = vmatpush1.xpose.msra.mxu0 %v3736
        %3740 = vmatprep.subr.mxu0 0.0
        %3741 = vmatpush1.xpose.msra.mxu0 0.0
        %3742 = vmatprep.subr.mxu0 0.0
        %3743 = vmatpush1.xpose.msra.mxu0 0.0
        %3744 = vmatprep.subr.mxu0 0.0
        %3745 = vmatpush1.xpose.msra.mxu0 0.0
        %3746 = vmatprep.subr.mxu0 0.0
        %3747 = vmatpush1.xpose.msra.mxu0 0.0
        %3748 = vmatprep.subr.mxu0 0.0
        %3749 = vmatpush1.xpose.msra.mxu0 0.0
        %3750 = vmatprep.subr.mxu0 0.0
        %3751 = vmatpush1.xpose.msra.mxu0 0.0
        %3752 = vmatprep.subr.mxu0 0.0
        %3753 = vmatpush1.xpose.msra.mxu0 0.0
        %3754 = vmatprep.subr.mxu0 0.0
        %3755 = vmatpush1.xpose.msra.mxu0 0.0
        %3756 = vmatprep.subr.mxu0 0.0
        %3757 = vmatpush1.xpose.msra.mxu0 0.0
        %3758 = vmatprep.subr.mxu0 0.0
        %3759 = vmatpush1.xpose.msra.mxu0 0.0
        %3760 = vmatprep.subr.mxu0 0.0
        %3761 = vmatpush1.xpose.msra.mxu0 0.0
        %3762 = vmatprep.subr.mxu0 0.0
        %3763 = vmatpush1.xpose.msra.mxu0 0.0
        %3764 = vmatprep.subr.mxu0 0.0
        %3765 = vmatpush1.xpose.msra.mxu0 0.0
        %3766 = vmatprep.subr.mxu0 0.0
        %3767 = vmatpush1.xpose.msra.mxu0 0.0
        %3768 = vmatprep.subr.mxu0 0.0
        %3769 = vmatpush1.xpose.msra.mxu0 0.0
        %3770 = vmatprep.subr.mxu0 0.0
        %3771 = vmatpush1.xpose.msra.mxu0 0.0
        %3772 = vmatprep.subr.mxu0 0.0
        %3773 = vmatpush1.xpose.msra.mxu0 0.0
        %3774 = vmatprep.subr.mxu0 0.0
        %3775 = vmatpush1.xpose.msra.mxu0 0.0
        %3776 = vmatprep.subr.mxu0 0.0
        %3777 = vmatpush1.xpose.msra.mxu0 0.0
        %3778 = vmatprep.subr.mxu0 0.0
        %3779 = vmatpush1.xpose.msra.mxu0 0.0
        %3780 = vmatprep.subr.mxu0 0.0
        %3781 = vmatpush1.xpose.msra.mxu0 0.0
        %3782 = vmatprep.subr.mxu0 0.0
        %3783 = vmatpush1.xpose.msra.mxu0 0.0
        %3784 = vmatprep.subr.mxu0 0.0
        %3785 = vmatpush1.xpose.msra.mxu0 0.0
        %3786 = vmatprep.subr.mxu0 0.0
        %3787 = vmatpush1.xpose.msra.mxu0 0.0
        %3788 = vmatprep.subr.mxu0 0.0
        %3789 = vmatpush1.xpose.msra.mxu0 0.0
        %3790 = vmatprep.subr.mxu0 0.0
        %3791 = vmatpush1.xpose.msra.mxu0 0.0
        %3792 = vmatprep.subr.mxu0 0.0
        %3793 = vmatpush1.xpose.msra.mxu0 0.0
        %3794 = vmatprep.subr.mxu0 0.0
        %3795 = vmatpush1.xpose.msra.mxu0 0.0
        %3796 = vmatprep.subr.mxu0 0.0
        %3797 = vmatpush1.xpose.msra.mxu0 0.0
        %3798 = vmatprep.subr.mxu0 0.0
        %3799 = vmatpush1.xpose.msra.mxu0 0.0
        %3800 = vmatprep.subr.mxu0 0.0
        %3801 = vmatpush1.xpose.msra.mxu0 0.0
        %3802 = vmatprep.mubr.f32.mxu0 0.0
        %3803 = vmatmul.mubr.f32.gmra.mrb[0].mxu0 %v3734
        %v3804 = vpop.f32.mrb[0].mxu0
        %v3805 = vadd.f32 0.0, %v3804
        %v3806 = vpop.f32.mrb[0].mxu0
        %3807 = vdwg.mxu0
        %v3808 = vmul.f32 %v3805, 0.35355338
        %v3809 = vsel %vm1670, %v3808, -1e+09
        %v3810 = vsel %vm1785, %v3809, -inf
        %3811 = vmax.xlane.f32.xlu0 %v3810
        %v3812 = vpop.xlane.xlu0 %3811
        %v3813 = vsub.f32 %v3809, %v3812
        %v3814 = vmul.f32 %v3813, 1.442695
        %v3815 = vpow.pop %v3814
        %v3816 = vsel %vm1785, %v3815, 0.0
        %3817 = vadd.xlane.f32.xlu0 %v3816
        %v3818 = vpop.xlane.xlu0 %3817
        %v3819 = vrcp.pop %v3818
        %v3820 = vmul.f32 %v3815, %v3819
        %3821 = vrot.lane.b32.xlu0 %v3243, 48
        %v3822 = vpop.permute.xlu0 %3821
        %v3825 = vsel %vm1785, %v3820, 0
        %3827 = vmatprep.subr.mxu0 0.0
        %3828 = vmatpush1.msra.mxu0 %v3822
        %3829 = vmatprep.subr.mxu0 0.0
        %3830 = vmatpush1.msra.mxu0 0.0
        %3831 = vmatprep.subr.mxu0 0.0
        %3832 = vmatpush1.msra.mxu0 0.0
        %3833 = vmatprep.subr.mxu0 0.0
        %3834 = vmatpush1.msra.mxu0 0.0
        %3835 = vmatprep.subr.mxu0 0.0
        %3836 = vmatpush1.msra.mxu0 0.0
        %3837 = vmatprep.subr.mxu0 0.0
        %3838 = vmatpush1.msra.mxu0 0.0
        %3839 = vmatprep.subr.mxu0 0.0
        %3840 = vmatpush1.msra.mxu0 0.0
        %3841 = vmatprep.subr.mxu0 0.0
        %3842 = vmatpush1.msra.mxu0 0.0
        %3843 = vmatprep.subr.mxu0 0.0
        %3844 = vmatpush1.msra.mxu0 0.0
        %3845 = vmatprep.subr.mxu0 0.0
        %3846 = vmatpush1.msra.mxu0 0.0
        %3847 = vmatprep.subr.mxu0 0.0
        %3848 = vmatpush1.msra.mxu0 0.0
        %3849 = vmatprep.subr.mxu0 0.0
        %3850 = vmatpush1.msra.mxu0 0.0
        %3851 = vmatprep.subr.mxu0 0.0
        %3852 = vmatpush1.msra.mxu0 0.0
        %3853 = vmatprep.subr.mxu0 0.0
        %3854 = vmatpush1.msra.mxu0 0.0
        %3855 = vmatprep.subr.mxu0 0.0
        %3856 = vmatpush1.msra.mxu0 0.0
        %3857 = vmatprep.subr.mxu0 0.0
        %3858 = vmatpush1.msra.mxu0 0.0
        %3859 = vmatprep.subr.mxu0 0.0
        %3860 = vmatpush1.msra.mxu0 0.0
        %3861 = vmatprep.subr.mxu0 0.0
        %3862 = vmatpush1.msra.mxu0 0.0
        %3863 = vmatprep.subr.mxu0 0.0
        %3864 = vmatpush1.msra.mxu0 0.0
        %3865 = vmatprep.subr.mxu0 0.0
        %3866 = vmatpush1.msra.mxu0 0.0
        %3867 = vmatprep.subr.mxu0 0.0
        %3868 = vmatpush1.msra.mxu0 0.0
        %3869 = vmatprep.subr.mxu0 0.0
        %3870 = vmatpush1.msra.mxu0 0.0
        %3871 = vmatprep.subr.mxu0 0.0
        %3872 = vmatpush1.msra.mxu0 0.0
        %3873 = vmatprep.subr.mxu0 0.0
        %3874 = vmatpush1.msra.mxu0 0.0
        %3875 = vmatprep.subr.mxu0 0.0
        %3876 = vmatpush1.msra.mxu0 0.0
        %3877 = vmatprep.subr.mxu0 0.0
        %3878 = vmatpush1.msra.mxu0 0.0
        %3879 = vmatprep.subr.mxu0 0.0
        %3880 = vmatpush1.msra.mxu0 0.0
        %3881 = vmatprep.subr.mxu0 0.0
        %3882 = vmatpush1.msra.mxu0 0.0
        %3883 = vmatprep.subr.mxu0 0.0
        %3884 = vmatpush1.msra.mxu0 0.0
        %3885 = vmatprep.subr.mxu0 0.0
        %3886 = vmatpush1.msra.mxu0 0.0
        %3887 = vmatprep.subr.mxu0 0.0
        %3888 = vmatpush1.msra.mxu0 0.0
        %3889 = vmatprep.subr.mxu0 0.0
        %3890 = vmatpush1.msra.mxu0 0.0
        %3891 = vmatprep.mubr.f32.mxu0 0.0
        %3892 = vmatmul.mubr.f32.gmra.mrb[0].mxu0 %v3825
        %v3893 = vpop.f32.mrb[0].mxu0
        %v3894 = vadd.f32 0.0, %v3893
        %v3895 = vpop.f32.mrb[0].mxu0
        %3896 = vdwg.mxu0
        %v3898 = vsel %vm1785, %v3894, 0
        %3900 = vmatprep.subr.mxu0 0.0
        %3901 = vmatpush1.msra.mxu0 %v3249
        %3902 = vmatprep.subr.mxu0 0.0
        %3903 = vmatpush1.msra.mxu0 0.0
        %3904 = vmatprep.subr.mxu0 0.0
        %3905 = vmatpush1.msra.mxu0 0.0
        %3906 = vmatprep.subr.mxu0 0.0
        %3907 = vmatpush1.msra.mxu0 0.0
        %3908 = vmatprep.subr.mxu0 0.0
        %3909 = vmatpush1.msra.mxu0 0.0
        %3910 = vmatprep.subr.mxu0 0.0
        %3911 = vmatpush1.msra.mxu0 0.0
        %3912 = vmatprep.subr.mxu0 0.0
        %3913 = vmatpush1.msra.mxu0 0.0
        %3914 = vmatprep.subr.mxu0 0.0
        %3915 = vmatpush1.msra.mxu0 0.0
        %3916 = vmatprep.subr.mxu0 0.0
        %3917 = vmatpush1.msra.mxu0 0.0
        %3918 = vmatprep.subr.mxu0 0.0
        %3919 = vmatpush1.msra.mxu0 0.0
        %3920 = vmatprep.subr.mxu0 0.0
        %3921 = vmatpush1.msra.mxu0 0.0
        %3922 = vmatprep.subr.mxu0 0.0
        %3923 = vmatpush1.msra.mxu0 0.0
        %3924 = vmatprep.subr.mxu0 0.0
        %3925 = vmatpush1.msra.mxu0 0.0
        %3926 = vmatprep.subr.mxu0 0.0
        %3927 = vmatpush1.msra.mxu0 0.0
        %3928 = vmatprep.subr.mxu0 0.0
        %3929 = vmatpush1.msra.mxu0 0.0
        %3930 = vmatprep.subr.mxu0 0.0
        %3931 = vmatpush1.msra.mxu0 0.0
        %3932 = vmatprep.subr.mxu0 0.0
        %3933 = vmatpush1.msra.mxu0 0.0
        %3934 = vmatprep.subr.mxu0 0.0
        %3935 = vmatpush1.msra.mxu0 0.0
        %3936 = vmatprep.subr.mxu0 0.0
        %3937 = vmatpush1.msra.mxu0 0.0
        %3938 = vmatprep.subr.mxu0 0.0
        %3939 = vmatpush1.msra.mxu0 0.0
        %3940 = vmatprep.subr.mxu0 0.0
        %3941 = vmatpush1.msra.mxu0 0.0
        %3942 = vmatprep.subr.mxu0 0.0
        %3943 = vmatpush1.msra.mxu0 0.0
        %3944 = vmatprep.subr.mxu0 0.0
        %3945 = vmatpush1.msra.mxu0 0.0
        %3946 = vmatprep.subr.mxu0 0.0
        %3947 = vmatpush1.msra.mxu0 0.0
        %3948 = vmatprep.subr.mxu0 0.0
        %3949 = vmatpush1.msra.mxu0 0.0
        %3950 = vmatprep.subr.mxu0 0.0
        %3951 = vmatpush1.msra.mxu0 0.0
        %3952 = vmatprep.subr.mxu0 0.0
        %3953 = vmatpush1.msra.mxu0 0.0
        %3954 = vmatprep.subr.mxu0 0.0
        %3955 = vmatpush1.msra.mxu0 0.0
        %3956 = vmatprep.subr.mxu0 0.0
        %3957 = vmatpush1.msra.mxu0 0.0
        %3958 = vmatprep.subr.mxu0 0.0
        %3959 = vmatpush1.msra.mxu0 0.0
        %3960 = vmatprep.subr.mxu0 0.0
        %3961 = vmatpush1.msra.mxu0 0.0
        %3962 = vmatprep.subr.mxu0 0.0
        %3963 = vmatpush1.msra.mxu0 0.0
        %3964 = vmatprep.mubr.f32.mxu0 0.0
        %3965 = vmatmul.mubr.f32.gmra.mrb[0].mxu0 %v3898
        %v3966 = vpop.f32.mrb[0].mxu0
        %v3967 = vadd.f32 0.0, %v3966
        %v3968 = vpop.f32.mrb[0].mxu0
        %3969 = vdwg.mxu0
        %v3970 = vadd.f32 %v3727, %v3967
        %3971 = vrot.lane.b32.xlu0 %v3243, 104
        %v3972 = vpop.permute.xlu0 %3971
        %3973 = vrot.lane.b32.xlu0 %v3243, 72
        %v3974 = vpop.permute.xlu0 %3973
        %v3975 = vsel %vm1785, %v3972, 0
        %v3977 = vsel %vm1785, %v3974, 0
        %3979 = vmatprep.subr.mxu0 0.0
        %3980 = vmatpush1.xpose.msra.mxu0 %v3977
        %3981 = vmatprep.subr.mxu0 0.0
        %3982 = vmatpush1.xpose.msra.mxu0 0.0
        %3983 = vmatprep.subr.mxu0 0.0
        %3984 = vmatpush1.xpose.msra.mxu0 0.0
        %3985 = vmatprep.subr.mxu0 0.0
        %3986 = vmatpush1.xpose.msra.mxu0 0.0
        %3987 = vmatprep.subr.mxu0 0.0
        %3988 = vmatpush1.xpose.msra.mxu0 0.0
        %3989 = vmatprep.subr.mxu0 0.0
        %3990 = vmatpush1.xpose.msra.mxu0 0.0
        %3991 = vmatprep.subr.mxu0 0.0
        %3992 = vmatpush1.xpose.msra.mxu0 0.0
        %3993 = vmatprep.subr.mxu0 0.0
        %3994 = vmatpush1.xpose.msra.mxu0 0.0
        %3995 = vmatprep.subr.mxu0 0.0
        %3996 = vmatpush1.xpose.msra.mxu0 0.0
        %3997 = vmatprep.subr.mxu0 0.0
        %3998 = vmatpush1.xpose.msra.mxu0 0.0
        %3999 = vmatprep.subr.mxu0 0.0
        %4000 = vmatpush1.xpose.msra.mxu0 0.0
        %4001 = vmatprep.subr.mxu0 0.0
        %4002 = vmatpush1.xpose.msra.mxu0 0.0
        %4003 = vmatprep.subr.mxu0 0.0
        %4004 = vmatpush1.xpose.msra.mxu0 0.0
        %4005 = vmatprep.subr.mxu0 0.0
        %4006 = vmatpush1.xpose.msra.mxu0 0.0
        %4007 = vmatprep.subr.mxu0 0.0
        %4008 = vmatpush1.xpose.msra.mxu0 0.0
        %4009 = vmatprep.subr.mxu0 0.0
        %4010 = vmatpush1.xpose.msra.mxu0 0.0
        %4011 = vmatprep.subr.mxu0 0.0
        %4012 = vmatpush1.xpose.msra.mxu0 0.0
        %4013 = vmatprep.subr.mxu0 0.0
        %4014 = vmatpush1.xpose.msra.mxu0 0.0
        %4015 = vmatprep.subr.mxu0 0.0
        %4016 = vmatpush1.xpose.msra.mxu0 0.0
        %4017 = vmatprep.subr.mxu0 0.0
        %4018 = vmatpush1.xpose.msra.mxu0 0.0
        %4019 = vmatprep.subr.mxu0 0.0
        %4020 = vmatpush1.xpose.msra.mxu0 0.0
        %4021 = vmatprep.subr.mxu0 0.0
        %4022 = vmatpush1.xpose.msra.mxu0 0.0
        %4023 = vmatprep.subr.mxu0 0.0
        %4024 = vmatpush1.xpose.msra.mxu0 0.0
        %4025 = vmatprep.subr.mxu0 0.0
        %4026 = vmatpush1.xpose.msra.mxu0 0.0
        %4027 = vmatprep.subr.mxu0 0.0
        %4028 = vmatpush1.xpose.msra.mxu0 0.0
        %4029 = vmatprep.subr.mxu0 0.0
        %4030 = vmatpush1.xpose.msra.mxu0 0.0
        %4031 = vmatprep.subr.mxu0 0.0
        %4032 = vmatpush1.xpose.msra.mxu0 0.0
        %4033 = vmatprep.subr.mxu0 0.0
        %4034 = vmatpush1.xpose.msra.mxu0 0.0
        %4035 = vmatprep.subr.mxu0 0.0
        %4036 = vmatpush1.xpose.msra.mxu0 0.0
        %4037 = vmatprep.subr.mxu0 0.0
        %4038 = vmatpush1.xpose.msra.mxu0 0.0
        %4039 = vmatprep.subr.mxu0 0.0
        %4040 = vmatpush1.xpose.msra.mxu0 0.0
        %4041 = vmatprep.subr.mxu0 0.0
        %4042 = vmatpush1.xpose.msra.mxu0 0.0
        %4043 = vmatprep.mubr.f32.mxu0 0.0
        %4044 = vmatmul.mubr.f32.gmra.mrb[0].mxu0 %v3975
        %v4045 = vpop.f32.mrb[0].mxu0
        %v4046 = vadd.f32 0.0, %v4045
        %v4047 = vpop.f32.mrb[0].mxu0
        %4048 = vdwg.mxu0
        %v4049 = vmul.f32 %v4046, 0.35355338
        %v4050 = vsel %vm1670, %v4049, -1e+09
        %v4051 = vsel %vm1785, %v4050, -inf
        %4052 = vmax.xlane.f32.xlu0 %v4051
        %v4053 = vpop.xlane.xlu0 %4052
        %v4054 = vsub.f32 %v4050, %v4053
        %v4055 = vmul.f32 %v4054, 1.442695
        %v4056 = vpow.pop %v4055
        %v4057 = vsel %vm1785, %v4056, 0.0
        %4058 = vadd.xlane.f32.xlu0 %v4057
        %v4059 = vpop.xlane.xlu0 %4058
        %v4060 = vrcp.pop %v4059
        %v4061 = vmul.f32 %v4056, %v4060
        %4062 = vrot.lane.b32.xlu0 %v3243, 40
        %v4063 = vpop.permute.xlu0 %4062
        %v4066 = vsel %vm1785, %v4061, 0
        %4068 = vmatprep.subr.mxu0 0.0
        %4069 = vmatpush1.msra.mxu0 %v4063
        %4070 = vmatprep.subr.mxu0 0.0
        %4071 = vmatpush1.msra.mxu0 0.0
        %4072 = vmatprep.subr.mxu0 0.0
        %4073 = vmatpush1.msra.mxu0 0.0
        %4074 = vmatprep.subr.mxu0 0.0
        %4075 = vmatpush1.msra.mxu0 0.0
        %4076 = vmatprep.subr.mxu0 0.0
        %4077 = vmatpush1.msra.mxu0 0.0
        %4078 = vmatprep.subr.mxu0 0.0
        %4079 = vmatpush1.msra.mxu0 0.0
        %4080 = vmatprep.subr.mxu0 0.0
        %4081 = vmatpush1.msra.mxu0 0.0
        %4082 = vmatprep.subr.mxu0 0.0
        %4083 = vmatpush1.msra.mxu0 0.0
        %4084 = vmatprep.subr.mxu0 0.0
        %4085 = vmatpush1.msra.mxu0 0.0
        %4086 = vmatprep.subr.mxu0 0.0
        %4087 = vmatpush1.msra.mxu0 0.0
        %4088 = vmatprep.subr.mxu0 0.0
        %4089 = vmatpush1.msra.mxu0 0.0
        %4090 = vmatprep.subr.mxu0 0.0
        %4091 = vmatpush1.msra.mxu0 0.0
        %4092 = vmatprep.subr.mxu0 0.0
        %4093 = vmatpush1.msra.mxu0 0.0
        %4094 = vmatprep.subr.mxu0 0.0
        %4095 = vmatpush1.msra.mxu0 0.0
        %4096 = vmatprep.subr.mxu0 0.0
        %4097 = vmatpush1.msra.mxu0 0.0
        %4098 = vmatprep.subr.mxu0 0.0
        %4099 = vmatpush1.msra.mxu0 0.0
        %4100 = vmatprep.subr.mxu0 0.0
        %4101 = vmatpush1.msra.mxu0 0.0
        %4102 = vmatprep.subr.mxu0 0.0
        %4103 = vmatpush1.msra.mxu0 0.0
        %4104 = vmatprep.subr.mxu0 0.0
        %4105 = vmatpush1.msra.mxu0 0.0
        %4106 = vmatprep.subr.mxu0 0.0
        %4107 = vmatpush1.msra.mxu0 0.0
        %4108 = vmatprep.subr.mxu0 0.0
        %4109 = vmatpush1.msra.mxu0 0.0
        %4110 = vmatprep.subr.mxu0 0.0
        %4111 = vmatpush1.msra.mxu0 0.0
        %4112 = vmatprep.subr.mxu0 0.0
        %4113 = vmatpush1.msra.mxu0 0.0
        %4114 = vmatprep.subr.mxu0 0.0
        %4115 = vmatpush1.msra.mxu0 0.0
        %4116 = vmatprep.subr.mxu0 0.0
        %4117 = vmatpush1.msra.mxu0 0.0
        %4118 = vmatprep.subr.mxu0 0.0
        %4119 = vmatpush1.msra.mxu0 0.0
        %4120 = vmatprep.subr.mxu0 0.0
        %4121 = vmatpush1.msra.mxu0 0.0
        %4122 = vmatprep.subr.mxu0 0.0
        %4123 = vmatpush1.msra.mxu0 0.0
        %4124 = vmatprep.subr.mxu0 0.0
        %4125 = vmatpush1.msra.mxu0 0.0
        %4126 = vmatprep.subr.mxu0 0.0
        %4127 = vmatpush1.msra.mxu0 0.0
        %4128 = vmatprep.subr.mxu0 0.0
        %4129 = vmatpush1.msra.mxu0 0.0
        %4130 = vmatprep.subr.mxu0 0.0
        %4131 = vmatpush1.msra.mxu0 0.0
        %4132 = vmatprep.mubr.f32.mxu0 0.0
        %4133 = vmatmul.mubr.f32.gmra.mrb[0].mxu0 %v4066
        %v4134 = vpop.f32.mrb[0].mxu0
        %v4135 = vadd.f32 0.0, %v4134
        %v4136 = vpop.f32.mrb[0].mxu0
        %4137 = vdwg.mxu0
        %v4139 = vsel %vm1785, %v4135, 0
        %4141 = vmatprep.subr.mxu0 0.0
        %4142 = vmatpush1.msra.mxu0 %v3250
        %4143 = vmatprep.subr.mxu0 0.0
        %4144 = vmatpush1.msra.mxu0 0.0
        %4145 = vmatprep.subr.mxu0 0.0
        %4146 = vmatpush1.msra.mxu0 0.0
        %4147 = vmatprep.subr.mxu0 0.0
        %4148 = vmatpush1.msra.mxu0 0.0
        %4149 = vmatprep.subr.mxu0 0.0
        %4150 = vmatpush1.msra.mxu0 0.0
        %4151 = vmatprep.subr.mxu0 0.0
        %4152 = vmatpush1.msra.mxu0 0.0
        %4153 = vmatprep.subr.mxu0 0.0
        %4154 = vmatpush1.msra.mxu0 0.0
        %4155 = vmatprep.subr.mxu0 0.0
        %4156 = vmatpush1.msra.mxu0 0.0
        %4157 = vmatprep.subr.mxu0 0.0
        %4158 = vmatpush1.msra.mxu0 0.0
        %4159 = vmatprep.subr.mxu0 0.0
        %4160 = vmatpush1.msra.mxu0 0.0
        %4161 = vmatprep.subr.mxu0 0.0
        %4162 = vmatpush1.msra.mxu0 0.0
        %4163 = vmatprep.subr.mxu0 0.0
        %4164 = vmatpush1.msra.mxu0 0.0
        %4165 = vmatprep.subr.mxu0 0.0
        %4166 = vmatpush1.msra.mxu0 0.0
        %4167 = vmatprep.subr.mxu0 0.0
        %4168 = vmatpush1.msra.mxu0 0.0
        %4169 = vmatprep.subr.mxu0 0.0
        %4170 = vmatpush1.msra.mxu0 0.0
        %4171 = vmatprep.subr.mxu0 0.0
        %4172 = vmatpush1.msra.mxu0 0.0
        %4173 = vmatprep.subr.mxu0 0.0
        %4174 = vmatpush1.msra.mxu0 0.0
        %4175 = vmatprep.subr.mxu0 0.0
        %4176 = vmatpush1.msra.mxu0 0.0
        %4177 = vmatprep.subr.mxu0 0.0
        %4178 = vmatpush1.msra.mxu0 0.0
        %4179 = vmatprep.subr.mxu0 0.0
        %4180 = vmatpush1.msra.mxu0 0.0
        %4181 = vmatprep.subr.mxu0 0.0
        %4182 = vmatpush1.msra.mxu0 0.0
        %4183 = vmatprep.subr.mxu0 0.0
        %4184 = vmatpush1.msra.mxu0 0.0
        %4185 = vmatprep.subr.mxu0 0.0
        %4186 = vmatpush1.msra.mxu0 0.0
        %4187 = vmatprep.subr.mxu0 0.0
        %4188 = vmatpush1.msra.mxu0 0.0
        %4189 = vmatprep.subr.mxu0 0.0
        %4190 = vmatpush1.msra.mxu0 0.0
        %4191 = vmatprep.subr.mxu0 0.0
        %4192 = vmatpush1.msra.mxu0 0.0
        %4193 = vmatprep.subr.mxu0 0.0
        %4194 = vmatpush1.msra.mxu0 0.0
        %4195 = vmatprep.subr.mxu0 0.0
        %4196 = vmatpush1.msra.mxu0 0.0
        %4197 = vmatprep.subr.mxu0 0.0
        %4198 = vmatpush1.msra.mxu0 0.0
        %4199 = vmatprep.subr.mxu0 0.0
        %4200 = vmatpush1.msra.mxu0 0.0
        %4201 = vmatprep.subr.mxu0 0.0
        %4202 = vmatpush1.msra.mxu0 0.0
        %4203 = vmatprep.subr.mxu0 0.0
        %4204 = vmatpush1.msra.mxu0 0.0
        %4205 = vmatprep.mubr.f32.mxu0 0.0
        %4206 = vmatmul.mubr.f32.gmra.mrb[0].mxu0 %v4139
        %v4207 = vpop.f32.mrb[0].mxu0
        %v4208 = vadd.f32 0.0, %v4207
        %v4209 = vpop.f32.mrb[0].mxu0
        %4210 = vdwg.mxu0
        %v4211 = vadd.f32 %v3970, %v4208
        %v4212 = vld [vmem:[%s45 + $0x1] sm:$0x1]
        %v4213 = vlaneseq
        %v4214 = vshrl.u32 %v4213, 7
        %v4215 = vsub.s32 0, %v4214
        %v4216 = vrot.slane %v4212, %v4215
        %v4217 = vadd.f32 %v4211, %v4216
        %v4218 = vadd.f32 %v3162, %v4217
        %v4219 = vld [vmem:[%s35 + $0x1] sm:$0x1]
        %v4220 = vld [vmem:[%s37 + $0x1] sm:$0x1]
        %v4221 = vsel %vm1195, %v4218, 0.0
        %4222 = vadd.xlane.f32.xlu0 %v4221
        %v4223 = vpop.xlane.xlu0 %4222
        %v4224 = vmul.f32 %v4223, %v1199
        %v4225 = vsub.f32 %v4218, %v4224
        %v4226 = vmul.f32 %v4225, %v4225
        %v4227 = vsel %vm1195, %v4226, 0.0
        %4228 = vadd.xlane.f32.xlu0 %v4227
        %v4229 = vpop.xlane.xlu0 %4228
        %v4230 = vmul.f32 %v4229, %v1199
        %v4231 = vadd.f32 %v4230, 1e-06
        %v4232 = vrsqrt.pop %v4231
        %v4233 = vmul.f32 %v4225, %v4232
        %v4234 = vlaneseq
        %v4235 = vshrl.u32 %v4234, 7
        %v4236 = vsub.s32 0, %v4235
        %v4237 = vrot.slane %v4219, %v4236
        %v4238 = vmul.f32 %v4233, %v4237
        %v4239 = vlaneseq
        %v4240 = vshrl.u32 %v4239, 7
        %v4241 = vsub.s32 0, %v4240
        %v4242 = vrot.slane %v4220, %v4241
        %v4243 = vadd.f32 %v4238, %v4242
        %s4244 = scalar_lea.vmem %s47, 32
        %v4245 = vld [vmem:[%s4244] sm:$0xff]
        %v4246 = vld [vmem:[%s4244 + $0x8] sm:$0xff]
        %v4247 = vld [vmem:[%s4244 + $0x10] sm:$0xff]
        %v4248 = vld [vmem:[%s4244 + $0x18] sm:$0xff]
        %v4249 = vld [vmem:[%s49 + $0x1] sm:$0x1]
        %4250 = vmatprep.subr.mxu0 0.0
        %4251 = vmatpush1.msra.mxu0 %v4245
        %4252 = vmatprep.subr.mxu0 0.0
        %4253 = vmatpush1.msra.mxu0 %v4246
        %4254 = vmatprep.subr.mxu0 0.0
        %4255 = vmatpush1.msra.mxu0 %v4247
        %4256 = vmatprep.subr.mxu0 0.0
        %4257 = vmatpush1.msra.mxu0 %v4248
        %4258 = vmatprep.subr.mxu0 0.0
        %4259 = vmatpush1.msra.mxu0 0.0
        %4260 = vmatprep.subr.mxu0 0.0
        %4261 = vmatpush1.msra.mxu0 0.0
        %4262 = vmatprep.subr.mxu0 0.0
        %4263 = vmatpush1.msra.mxu0 0.0
        %4264 = vmatprep.subr.mxu0 0.0
        %4265 = vmatpush1.msra.mxu0 0.0
        %4266 = vmatprep.subr.mxu0 0.0
        %4267 = vmatpush1.msra.mxu0 0.0
        %4268 = vmatprep.subr.mxu0 0.0
        %4269 = vmatpush1.msra.mxu0 0.0
        %4270 = vmatprep.subr.mxu0 0.0
        %4271 = vmatpush1.msra.mxu0 0.0
        %4272 = vmatprep.subr.mxu0 0.0
        %4273 = vmatpush1.msra.mxu0 0.0
        %4274 = vmatprep.subr.mxu0 0.0
        %4275 = vmatpush1.msra.mxu0 0.0
        %4276 = vmatprep.subr.mxu0 0.0
        %4277 = vmatpush1.msra.mxu0 0.0
        %4278 = vmatprep.subr.mxu0 0.0
        %4279 = vmatpush1.msra.mxu0 0.0
        %4280 = vmatprep.subr.mxu0 0.0
        %4281 = vmatpush1.msra.mxu0 0.0
        %4282 = vmatprep.subr.mxu0 0.0
        %4283 = vmatpush1.msra.mxu0 0.0
        %4284 = vmatprep.subr.mxu0 0.0
        %4285 = vmatpush1.msra.mxu0 0.0
        %4286 = vmatprep.subr.mxu0 0.0
        %4287 = vmatpush1.msra.mxu0 0.0
        %4288 = vmatprep.subr.mxu0 0.0
        %4289 = vmatpush1.msra.mxu0 0.0
        %4290 = vmatprep.subr.mxu0 0.0
        %4291 = vmatpush1.msra.mxu0 0.0
        %4292 = vmatprep.subr.mxu0 0.0
        %4293 = vmatpush1.msra.mxu0 0.0
        %4294 = vmatprep.subr.mxu0 0.0
        %4295 = vmatpush1.msra.mxu0 0.0
        %4296 = vmatprep.subr.mxu0 0.0
        %4297 = vmatpush1.msra.mxu0 0.0
        %4298 = vmatprep.subr.mxu0 0.0
        %4299 = vmatpush1.msra.mxu0 0.0
        %4300 = vmatprep.subr.mxu0 0.0
        %4301 = vmatpush1.msra.mxu0 0.0
        %4302 = vmatprep.subr.mxu0 0.0
        %4303 = vmatpush1.msra.mxu0 0.0
        %4304 = vmatprep.subr.mxu0 0.0
        %4305 = vmatpush1.msra.mxu0 0.0
        %4306 = vmatprep.subr.mxu0 0.0
        %4307 = vmatpush1.msra.mxu0 0.0
        %4308 = vmatprep.subr.mxu0 0.0
        %4309 = vmatpush1.msra.mxu0 0.0
        %4310 = vmatprep.subr.mxu0 0.0
        %4311 = vmatpush1.msra.mxu0 0.0
        %4312 = vmatprep.subr.mxu0 0.0
        %4313 = vmatpush1.msra.mxu0 0.0
        %4314 = vmatprep.mubr.f32.mxu0 0.0
        %4315 = vmatmul.mubr.f32.gmra.mrb[0].mxu0 %v2783
        %v4316 = vpop.f32.mrb[0].mxu0
        %v4317 = vadd.f32 %v4249, %v4316
        %v4318 = vpop.f32.mrb[0].mxu0
        %4319 = vdwg.mxu0
        %s4320 = scalar_lea.vmem %s51, 32
        %v4321 = vld [vmem:[%s4320] sm:$0xff]
        %v4322 = vld [vmem:[%s4320 + $0x8] sm:$0xff]
        %v4323 = vld [vmem:[%s4320 + $0x10] sm:$0xff]
        %v4324 = vld [vmem:[%s4320 + $0x18] sm:$0xff]
        %v4325 = vld [vmem:[%s53 + $0x1] sm:$0x1]
        %v4327 = vsel %vm1195, %v4317, 0
        %4329 = vmatprep.subr.mxu0 0.0
        %4330 = vmatpush1.msra.mxu0 %v4321
        %4331 = vmatprep.subr.mxu0 0.0
        %4332 = vmatpush1.msra.mxu0 %v4322
        %4333 = vmatprep.subr.mxu0 0.0
        %4334 = vmatpush1.msra.mxu0 %v4323
        %4335 = vmatprep.subr.mxu0 0.0
        %4336 = vmatpush1.msra.mxu0 %v4324
        %4337 = vmatprep.subr.mxu0 0.0
        %4338 = vmatpush1.msra.mxu0 0.0
        %4339 = vmatprep.subr.mxu0 0.0
        %4340 = vmatpush1.msra.mxu0 0.0
        %4341 = vmatprep.subr.mxu0 0.0
        %4342 = vmatpush1.msra.mxu0 0.0
        %4343 = vmatprep.subr.mxu0 0.0
        %4344 = vmatpush1.msra.mxu0 0.0
        %4345 = vmatprep.subr.mxu0 0.0
        %4346 = vmatpush1.msra.mxu0 0.0
        %4347 = vmatprep.subr.mxu0 0.0
        %4348 = vmatpush1.msra.mxu0 0.0
        %4349 = vmatprep.subr.mxu0 0.0
        %4350 = vmatpush1.msra.mxu0 0.0
        %4351 = vmatprep.subr.mxu0 0.0
        %4352 = vmatpush1.msra.mxu0 0.0
        %4353 = vmatprep.subr.mxu0 0.0
        %4354 = vmatpush1.msra.mxu0 0.0
        %4355 = vmatprep.subr.mxu0 0.0
        %4356 = vmatpush1.msra.mxu0 0.0
        %4357 = vmatprep.subr.mxu0 0.0
        %4358 = vmatpush1.msra.mxu0 0.0
        %4359 = vmatprep.subr.mxu0 0.0
        %4360 = vmatpush1.msra.mxu0 0.0
        %4361 = vmatprep.subr.mxu0 0.0
        %4362 = vmatpush1.msra.mxu0 0.0
        %4363 = vmatprep.subr.mxu0 0.0
        %4364 = vmatpush1.msra.mxu0 0.0
        %4365 = vmatprep.subr.mxu0 0.0
        %4366 = vmatpush1.msra.mxu0 0.0
        %4367 = vmatprep.subr.mxu0 0.0
        %4368 = vmatpush1.msra.mxu0 0.0
        %4369 = vmatprep.subr.mxu0 0.0
        %4370 = vmatpush1.msra.mxu0 0.0
        %4371 = vmatprep.subr.mxu0 0.0
        %4372 = vmatpush1.msra.mxu0 0.0
        %4373 = vmatprep.subr.mxu0 0.0
        %4374 = vmatpush1.msra.mxu0 0.0
        %4375 = vmatprep.subr.mxu0 0.0
        %4376 = vmatpush1.msra.mxu0 0.0
        %4377 = vmatprep.subr.mxu0 0.0
        %4378 = vmatpush1.msra.mxu0 0.0
        %4379 = vmatprep.subr.mxu0 0.0
        %4380 = vmatpush1.msra.mxu0 0.0
        %4381 = vmatprep.subr.mxu0 0.0
        %4382 = vmatpush1.msra.mxu0 0.0
        %4383 = vmatprep.subr.mxu0 0.0
        %4384 = vmatpush1.msra.mxu0 0.0
        %4385 = vmatprep.subr.mxu0 0.0
        %4386 = vmatpush1.msra.mxu0 0.0
        %4387 = vmatprep.subr.mxu0 0.0
        %4388 = vmatpush1.msra.mxu0 0.0
        %4389 = vmatprep.subr.mxu0 0.0
        %4390 = vmatpush1.msra.mxu0 0.0
        %4391 = vmatprep.subr.mxu0 0.0
        %4392 = vmatpush1.msra.mxu0 0.0
        %4393 = vmatprep.mubr.f32.mxu0 0.0
        %4394 = vmatmul.mubr.f32.gmra.mrb[0].mxu0 %v4327
        %v4395 = vpop.f32.mrb[0].mxu0
        %v4396 = vadd.f32 %v4325, %v4395
        %v4397 = vpop.f32.mrb[0].mxu0
        %4398 = vdwg.mxu0
        %v4399 = vlaneseq
        %v4400 = vshrl.u32 %v4399, 7
        %v4401 = vsub.s32 0, %v4400
        %v4402 = vrot.slane %v4396, %v4401
        %v4403 = vadd.f32 %v4402, %v4243
        %v4404 = vld [vmem:[%s55 + $0x1] sm:$0x1]
        %v4405 = vld [vmem:[%s57 + $0x1] sm:$0x1]
        %v4406 = vsel %vm1195, %v4403, 0.0
        %4407 = vadd.xlane.f32.xlu0 %v4406
        %v4408 = vpop.xlane.xlu0 %4407
        %v4409 = vmul.f32 %v4408, %v1199
        %v4410 = vsub.f32 %v4403, %v4409
        %v4411 = vmul.f32 %v4410, %v4410
        %v4412 = vsel %vm1195, %v4411, 0.0
        %4413 = vadd.xlane.f32.xlu0 %v4412
        %v4414 = vpop.xlane.xlu0 %4413
        %v4415 = vmul.f32 %v4414, %v1199
        %v4416 = vadd.f32 %v4415, 1e-06
        %v4417 = vrsqrt.pop %v4416
        %v4418 = vmul.f32 %v4410, %v4417
        %v4419 = vlaneseq
        %v4420 = vshrl.u32 %v4419, 7
        %v4421 = vsub.s32 0, %v4420
        %v4422 = vrot.slane %v4404, %v4421
        %v4423 = vmul.f32 %v4418, %v4422
        %v4424 = vlaneseq
        %v4425 = vshrl.u32 %v4424, 7
        %v4426 = vsub.s32 0, %v4425
        %v4427 = vrot.slane %v4405, %v4426
        %v4428 = vadd.f32 %v4423, %v4427
        %s4429 = scalar_lea.vmem %s59, 32
        %v4430 = vld [vmem:[%s4429] sm:$0xff]
        %v4431 = vld [vmem:[%s4429 + $0x8] sm:$0xff]
        %v4432 = vld [vmem:[%s4429 + $0x10] sm:$0xff]
        %v4433 = vld [vmem:[%s4429 + $0x18] sm:$0xff]
        %v4434 = vld [vmem:[%s61 + $0x1] sm:$0x1]
        %v4435 = vlaneseq
        %v4436 = vshrl.u32 %v4435, 7
        %v4437 = vsub.s32 0, %v4436
        %v4438 = vrot.slane %v4434, %v4437
        %v4440 = vsel %vm1195, %v4428, 0
        %4442 = vmatprep.subr.mxu0 0.0
        %4443 = vmatpush1.msra.mxu0 %v4430
        %4444 = vmatprep.subr.mxu0 0.0
        %4445 = vmatpush1.msra.mxu0 %v4431
        %4446 = vmatprep.subr.mxu0 0.0
        %4447 = vmatpush1.msra.mxu0 %v4432
        %4448 = vmatprep.subr.mxu0 0.0
        %4449 = vmatpush1.msra.mxu0 %v4433
        %4450 = vmatprep.subr.mxu0 0.0
        %4451 = vmatpush1.msra.mxu0 0.0
        %4452 = vmatprep.subr.mxu0 0.0
        %4453 = vmatpush1.msra.mxu0 0.0
        %4454 = vmatprep.subr.mxu0 0.0
        %4455 = vmatpush1.msra.mxu0 0.0
        %4456 = vmatprep.subr.mxu0 0.0
        %4457 = vmatpush1.msra.mxu0 0.0
        %4458 = vmatprep.subr.mxu0 0.0
        %4459 = vmatpush1.msra.mxu0 0.0
        %4460 = vmatprep.subr.mxu0 0.0
        %4461 = vmatpush1.msra.mxu0 0.0
        %4462 = vmatprep.subr.mxu0 0.0
        %4463 = vmatpush1.msra.mxu0 0.0
        %4464 = vmatprep.subr.mxu0 0.0
        %4465 = vmatpush1.msra.mxu0 0.0
        %4466 = vmatprep.subr.mxu0 0.0
        %4467 = vmatpush1.msra.mxu0 0.0
        %4468 = vmatprep.subr.mxu0 0.0
        %4469 = vmatpush1.msra.mxu0 0.0
        %4470 = vmatprep.subr.mxu0 0.0
        %4471 = vmatpush1.msra.mxu0 0.0
        %4472 = vmatprep.subr.mxu0 0.0
        %4473 = vmatpush1.msra.mxu0 0.0
        %4474 = vmatprep.subr.mxu0 0.0
        %4475 = vmatpush1.msra.mxu0 0.0
        %4476 = vmatprep.subr.mxu0 0.0
        %4477 = vmatpush1.msra.mxu0 0.0
        %4478 = vmatprep.subr.mxu0 0.0
        %4479 = vmatpush1.msra.mxu0 0.0
        %4480 = vmatprep.subr.mxu0 0.0
        %4481 = vmatpush1.msra.mxu0 0.0
        %4482 = vmatprep.subr.mxu0 0.0
        %4483 = vmatpush1.msra.mxu0 0.0
        %4484 = vmatprep.subr.mxu0 0.0
        %4485 = vmatpush1.msra.mxu0 0.0
        %4486 = vmatprep.subr.mxu0 0.0
        %4487 = vmatpush1.msra.mxu0 0.0
        %4488 = vmatprep.subr.mxu0 0.0
        %4489 = vmatpush1.msra.mxu0 0.0
        %4490 = vmatprep.subr.mxu0 0.0
        %4491 = vmatpush1.msra.mxu0 0.0
        %4492 = vmatprep.subr.mxu0 0.0
        %4493 = vmatpush1.msra.mxu0 0.0
        %4494 = vmatprep.subr.mxu0 0.0
        %4495 = vmatpush1.msra.mxu0 0.0
        %4496 = vmatprep.subr.mxu0 0.0
        %4497 = vmatpush1.msra.mxu0 0.0
        %4498 = vmatprep.subr.mxu0 0.0
        %4499 = vmatpush1.msra.mxu0 0.0
        %4500 = vmatprep.subr.mxu0 0.0
        %4501 = vmatpush1.msra.mxu0 0.0
        %4502 = vmatprep.subr.mxu0 0.0
        %4503 = vmatpush1.msra.mxu0 0.0
        %4504 = vmatprep.subr.mxu0 0.0
        %4505 = vmatpush1.msra.mxu0 0.0
        %4506 = vmatprep.mubr.f32.mxu0 0.0
        %4507 = vmatmul.mubr.f32.gmra.mrb[0].mxu0 %v4440
        %v4508 = vpop.f32.mrb[0].mxu0
        %v4509 = vadd.f32 %v4438, %v4508
        %v4510 = vpop.f32.mrb[0].mxu0
        %4511 = vdwg.mxu0
        %v4512 = vmax.f32 %v4509, 0.0
        %s4513 = scalar_lea.vmem %s63, 128
        %v4514 = vld [vmem:[%s4513] sm:$0xff]
        %v4515 = vld [vmem:[%s4513 + $0x8] sm:$0xff]
        %v4516 = vld [vmem:[%s4513 + $0x10] sm:$0xff]
        %v4517 = vld [vmem:[%s4513 + $0x18] sm:$0xff]
        %v4518 = vld [vmem:[%s4513 + $0x20] sm:$0xff]
        %v4519 = vld [vmem:[%s4513 + $0x28] sm:$0xff]
        %v4520 = vld [vmem:[%s4513 + $0x30] sm:$0xff]
        %v4521 = vld [vmem:[%s4513 + $0x38] sm:$0xff]
        %v4522 = vld [vmem:[%s4513 + $0x40] sm:$0xff]
        %v4523 = vld [vmem:[%s4513 + $0x48] sm:$0xff]
        %v4524 = vld [vmem:[%s4513 + $0x50] sm:$0xff]
        %v4525 = vld [vmem:[%s4513 + $0x58] sm:$0xff]
        %v4526 = vld [vmem:[%s4513 + $0x60] sm:$0xff]
        %v4527 = vld [vmem:[%s4513 + $0x68] sm:$0xff]
        %v4528 = vld [vmem:[%s4513 + $0x70] sm:$0xff]
        %v4529 = vld [vmem:[%s4513 + $0x78] sm:$0xff]
        %v4530 = vld [vmem:[%s65 + $0x1] sm:$0x1]
        %v4531 = vlaneseq
        %v4532 = vshrl.u32 %v4531, 7
        %v4533 = vsub.s32 0, %v4532
        %v4534 = vrot.slane %v4530, %v4533
        %4535 = vmatprep.subr.mxu0 0.0
        %4536 = vmatpush1.msra.mxu0 %v4514
        %4537 = vmatprep.subr.mxu0 0.0
        %4538 = vmatpush1.msra.mxu0 %v4515
        %4539 = vmatprep.subr.mxu0 0.0
        %4540 = vmatpush1.msra.mxu0 %v4516
        %4541 = vmatprep.subr.mxu0 0.0
        %4542 = vmatpush1.msra.mxu0 %v4517
        %4543 = vmatprep.subr.mxu0 0.0
        %4544 = vmatpush1.msra.mxu0 %v4518
        %4545 = vmatprep.subr.mxu0 0.0
        %4546 = vmatpush1.msra.mxu0 %v4519
        %4547 = vmatprep.subr.mxu0 0.0
        %4548 = vmatpush1.msra.mxu0 %v4520
        %4549 = vmatprep.subr.mxu0 0.0
        %4550 = vmatpush1.msra.mxu0 %v4521
        %4551 = vmatprep.subr.mxu0 0.0
        %4552 = vmatpush1.msra.mxu0 %v4522
        %4553 = vmatprep.subr.mxu0 0.0
        %4554 = vmatpush1.msra.mxu0 %v4523
        %4555 = vmatprep.subr.mxu0 0.0
        %4556 = vmatpush1.msra.mxu0 %v4524
        %4557 = vmatprep.subr.mxu0 0.0
        %4558 = vmatpush1.msra.mxu0 %v4525
        %4559 = vmatprep.subr.mxu0 0.0
        %4560 = vmatpush1.msra.mxu0 %v4526
        %4561 = vmatprep.subr.mxu0 0.0
        %4562 = vmatpush1.msra.mxu0 %v4527
        %4563 = vmatprep.subr.mxu0 0.0
        %4564 = vmatpush1.msra.mxu0 %v4528
        %4565 = vmatprep.subr.mxu0 0.0
        %4566 = vmatpush1.msra.mxu0 %v4529
        %4567 = vmatprep.subr.mxu0 0.0
        %4568 = vmatpush1.msra.mxu0 0.0
        %4569 = vmatprep.subr.mxu0 0.0
        %4570 = vmatpush1.msra.mxu0 0.0
        %4571 = vmatprep.subr.mxu0 0.0
        %4572 = vmatpush1.msra.mxu0 0.0
        %4573 = vmatprep.subr.mxu0 0.0
        %4574 = vmatpush1.msra.mxu0 0.0
        %4575 = vmatprep.subr.mxu0 0.0
        %4576 = vmatpush1.msra.mxu0 0.0
        %4577 = vmatprep.subr.mxu0 0.0
        %4578 = vmatpush1.msra.mxu0 0.0
        %4579 = vmatprep.subr.mxu0 0.0
        %4580 = vmatpush1.msra.mxu0 0.0
        %4581 = vmatprep.subr.mxu0 0.0
        %4582 = vmatpush1.msra.mxu0 0.0
        %4583 = vmatprep.subr.mxu0 0.0
        %4584 = vmatpush1.msra.mxu0 0.0
        %4585 = vmatprep.subr.mxu0 0.0
        %4586 = vmatpush1.msra.mxu0 0.0
        %4587 = vmatprep.subr.mxu0 0.0
        %4588 = vmatpush1.msra.mxu0 0.0
        %4589 = vmatprep.subr.mxu0 0.0
        %4590 = vmatpush1.msra.mxu0 0.0
        %4591 = vmatprep.subr.mxu0 0.0
        %4592 = vmatpush1.msra.mxu0 0.0
        %4593 = vmatprep.subr.mxu0 0.0
        %4594 = vmatpush1.msra.mxu0 0.0
        %4595 = vmatprep.subr.mxu0 0.0
        %4596 = vmatpush1.msra.mxu0 0.0
        %4597 = vmatprep.subr.mxu0 0.0
        %4598 = vmatpush1.msra.mxu0 0.0
        %4599 = vmatprep.mubr.f32.mxu0 0.0
        %4600 = vmatmul.mubr.f32.gmra.mrb[0].mxu0 %v4512
        %v4601 = vpop.f32.mrb[0].mxu0
        %v4602 = vadd.f32 %v4534, %v4601
        %v4603 = vpop.f32.mrb[0].mxu0
        %4604 = vdwg.mxu0
        %v4605 = vadd.f32 %v4602, %v4403
        %v4606 = vld [vmem:[%s11] sm:$0xff]
        %v4607 = vld [vmem:[%s11 + $0x8] sm:$0xff]
        %v4608 = vld [vmem:[%s11 + $0x10] sm:$0xff]
        %v4609 = vld [vmem:[%s11 + $0x18] sm:$0xff]
        %v4610 = vld [vmem:[%s13] sm:$0x1]
        %v4612 = vlaneseq
        %v4613 = vshrl.u32 %v4612, 7
        %v4614 = vsub.s32 0, %v4613
        %v4615 = vrot.slane %v4610, %v4614
        %v4618 = vsel %vm1195, %v4605, 0
        %4620 = vmatprep.subr.mxu0 0.0
        %4621 = vmatpush1.msra.mxu0 %v4606
        %4622 = vmatprep.subr.mxu0 0.0
        %4623 = vmatpush1.msra.mxu0 %v4607
        %4624 = vmatprep.subr.mxu0 0.0
        %4625 = vmatpush1.msra.mxu0 %v4608
        %4626 = vmatprep.subr.mxu0 0.0
        %4627 = vmatpush1.msra.mxu0 %v4609
        %4628 = vmatprep.subr.mxu0 0.0
        %4629 = vmatpush1.msra.mxu0 0.0
        %4630 = vmatprep.subr.mxu0 0.0
        %4631 = vmatpush1.msra.mxu0 0.0
        %4632 = vmatprep.subr.mxu0 0.0
        %4633 = vmatpush1.msra.mxu0 0.0
        %4634 = vmatprep.subr.mxu0 0.0
        %4635 = vmatpush1.msra.mxu0 0.0
        %4636 = vmatprep.subr.mxu0 0.0
        %4637 = vmatpush1.msra.mxu0 0.0
        %4638 = vmatprep.subr.mxu0 0.0
        %4639 = vmatpush1.msra.mxu0 0.0
        %4640 = vmatprep.subr.mxu0 0.0
        %4641 = vmatpush1.msra.mxu0 0.0
        %4642 = vmatprep.subr.mxu0 0.0
        %4643 = vmatpush1.msra.mxu0 0.0
        %4644 = vmatprep.subr.mxu0 0.0
        %4645 = vmatpush1.msra.mxu0 0.0
        %4646 = vmatprep.subr.mxu0 0.0
        %4647 = vmatpush1.msra.mxu0 0.0
        %4648 = vmatprep.subr.mxu0 0.0
        %4649 = vmatpush1.msra.mxu0 0.0
        %4650 = vmatprep.subr.mxu0 0.0
        %4651 = vmatpush1.msra.mxu0 0.0
        %4652 = vmatprep.subr.mxu0 0.0
        %4653 = vmatpush1.msra.mxu0 0.0
        %4654 = vmatprep.subr.mxu0 0.0
        %4655 = vmatpush1.msra.mxu0 0.0
        %4656 = vmatprep.subr.mxu0 0.0
        %4657 = vmatpush1.msra.mxu0 0.0
        %4658 = vmatprep.subr.mxu0 0.0
        %4659 = vmatpush1.msra.mxu0 0.0
        %4660 = vmatprep.subr.mxu0 0.0
        %4661 = vmatpush1.msra.mxu0 0.0
        %4662 = vmatprep.subr.mxu0 0.0
        %4663 = vmatpush1.msra.mxu0 0.0
        %4664 = vmatprep.subr.mxu0 0.0
        %4665 = vmatpush1.msra.mxu0 0.0
        %4666 = vmatprep.subr.mxu0 0.0
        %4667 = vmatpush1.msra.mxu0 0.0
        %4668 = vmatprep.subr.mxu0 0.0
        %4669 = vmatpush1.msra.mxu0 0.0
        %4670 = vmatprep.subr.mxu0 0.0
        %4671 = vmatpush1.msra.mxu0 0.0
        %4672 = vmatprep.subr.mxu0 0.0
        %4673 = vmatpush1.msra.mxu0 0.0
        %4674 = vmatprep.subr.mxu0 0.0
        %4675 = vmatpush1.msra.mxu0 0.0
        %4676 = vmatprep.subr.mxu0 0.0
        %4677 = vmatpush1.msra.mxu0 0.0
        %4678 = vmatprep.subr.mxu0 0.0
        %4679 = vmatpush1.msra.mxu0 0.0
        %4680 = vmatprep.subr.mxu0 0.0
        %4681 = vmatpush1.msra.mxu0 0.0
        %4682 = vmatprep.subr.mxu0 0.0
        %4683 = vmatpush1.msra.mxu0 0.0
        %4684 = vmatprep.mubr.f32.mxu0 0.0
        %4685 = vmatmul.mubr.f32.gmra.mrb[0].mxu0 %v4618
        %v4686 = vpop.f32.mrb[0].mxu0
        %v4687 = vadd.f32 %v4615, %v4686
        %v4688 = vpop.f32.mrb[0].mxu0
        %4689 = vdwg.mxu0
        %4690 = vst.msk [vmem:[%s1090] sm:$0xff] %vm1111, %v4687
        %s4691 = sand.u32 %s800, 1
        %s4692 = scalar_lea.sflag [#allocation4], %s4691
        %s4693 = sand.u32 %s800, 1
        %s4694 = scalar_lea.vmem [#allocation3], %s4693
        %s4695 = sand.u32 %s89, 1
        %s4696 = scalar_lea.sflag [#allocation6], %s4695
        %s4697 = sand.u32 %s826, 1
        %s4698 = scalar_lea.vmem [#allocation5], %s4697
        %s4699 = sand.u32 %s89, 1
        %s4700 = scalar_lea.sflag [#allocation6], %s4699
        %s4701 = sand.u32 %s852, 1
        %s4702 = smul.addr %s4701, 8
        %s4703 = scalar_lea.vmem [#allocation7], %s4702
        // Predicated region
        $region153: #{run.1} parent=151 // pred_check
          %p4704 = pneg %p810
        $region154: #{run.1} parent=151 // pred_check_branch
          %4706 = sbr.rel (%p4704) target = $region156
        $region155: #{run.1} parent=151 // pred_region
          %s4708 = ssub.s32 16, 16
          %4709 = vsyncadd %s4692, %s4708
          %s4710 = smul.addr %s89, 16
          %s4711 = scalar_lea.hbm %s67, %s4710
          %s4713 = sshll.u32 %s4694, 4
          %s4714 = int_to_ptr.vmem [resolvable:$true] %s4713
          %4716 = dma.vmem_to_hbm [thread:$0]  %s4714, 16, %s4711, %s4692
        $region156: #{run.1} parent=151 // pred_fallthru
          _
        // Predicated region
        $region157: #{run.1} parent=151 // pred_check
          %p4717 = pneg %p836
        $region158: #{run.1} parent=151 // pred_check_branch
          %4719 = sbr.rel (%p4717) target = $region160
        $region159: #{run.1} parent=151 // pred_region
          %s4721 = ssub.s32 16, 16
          %4722 = vsyncadd %s4696, %s4721
          %s4723 = smul.addr %s89, 16
          %s4724 = scalar_lea.hbm %s69, %s4723
          %s4726 = sshll.u32 %s4698, 4
          %s4727 = int_to_ptr.vmem [resolvable:$true] %s4726
          %4729 = dma.vmem_to_hbm [thread:$0]  %s4727, 16, %s4724, %s4696
        $region160: #{run.1} parent=151 // pred_fallthru
          _
        // Predicated region
        $region161: #{run.1} parent=151 // pred_check
          %p4730 = pneg %p862
        $region162: #{run.1} parent=151 // pred_check_branch
          %4732 = sbr.rel (%p4730) target = $region164
        $region163: #{run.1} parent=151 // pred_region
          %s4734 = ssub.s32 128, 128
          %4735 = vsyncadd %s4700, %s4734
          %s4736 = smul.addr %s89, 128
          %s4737 = scalar_lea.hbm %s71, %s4736
          %s4739 = sshll.u32 %s4703, 4
          %s4740 = int_to_ptr.vmem [resolvable:$true] %s4739
          %4742 = dma.vmem_to_hbm [thread:$0]  %s4740, 128, %s4737, %s4700
        $region164: #{run.1} parent=151 // pred_fallthru
          _
      $region152: #{run.1} parent=5 // pred_fallthru
        _
      %p4743 = scmp.le.s32.totalorder 2, %s84
      // Predicated region
      $region165: #{run.1} parent=5 // pred_check
        %p4744 = pneg %p4743
      $region166: #{run.1} parent=5 // pred_check_branch
        %4746 = sbr.rel (%p4744) target = $region168
      $region167: #{run.1} parent=5 // pred_region
        %s4747 = ssub.s32 %s84, 2
        // Predicated region
        $region169: #{run.1} parent=167 // pred_check
          %p4748 = pneg %p816
        $region170: #{run.1} parent=167 // pred_check_branch
          %4750 = sbr.rel (%p4748) target = $region172
        $region171: #{run.1} parent=167 // pred_region
          %s4751 = sand.u32 %s801, 1
          %s4752 = scalar_lea.sflag [#allocation4], %s4751
          %s4753 = sand.u32 %s801, 1
          %s4754 = scalar_lea.vmem [#allocation3], %s4753
          %4755 = dma.done %s4752, 16
        $region172: #{run.1} parent=167 // pred_fallthru
          _
        // Predicated region
        $region173: #{run.1} parent=167 // pred_check
          %p4756 = pneg %p842
        $region174: #{run.1} parent=167 // pred_check_branch
          %4758 = sbr.rel (%p4756) target = $region176
        $region175: #{run.1} parent=167 // pred_region
          %s4759 = sand.u32 %s90, 1
          %s4760 = scalar_lea.sflag [#allocation6], %s4759
          %s4761 = sand.u32 %s827, 1
          %s4762 = scalar_lea.vmem [#allocation5], %s4761
          %4763 = dma.done %s4760, 16
        $region176: #{run.1} parent=167 // pred_fallthru
          _
        // Predicated region
        $region177: #{run.1} parent=167 // pred_check
          %p4764 = pneg %p868
        $region178: #{run.1} parent=167 // pred_check_branch
          %4766 = sbr.rel (%p4764) target = $region180
        $region179: #{run.1} parent=167 // pred_region
          %s4767 = sand.u32 %s90, 1
          %s4768 = scalar_lea.sflag [#allocation6], %s4767
          %s4769 = sand.u32 %s853, 1
          %s4770 = smul.addr %s4769, 8
          %s4771 = scalar_lea.vmem [#allocation7], %s4770
          %4772 = dma.done %s4768, 128
        $region180: #{run.1} parent=167 // pred_fallthru
          _
      $region168: #{run.1} parent=5 // pred_fallthru
        _
    $region6: #{run.1} parent=1 // loop_footer
      %s88 = sadd.s32 1, %s84
    $region7: #{run.1} parent=1 // loop_footer_branch
      %83 = sbr.rel target = $region3
    $region8: #{run.1} parent=1 // loop_exit
      _
    %4773 = vsyncpa [#allocation4], 1
    %s4774 = scalar_lea.sflag [#allocation4], 1
    %4775 = vsyncpa %s4774, 1
    %4776 = vsyncpa [#allocation6], 1
    %s4777 = scalar_lea.sflag [#allocation6], 1
    %4778 = vsyncpa %s4777, 1

</llo_original>
